<compile_context>
chip_gen: v6e
topology: v6e:2x2x1
jax: 0.10.0
libtpu: 0.0.40
codegen_flags: <defaults>
</compile_context>

<pallas_src>
import functools

import jax
import jax.numpy as jnp
from jax.experimental import pallas as pl
from jax.experimental.pallas import tpu as pltpu

EPS = 1e-5
IN_F = 512
HID_F = 512
OUT_F = 254        # logical (PyTorch) output width
OUT_F_PAD = 256    # lane-dense padded width used inside the kernel


def _node_kernel(x_ref, w0_ref, g0_ref, be0_ref, w1_ref, g1_ref, be1_ref,
                 out_ref, h_s, y_s, sum0, sq0, sum1, sq1, *, inv_b):
    phase = pl.program_id(0)
    tile = pl.program_id(1)
    tb = x_ref.shape[0]
    rows = pl.ds(pl.multiple_of(tile * tb, tb), tb)

    @pl.when(phase == 0)
    def _():
        # Zero the full-batch stats accumulators on the very first grid step.
        @pl.when(tile == 0)
        def _():
            sum0[...] = jnp.zeros_like(sum0)
            sq0[...] = jnp.zeros_like(sq0)
            sum1[...] = jnp.zeros_like(sum1)
            sq1[...] = jnp.zeros_like(sq1)

        # fc0 on the MXU (bf16 operands, f32 accumulation). b0 omitted: cancelled by BN0.
        h = jnp.dot(x_ref[...].astype(jnp.bfloat16), w0_ref[...],
                    preferred_element_type=jnp.float32)          # (TB, 512) f32
        h_s[rows, :] = h
        sum0[...] += jnp.sum(h, axis=0, keepdims=True)
        sq0[...] += jnp.sum(h * h, axis=0, keepdims=True)

    @pl.when(phase == 1)
    def _():
        # BN0 (training mode, full-batch stats) + ReLU, then fc1.  b1 omitted: cancelled by BN1.
        h = h_s[rows, :]
        mu = sum0[...] * inv_b
        var = jnp.maximum(sq0[...] * inv_b - mu * mu, 0.0)        # clamp: cancellation safety
        scale = g0_ref[...] * jax.lax.rsqrt(var + EPS)
        shift = be0_ref[...] - mu * scale
        hn = jnp.maximum(h * scale + shift, 0.0)

        y = jnp.dot(hn.astype(jnp.bfloat16), w1_ref[...],
                    preferred_element_type=jnp.float32)           # (TB, 256) f32
        y_s[rows, :] = y
        sum1[...] += jnp.sum(y, axis=0, keepdims=True)
        sq1[...] += jnp.sum(y * y, axis=0, keepdims=True)

    @pl.when(phase == 2)
    def _():
        # BN1 (training mode, full-batch stats).  Padded columns are exactly zero and stay zero.
        y = y_s[rows, :]
        mu = sum1[...] * inv_b
        var = jnp.maximum(sq1[...] * inv_b - mu * mu, 0.0)
        scale = g1_ref[...] * jax.lax.rsqrt(var + EPS)
        shift = be1_ref[...] - mu * scale
        out_ref[...] = y * scale + shift


def node_module(x, params, *, tb=None, slice_output=True):
    """x: (B, 512) f32 or bf16 -> (B, 254) f32 (or (B, 256) zero-padded if slice_output=False)."""
    B, in_f = x.shape
    assert in_f == IN_F
    if tb is None:
        for cand in (512, 256, 128, 64, 32, 16, 8):
            if B % cand == 0:
                tb = cand
                break
        else:
            raise ValueError("B must be a multiple of 8")
    assert B % tb == 0 and tb % 8 == 0, "batch tile must divide B and be a multiple of 8"
    nbt = B // tb

    # --- VMEM budget (weights + params + pipelined tiles double-buffered, plus activation scratch)
    wt_bytes = (IN_F * HID_F + HID_F * OUT_F_PAD) * 2                       # bf16 weights
    param_bytes = 2 * (HID_F + OUT_F_PAD) * 4                               # gamma/beta rows
    tile_bytes = tb * IN_F * x.dtype.itemsize + tb * OUT_F_PAD * 4          # x tile + out tile
    scratch_bytes = B * (HID_F + OUT_F_PAD) * 4 + 2 * (HID_F + OUT_F_PAD) * 4
    needed = 2 * (wt_bytes + param_bytes + tile_bytes) + scratch_bytes
    assert needed < 56 * 1024 * 1024, (
        "activation scratch too large for VMEM; reduce B or implement the HBM-spill path")
    vmem_limit = int(min(max(needed + (4 << 20), 32 << 20), 60 << 20))

    # --- cost estimate (each matmul done exactly once per row)
    flops = 2 * B * IN_F * HID_F + 2 * B * HID_F * OUT_F_PAD
    bytes_accessed = (wt_bytes + param_bytes
                      + B * IN_F * x.dtype.itemsize + B * OUT_F_PAD * 4)
    transcendentals = nbt * (HID_F + OUT_F_PAD)                             # rsqrt per tile

    # --- BlockSpecs. Weights/params: constant index -> loaded once, VMEM-resident for all steps.
    #     x: only advanced during phase 0 (pinned to tile 0 afterwards -> no redundant re-fetch).
    #     out: pinned to tile 0 until phase 2 -> no garbage write-backs during phases 0/1.
    x_spec = pl.BlockSpec((tb, IN_F), lambda p, i: (jnp.where(p == 0, i, 0), 0))
    out_spec = pl.BlockSpec((tb, OUT_F_PAD), lambda p, i: (jnp.where(p == 2, i, 0), 0))
    const2 = lambda shape: pl.BlockSpec(shape, lambda p, i: (0, 0))

    grid_spec = pltpu.PrefetchScalarGridSpec(
        num_scalar_prefetch=0,
        grid=(3, nbt),
        in_specs=[
            x_spec,
            const2((IN_F, HID_F)),        # w0 (bf16, transposed: in x out)
            const2((1, HID_F)),           # gamma0
            const2((1, HID_F)),           # beta0
            const2((HID_F, OUT_F_PAD)),   # w1 (bf16, padded)
            const2((1, OUT_F_PAD)),       # gamma1 (padded)
            const2((1, OUT_F_PAD)),       # beta1  (padded)
        ],
        out_specs=out_spec,
        scratch_shapes=[
            pltpu.VMEM((B, HID_F), jnp.float32),       # h  (fc0 pre-BN activations)
            pltpu.VMEM((B, OUT_F_PAD), jnp.float32),   # y  (fc1 pre-BN activations)
            pltpu.VMEM((1, HID_F), jnp.float32),       # sum  over batch of h
            pltpu.VMEM((1, HID_F), jnp.float32),       # sumsq over batch of h
            pltpu.VMEM((1, OUT_F_PAD), jnp.float32),   # sum  over batch of y
            pltpu.VMEM((1, OUT_F_PAD), jnp.float32),   # sumsq over batch of y
        ],
    )

    out_padded = pl.pallas_call(
        functools.partial(_node_kernel, inv_b=1.0 / B),
        out_shape=jax.ShapeDtypeStruct((B, OUT_F_PAD), jnp.float32),
        grid_spec=grid_spec,
        compiler_params=pltpu.CompilerParams(
            # Phases are strictly ordered and the batch axis accumulates into shared scratch,
            # so both axes are "arbitrary" (sequential) for correctness.
            dimension_semantics=("arbitrary", "arbitrary"),
            vmem_limit_bytes=vmem_limit,
        ),
        cost_estimate=pl.CostEstimate(
            flops=flops, transcendentals=transcendentals, bytes_accessed=bytes_accessed),
    )(x,
      params["w0"], params["g0"], params["be0"],
      params["w1"], params["g1"], params["be1"])

    # Downstream consumers that accept the zero-padded 256-wide slab can pass
    # slice_output=False and skip this extra XLA copy.
    return out_padded[:, :OUT_F] if slice_output else out_padded


def init_params(key):
    """Parameter init mirroring the PyTorch module.
    Linear weights stored transposed (in, out) in bf16; w1 / BN1 params zero-padded to 256 lanes.
    b0/b1 exist for fidelity but are NOT used by the kernel: training-mode BN mean subtraction
    cancels any per-feature constant exactly."""
    k0, k1, k2, k3 = jax.random.split(key, 4)
    lim0 = 1.0 / jnp.sqrt(IN_F)
    lim1 = 1.0 / jnp.sqrt(HID_F)

    w0 = jax.random.uniform(k0, (IN_F, HID_F), jnp.float32, -lim0, lim0)
    w1 = jax.random.uniform(k2, (HID_F, OUT_F), jnp.float32, -lim1, lim1)
    w1_pad = jnp.zeros((HID_F, OUT_F_PAD), jnp.float32).at[:, :OUT_F].set(w1)
    g1_pad = jnp.ones((1, OUT_F_PAD), jnp.float32)
    be1_pad = jnp.zeros((1, OUT_F_PAD), jnp.float32)

    params = {
        # fc0: Linear(512, 512)
        "w0": w0.astype(jnp.bfloat16),
        "b0": jax.random.uniform(k1, (1, HID_F), jnp.float32, -lim0, lim0),   # cancelled by BN0
        # fc0bn: BatchNorm1d(512) -> gamma=1, beta=0
        "g0": jnp.ones((1, HID_F), jnp.float32),
        "be0": jnp.zeros((1, HID_F), jnp.float32),
        # fc1: Linear(512, 254) padded to 256 output lanes
        "w1": w1_pad.astype(jnp.bfloat16),
        "b1": jax.random.uniform(k3, (1, OUT_F), jnp.float32, -lim1, lim1),   # cancelled by BN1
        # fc1bn: BatchNorm1d(254) -> gamma=1, beta=0 (padded)
        "g1": g1_pad,
        "be1": be1_pad,
    }
    # Padding invariants that keep the padded output columns exactly zero.
    assert bool(jnp.all(params["w1"][:, OUT_F:] == 0))
    assert bool(jnp.all(params["be1"][:, OUT_F:] == 0))
    return params


def _reference(x, params):
    """Pure-JAX forward matching the PyTorch module (training-mode BN, biases included)."""
    h = jnp.dot(x.astype(jnp.bfloat16), params["w0"],
                preferred_element_type=jnp.float32) + params["b0"]
    mu = h.mean(0, keepdims=True)
    var = ((h - mu) ** 2).mean(0, keepdims=True)
    h = params["g0"] * (h - mu) * jax.lax.rsqrt(var + EPS) + params["be0"]
    h = jnp.maximum(h, 0.0)

    y = jnp.dot(h.astype(jnp.bfloat16), params["w1"],
                preferred_element_type=jnp.float32)[:, :OUT_F] + params["b1"]
    mu = y.mean(0, keepdims=True)
    var = ((y - mu) ** 2).mean(0, keepdims=True)
    g1 = params["g1"][:, :OUT_F]
    be1 = params["be1"][:, :OUT_F]
    return g1 * (y - mu) * jax.lax.rsqrt(var + EPS) + be1


if __name__ == "__main__":
    key = jax.random.PRNGKey(0)
    kx, kp = jax.random.split(key)

    B = 256          # small demo batch; tb=128 exercises the multi-tile full-batch-BN path
    x = jax.random.normal(kx, (B, IN_F), dtype=jnp.float32)
    params = init_params(kp)

    out = node_module(x, params, tb=128)
    out = jax.block_until_ready(out)

    assert out.shape == (B, OUT_F) and out.dtype == jnp.float32
    assert bool(jnp.all(jnp.isfinite(out)))

    ref = jax.block_until_ready(_reference(x, params))
    max_err = float(jnp.max(jnp.abs(out - ref)))
    assert max_err < 3e-2, f"mismatch vs reference: max abs err = {max_err}"

    print("KERNEL_OK")
</pallas_src>

<mosaic_0001>
module attributes {stable_mosaic.version = 11 : i64} {
  func.func @_node_kernel(%arg0: i32, %arg1: i32, %arg2: memref<128x512xf32, #tpu.memory_space<vmem>>, %arg3: memref<512x512xbf16, #tpu.memory_space<vmem>>, %arg4: memref<1x512xf32, #tpu.memory_space<vmem>>, %arg5: memref<1x512xf32, #tpu.memory_space<vmem>>, %arg6: memref<512x256xbf16, #tpu.memory_space<vmem>>, %arg7: memref<1x256xf32, #tpu.memory_space<vmem>>, %arg8: memref<1x256xf32, #tpu.memory_space<vmem>>, %arg9: memref<128x256xf32, #tpu.memory_space<vmem>>, %arg10: memref<256x512xf32, #tpu.memory_space<vmem>>, %arg11: memref<256x256xf32, #tpu.memory_space<vmem>>, %arg12: memref<1x512xf32, #tpu.memory_space<vmem>>, %arg13: memref<1x512xf32, #tpu.memory_space<vmem>>, %arg14: memref<1x256xf32, #tpu.memory_space<vmem>>, %arg15: memref<1x256xf32, #tpu.memory_space<vmem>>) attributes {dimension_semantics = [#tpu.dimension_semantics<arbitrary>, #tpu.dimension_semantics<arbitrary>], iteration_bounds = array<i64: 3, 2>, scalar_prefetch = 0 : i64, scratch_operands = 6 : i64, tpu.core_type = #tpu.core_type<tc>, window_params = [{transform_indices = @transform_0, window_bounds = array<i64: 128, 512>}, {pipeline_mode = #tpu.pipeline_mode<synchronous>, transform_indices = @transform_1, window_bounds = array<i64: 512, 512>}, {pipeline_mode = #tpu.pipeline_mode<synchronous>, transform_indices = @transform_2, window_bounds = array<i64: 1, 512>}, {pipeline_mode = #tpu.pipeline_mode<synchronous>, transform_indices = @transform_3, window_bounds = array<i64: 1, 512>}, {pipeline_mode = #tpu.pipeline_mode<synchronous>, transform_indices = @transform_4, window_bounds = array<i64: 512, 256>}, {pipeline_mode = #tpu.pipeline_mode<synchronous>, transform_indices = @transform_5, window_bounds = array<i64: 1, 256>}, {pipeline_mode = #tpu.pipeline_mode<synchronous>, transform_indices = @transform_6, window_bounds = array<i64: 1, 256>}, {transform_indices = @transform_7, window_bounds = array<i64: 128, 256>}]} {
    %c128_i32 = arith.constant 128 : i32
    %0 = arith.muli %arg1, %c128_i32 : i32
    %1 = tpu.assume_multiple %0, 128 : i32
    %c0_i32 = arith.constant 0 : i32
    %2 = arith.cmpi eq, %arg0, %c0_i32 : i32
    %3 = arith.extui %2 : i1 to i32
    %c0_i32_0 = arith.constant 0 : i32
    %4 = arith.cmpi ne, %3, %c0_i32_0 : i32
    scf.if %4 {
      %c0_i32_3 = arith.constant 0 : i32
      %11 = arith.cmpi eq, %arg1, %c0_i32_3 : i32
      %12 = arith.extui %11 : i1 to i32
      %c0_i32_4 = arith.constant 0 : i32
      %13 = arith.cmpi ne, %12, %c0_i32_4 : i32
      scf.if %13 {
        %cst_19 = arith.constant 0.000000e+00 : f32
        %31 = vector.broadcast %cst_19 : f32 to vector<1x512xf32>
        %c0_20 = arith.constant 0 : index
        %c0_21 = arith.constant 0 : index
        %32 = vector.load %arg12[%c0_20, %c0_21] : memref<1x512xf32, #tpu.memory_space<vmem>>, vector<1x512xf32>
        tpu.vector_store %arg12[%c0_20, %c0_21], %31 {strides = array<i32>} : memref<1x512xf32, #tpu.memory_space<vmem>>, vector<1x512xf32>,
        %cst_22 = arith.constant 0.000000e+00 : f32
        %33 = vector.broadcast %cst_22 : f32 to vector<1x512xf32>
        %c0_23 = arith.constant 0 : index
        %c0_24 = arith.constant 0 : index
        %34 = vector.load %arg13[%c0_23, %c0_24] : memref<1x512xf32, #tpu.memory_space<vmem>>, vector<1x512xf32>
        tpu.vector_store %arg13[%c0_23, %c0_24], %33 {strides = array<i32>} : memref<1x512xf32, #tpu.memory_space<vmem>>, vector<1x512xf32>,
        %cst_25 = arith.constant 0.000000e+00 : f32
        %35 = vector.broadcast %cst_25 : f32 to vector<1x256xf32>
        %c0_26 = arith.constant 0 : index
        %c0_27 = arith.constant 0 : index
        %36 = vector.load %arg14[%c0_26, %c0_27] : memref<1x256xf32, #tpu.memory_space<vmem>>, vector<1x256xf32>
        tpu.vector_store %arg14[%c0_26, %c0_27], %35 {strides = array<i32>} : memref<1x256xf32, #tpu.memory_space<vmem>>, vector<1x256xf32>,
        %cst_28 = arith.constant 0.000000e+00 : f32
        %37 = vector.broadcast %cst_28 : f32 to vector<1x256xf32>
        %c0_29 = arith.constant 0 : index
        %c0_30 = arith.constant 0 : index
        %38 = vector.load %arg15[%c0_29, %c0_30] : memref<1x256xf32, #tpu.memory_space<vmem>>, vector<1x256xf32>
        tpu.vector_store %arg15[%c0_29, %c0_30], %37 {strides = array<i32>} : memref<1x256xf32, #tpu.memory_space<vmem>>, vector<1x256xf32>,
      } else {
      }
      %c0 = arith.constant 0 : index
      %c0_5 = arith.constant 0 : index
      %14 = vector.load %arg2[%c0, %c0_5] : memref<128x512xf32, #tpu.memory_space<vmem>>, vector<128x512xf32>
      %15 = arith.truncf %14 : vector<128x512xf32> to vector<128x512xbf16>
      %c0_6 = arith.constant 0 : index
      %c0_7 = arith.constant 0 : index
      %16 = vector.load %arg3[%c0_6, %c0_7] : memref<512x512xbf16, #tpu.memory_space<vmem>>, vector<512x512xbf16>
      %cst = arith.constant dense<0.000000e+00> : vector<128x512xf32>
      %17 = tpu.matmul %15, %16, %cst {dimension_numbers = #tpu.dot_dimension_numbers<[1], [0], [0], [1], [0, 0, 1, 1], [], []>} : vector<128x512xbf16>, vector<512x512xbf16>, vector<128x512xf32> -> vector<128x512xf32>
      %18 = arith.index_cast %1 : i32 to index
      %c0_8 = arith.constant 0 : index
      %19 = vector.load %arg10[%18, %c0_8] : memref<256x512xf32, #tpu.memory_space<vmem>>, vector<128x512xf32>
      tpu.vector_store %arg10[%18, %c0_8], %17 {strides = array<i32>} : memref<256x512xf32, #tpu.memory_space<vmem>>, vector<128x512xf32>,
      %c0_9 = arith.constant 0 : index
      %c0_10 = arith.constant 0 : index
      %20 = vector.load %arg12[%c0_9, %c0_10] : memref<1x512xf32, #tpu.memory_space<vmem>>, vector<1x512xf32>
      %cst_11 = arith.constant dense<0.000000e+00> : vector<512xf32>
      %21 = vector.multi_reduction <add>, %17, %cst_11 [0] : vector<128x512xf32> to vector<512xf32>
      %22 = vector.shape_cast %21 : vector<512xf32> to vector<1x512xf32>
      %23 = arith.addf %20, %22 : vector<1x512xf32>
      %c0_12 = arith.constant 0 : index
      %c0_13 = arith.constant 0 : index
      %24 = vector.load %arg12[%c0_12, %c0_13] : memref<1x512xf32, #tpu.memory_space<vmem>>, vector<1x512xf32>
      tpu.vector_store %arg12[%c0_12, %c0_13], %23 {strides = array<i32>} : memref<1x512xf32, #tpu.memory_space<vmem>>, vector<1x512xf32>,
      %c0_14 = arith.constant 0 : index
      %c0_15 = arith.constant 0 : index
      %25 = vector.load %arg13[%c0_14, %c0_15] : memref<1x512xf32, #tpu.memory_space<vmem>>, vector<1x512xf32>
      %26 = arith.mulf %17, %17 : vector<128x512xf32>
      %cst_16 = arith.constant dense<0.000000e+00> : vector<512xf32>
      %27 = vector.multi_reduction <add>, %26, %cst_16 [0] : vector<128x512xf32> to vector<512xf32>
      %28 = vector.shape_cast %27 : vector<512xf32> to vector<1x512xf32>
      %29 = arith.addf %25, %28 : vector<1x512xf32>
      %c0_17 = arith.constant 0 : index
      %c0_18 = arith.constant 0 : index
      %30 = vector.load %arg13[%c0_17, %c0_18] : memref<1x512xf32, #tpu.memory_space<vmem>>, vector<1x512xf32>
      tpu.vector_store %arg13[%c0_17, %c0_18], %29 {strides = array<i32>} : memref<1x512xf32, #tpu.memory_space<vmem>>, vector<1x512xf32>,
    } else {
    }
    %c1_i32 = arith.constant 1 : i32
    %5 = arith.cmpi eq, %arg0, %c1_i32 : i32
    %6 = arith.extui %5 : i1 to i32
    %c0_i32_1 = arith.constant 0 : i32
    %7 = arith.cmpi ne, %6, %c0_i32_1 : i32
    scf.if %7 {
      %11 = arith.index_cast %1 : i32 to index
      %c0 = arith.constant 0 : index
      %12 = vector.load %arg10[%11, %c0] : memref<256x512xf32, #tpu.memory_space<vmem>>, vector<128x512xf32>
      %c0_3 = arith.constant 0 : index
      %c0_4 = arith.constant 0 : index
      %13 = vector.load %arg12[%c0_3, %c0_4] : memref<1x512xf32, #tpu.memory_space<vmem>>, vector<1x512xf32>
      %cst = arith.constant 3.906250e-03 : f32
      %14 = vector.broadcast %cst : f32 to vector<1x512xf32>
      %15 = arith.mulf %13, %14 : vector<1x512xf32>
      %c0_5 = arith.constant 0 : index
      %c0_6 = arith.constant 0 : index
      %16 = vector.load %arg13[%c0_5, %c0_6] : memref<1x512xf32, #tpu.memory_space<vmem>>, vector<1x512xf32>
      %cst_7 = arith.constant 3.906250e-03 : f32
      %17 = vector.broadcast %cst_7 : f32 to vector<1x512xf32>
      %18 = arith.mulf %16, %17 : vector<1x512xf32>
      %19 = arith.mulf %15, %15 : vector<1x512xf32>
      %20 = arith.subf %18, %19 : vector<1x512xf32>
      %cst_8 = arith.constant 0.000000e+00 : f32
      %21 = vector.broadcast %cst_8 : f32 to vector<1x512xf32>
      %22 = arith.maximumf %20, %21 : vector<1x512xf32>
      %c0_9 = arith.constant 0 : index
      %c0_10 = arith.constant 0 : index
      %23 = vector.load %arg4[%c0_9, %c0_10] : memref<1x512xf32, #tpu.memory_space<vmem>>, vector<1x512xf32>
      %cst_11 = arith.constant 9.99999974E-6 : f32
      %24 = vector.broadcast %cst_11 : f32 to vector<1x512xf32>
      %25 = arith.addf %22, %24 : vector<1x512xf32>
      %26 = math.rsqrt %25 : vector<1x512xf32>
      %27 = arith.mulf %23, %26 : vector<1x512xf32>
      %c0_12 = arith.constant 0 : index
      %c0_13 = arith.constant 0 : index
      %28 = vector.load %arg5[%c0_12, %c0_13] : memref<1x512xf32, #tpu.memory_space<vmem>>, vector<1x512xf32>
      %29 = arith.mulf %15, %27 : vector<1x512xf32>
      %30 = arith.subf %28, %29 : vector<1x512xf32>
      %31 = vector.broadcast %27 : vector<1x512xf32> to vector<128x512xf32>
      %32 = arith.mulf %12, %31 : vector<128x512xf32>
      %33 = vector.broadcast %30 : vector<1x512xf32> to vector<128x512xf32>
      %34 = arith.addf %32, %33 : vector<128x512xf32>
      %cst_14 = arith.constant 0.000000e+00 : f32
      %35 = vector.broadcast %cst_14 : f32 to vector<128x512xf32>
      %36 = arith.maximumf %34, %35 : vector<128x512xf32>
      %37 = arith.truncf %36 : vector<128x512xf32> to vector<128x512xbf16>
      %c0_15 = arith.constant 0 : index
      %c0_16 = arith.constant 0 : index
      %38 = vector.load %arg6[%c0_15, %c0_16] : memref<512x256xbf16, #tpu.memory_space<vmem>>, vector<512x256xbf16>
      %cst_17 = arith.constant dense<0.000000e+00> : vector<128x256xf32>
      %39 = tpu.matmul %37, %38, %cst_17 {dimension_numbers = #tpu.dot_dimension_numbers<[1], [0], [0], [1], [0, 0, 1, 1], [], []>} : vector<128x512xbf16>, vector<512x256xbf16>, vector<128x256xf32> -> vector<128x256xf32>
      %40 = arith.index_cast %1 : i32 to index
      %c0_18 = arith.constant 0 : index
      %41 = vector.load %arg11[%40, %c0_18] : memref<256x256xf32, #tpu.memory_space<vmem>>, vector<128x256xf32>
      tpu.vector_store %arg11[%40, %c0_18], %39 {strides = array<i32>} : memref<256x256xf32, #tpu.memory_space<vmem>>, vector<128x256xf32>,
      %c0_19 = arith.constant 0 : index
      %c0_20 = arith.constant 0 : index
      %42 = vector.load %arg14[%c0_19, %c0_20] : memref<1x256xf32, #tpu.memory_space<vmem>>, vector<1x256xf32>
      %cst_21 = arith.constant dense<0.000000e+00> : vector<256xf32>
      %43 = vector.multi_reduction <add>, %39, %cst_21 [0] : vector<128x256xf32> to vector<256xf32>
      %44 = vector.shape_cast %43 : vector<256xf32> to vector<1x256xf32>
      %45 = arith.addf %42, %44 : vector<1x256xf32>
      %c0_22 = arith.constant 0 : index
      %c0_23 = arith.constant 0 : index
      %46 = vector.load %arg14[%c0_22, %c0_23] : memref<1x256xf32, #tpu.memory_space<vmem>>, vector<1x256xf32>
      tpu.vector_store %arg14[%c0_22, %c0_23], %45 {strides = array<i32>} : memref<1x256xf32, #tpu.memory_space<vmem>>, vector<1x256xf32>,
      %c0_24 = arith.constant 0 : index
      %c0_25 = arith.constant 0 : index
      %47 = vector.load %arg15[%c0_24, %c0_25] : memref<1x256xf32, #tpu.memory_space<vmem>>, vector<1x256xf32>
      %48 = arith.mulf %39, %39 : vector<128x256xf32>
      %cst_26 = arith.constant dense<0.000000e+00> : vector<256xf32>
      %49 = vector.multi_reduction <add>, %48, %cst_26 [0] : vector<128x256xf32> to vector<256xf32>
      %50 = vector.shape_cast %49 : vector<256xf32> to vector<1x256xf32>
      %51 = arith.addf %47, %50 : vector<1x256xf32>
      %c0_27 = arith.constant 0 : index
      %c0_28 = arith.constant 0 : index
      %52 = vector.load %arg15[%c0_27, %c0_28] : memref<1x256xf32, #tpu.memory_space<vmem>>, vector<1x256xf32>
      tpu.vector_store %arg15[%c0_27, %c0_28], %51 {strides = array<i32>} : memref<1x256xf32, #tpu.memory_space<vmem>>, vector<1x256xf32>,
    } else {
    }
    %c2_i32 = arith.constant 2 : i32
    %8 = arith.cmpi eq, %arg0, %c2_i32 : i32
    %9 = arith.extui %8 : i1 to i32
    %c0_i32_2 = arith.constant 0 : i32
    %10 = arith.cmpi ne, %9, %c0_i32_2 : i32
    scf.if %10 {
      %11 = arith.index_cast %1 : i32 to index
      %c0 = arith.constant 0 : index
      %12 = vector.load %arg11[%11, %c0] : memref<256x256xf32, #tpu.memory_space<vmem>>, vector<128x256xf32>
      %c0_3 = arith.constant 0 : index
      %c0_4 = arith.constant 0 : index
      %13 = vector.load %arg14[%c0_3, %c0_4] : memref<1x256xf32, #tpu.memory_space<vmem>>, vector<1x256xf32>
      %cst = arith.constant 3.906250e-03 : f32
      %14 = vector.broadcast %cst : f32 to vector<1x256xf32>
      %15 = arith.mulf %13, %14 : vector<1x256xf32>
      %c0_5 = arith.constant 0 : index
      %c0_6 = arith.constant 0 : index
      %16 = vector.load %arg15[%c0_5, %c0_6] : memref<1x256xf32, #tpu.memory_space<vmem>>, vector<1x256xf32>
      %cst_7 = arith.constant 3.906250e-03 : f32
      %17 = vector.broadcast %cst_7 : f32 to vector<1x256xf32>
      %18 = arith.mulf %16, %17 : vector<1x256xf32>
      %19 = arith.mulf %15, %15 : vector<1x256xf32>
      %20 = arith.subf %18, %19 : vector<1x256xf32>
      %cst_8 = arith.constant 0.000000e+00 : f32
      %21 = vector.broadcast %cst_8 : f32 to vector<1x256xf32>
      %22 = arith.maximumf %20, %21 : vector<1x256xf32>
      %c0_9 = arith.constant 0 : index
      %c0_10 = arith.constant 0 : index
      %23 = vector.load %arg7[%c0_9, %c0_10] : memref<1x256xf32, #tpu.memory_space<vmem>>, vector<1x256xf32>
      %cst_11 = arith.constant 9.99999974E-6 : f32
      %24 = vector.broadcast %cst_11 : f32 to vector<1x256xf32>
      %25 = arith.addf %22, %24 : vector<1x256xf32>
      %26 = math.rsqrt %25 : vector<1x256xf32>
      %27 = arith.mulf %23, %26 : vector<1x256xf32>
      %c0_12 = arith.constant 0 : index
      %c0_13 = arith.constant 0 : index
      %28 = vector.load %arg8[%c0_12, %c0_13] : memref<1x256xf32, #tpu.memory_space<vmem>>, vector<1x256xf32>
      %29 = arith.mulf %15, %27 : vector<1x256xf32>
      %30 = arith.subf %28, %29 : vector<1x256xf32>
      %31 = vector.broadcast %27 : vector<1x256xf32> to vector<128x256xf32>
      %32 = arith.mulf %12, %31 : vector<128x256xf32>
      %33 = vector.broadcast %30 : vector<1x256xf32> to vector<128x256xf32>
      %34 = arith.addf %32, %33 : vector<128x256xf32>
      %c0_14 = arith.constant 0 : index
      %c0_15 = arith.constant 0 : index
      %35 = vector.load %arg9[%c0_14, %c0_15] : memref<128x256xf32, #tpu.memory_space<vmem>>, vector<128x256xf32>
      tpu.vector_store %arg9[%c0_14, %c0_15], %34 {strides = array<i32>} : memref<128x256xf32, #tpu.memory_space<vmem>>, vector<128x256xf32>,
    } else {
    }
    return
  }
  func.func @transform_0(%arg0: i32, %arg1: i32) -> (i32, i32) {
    %c0_i32 = arith.constant 0 : i32
    %0 = arith.cmpi eq, %arg0, %c0_i32 : i32
    %c0_i32_0 = arith.constant 0 : i32
    %1 = arith.select %0, %arg1, %c0_i32_0 : i32
    %c0_i32_1 = arith.constant 0 : i32
    %c0_i32_2 = arith.constant 0 : i32
    return %1, %c0_i32_1 : i32, i32
  }
  func.func @transform_1(%arg0: i32, %arg1: i32) -> (i32, i32) {
    %c0_i32 = arith.constant 0 : i32
    %c0_i32_0 = arith.constant 0 : i32
    %c0_i32_1 = arith.constant 0 : i32
    return %c0_i32, %c0_i32_0 : i32, i32
  }
  func.func @transform_2(%arg0: i32, %arg1: i32) -> (i32, i32) {
    %c0_i32 = arith.constant 0 : i32
    %c0_i32_0 = arith.constant 0 : i32
    %c0_i32_1 = arith.constant 0 : i32
    return %c0_i32, %c0_i32_0 : i32, i32
  }
  func.func @transform_3(%arg0: i32, %arg1: i32) -> (i32, i32) {
    %c0_i32 = arith.constant 0 : i32
    %c0_i32_0 = arith.constant 0 : i32
    %c0_i32_1 = arith.constant 0 : i32
    return %c0_i32, %c0_i32_0 : i32, i32
  }
  func.func @transform_4(%arg0: i32, %arg1: i32) -> (i32, i32) {
    %c0_i32 = arith.constant 0 : i32
    %c0_i32_0 = arith.constant 0 : i32
    %c0_i32_1 = arith.constant 0 : i32
    return %c0_i32, %c0_i32_0 : i32, i32
  }
  func.func @transform_5(%arg0: i32, %arg1: i32) -> (i32, i32) {
    %c0_i32 = arith.constant 0 : i32
    %c0_i32_0 = arith.constant 0 : i32
    %c0_i32_1 = arith.constant 0 : i32
    return %c0_i32, %c0_i32_0 : i32, i32
  }
  func.func @transform_6(%arg0: i32, %arg1: i32) -> (i32, i32) {
    %c0_i32 = arith.constant 0 : i32
    %c0_i32_0 = arith.constant 0 : i32
    %c0_i32_1 = arith.constant 0 : i32
    return %c0_i32, %c0_i32_0 : i32, i32
  }
  func.func @transform_7(%arg0: i32, %arg1: i32) -> (i32, i32) {
    %c2_i32 = arith.constant 2 : i32
    %0 = arith.cmpi eq, %arg0, %c2_i32 : i32
    %c0_i32 = arith.constant 0 : i32
    %1 = arith.select %0, %arg1, %c0_i32 : i32
    %c0_i32_0 = arith.constant 0 : i32
    %c0_i32_1 = arith.constant 0 : i32
    return %1, %c0_i32_0 : i32, i32
  }
}

</mosaic_0001>

<llo_original>
// kernel: tpu_custom_call.1
$region0: #{tpu_custom_call.1}
  #allocation0 [shape = 'u32[]', space=smem, size = 0x4, offset = 0x4, fixed_abs, tag = 'smem constant byte address 0x4 - core index']
  #allocation1 [shape = 'u32[144,128]{1,0:T(1,128)}', space=vmem, size = 0x12000, scoped, tag = 'internal scratch']
  #allocation2 [shape = 'f32[256,512]{1,0:T(8,128)}', space=vmem, size = 0x80000, scoped, tag = 'scratch operand']
  #allocation3 [shape = 'f32[256,256]{1,0:T(8,128)}', space=vmem, size = 0x40000, scoped, tag = 'scratch operand']
  #allocation4 [shape = 'f32[1,512]{1,0:T(1,128)}', space=vmem, size = 0x800, scoped, tag = 'scratch operand']
  #allocation5 [shape = 'f32[1,512]{1,0:T(1,128)}', space=vmem, size = 0x800, scoped, tag = 'scratch operand']
  #allocation6 [shape = 'f32[1,256]{1,0:T(1,128)}', space=vmem, size = 0x400, scoped, tag = 'scratch operand']
  #allocation7 [shape = 'f32[1,256]{1,0:T(1,128)}', space=vmem, size = 0x400, scoped, tag = 'scratch operand']
  %s0 = inlined_call_operand.hbm [shape: f32[256,512], index: 0, kind: input, shape index: {}]
  %s1 = inlined_call_operand.hbm [shape: bf16[512,512], index: 1, kind: input, shape index: {}]
  %s2 = inlined_call_operand.hbm [shape: f32[1,512], index: 2, kind: input, shape index: {}]
  %s3 = inlined_call_operand.vmem [shape: f32[1,512], index: 3, kind: input, shape index: {}]
  %s4 = inlined_call_operand.hbm [shape: bf16[512,256], index: 4, kind: input, shape index: {}]
  %s5 = inlined_call_operand.vmem [shape: f32[1,256], index: 5, kind: input, shape index: {}]
  %s6 = inlined_call_operand.vmem [shape: f32[1,256], index: 6, kind: input, shape index: {}]
  %s7 = inlined_call_operand.hbm [shape: f32[256,256], index: 7, kind: output, shape index: {}]
  %s8 = sld [smem:[#allocation0]]
  $region93: #{tpu_custom_call.1} parent=0
    _
  %s10 = ssub.s32 1, %s8
  %s11 = scalar_select 0, %s10, %s8
  $region1: #{tpu_custom_call.1} parent=0
    #allocation8 [shape = 'u8[524288]{0}', space=vmem, size = 0x80000, scoped, tag = 'input window, operand 0']
    #allocation9 [shape = 's32[2]{0}', space=sflag, size = 0x8, scoped, tag = 'scoped memory for tpu_custom_call.1']
    #allocation10 [shape = 's32[2]{0}', space=sflag, size = 0x8, scoped, tag = 'scoped memory for tpu_custom_call.1']
    #allocation11 [shape = 'u8[524288]{0}', space=vmem, size = 0x80000, scoped, tag = 'input window, operand 1, single buffered']
    #allocation12 [shape = 's32[1]{0}', space=sflag, size = 0x4, scoped, tag = 'scoped memory for tpu_custom_call.1']
    #allocation13 [shape = 'u8[2048]{0}', space=vmem, size = 0x800, scoped, tag = 'input window, operand 2, single buffered']
    #allocation14 [shape = 'u8[262144]{0}', space=vmem, size = 0x40000, scoped, tag = 'input window, operand 4, single buffered']
    #allocation15 [shape = 's32[1]{0}', space=sflag, size = 0x4, scoped, tag = 'scoped memory for tpu_custom_call.1']
    #allocation16 [shape = 'u8[262144]{0}', space=vmem, size = 0x40000, scoped, tag = 'output window, operand 0']
    %12 = vsyncpa [#allocation9], 0
    %s13 = scalar_lea.sflag [#allocation9], 1
    %14 = vsyncpa %s13, 0
    %15 = vsyncpa [#allocation12], 0
    %16 = vsyncpa [#allocation15], 0
    %17 = vsyncpa [#allocation10], 0
    %s18 = scalar_lea.sflag [#allocation10], 1
    %19 = vsyncpa %s18, 0
    loop: start=0, step=1, limit=8
    $region2: #{tpu_custom_call.1} parent=1 // loop_pre_header
      _
    $region3: #{tpu_custom_call.1} parent=1 // loop_header
      %s21 = sphi 0, %s25
      %p22 = scmp.ge.s32.totalorder %s21, 8
      %s28 = sphi 0, %s40
      %s29 = sphi 0, %s36
      %s30 = sphi 0, %s28
      %s31 = sphi 0, %s29
      %s32 = sphi 0, %s30
      %s33 = sphi 0, %s31
      %s47 = sphi 0, %s49
      %s50 = sphi 0, %s47
      %s51 = sphi 0, %s50
      %s67 = sphi 0, %s51
      %s71 = sphi 0, %s71
      %s73 = sphi 0, %s71
      %s74 = sphi 0, %s73
      %s88 = sphi 0, %s74
      %s92 = sphi 0, %s92
      %s94 = sphi 0, %s92
      %s95 = sphi 0, %s94
      %s109 = sphi 0, %s95
      %s113 = sphi 0, %s113
      %s115 = sphi 0, %s113
      %s116 = sphi 0, %s115
      %s130 = sphi 0, %s116
      %s134 = sphi 0, %s134
      %s136 = sphi 0, %s134
      %s137 = sphi 0, %s136
      %s151 = sphi 0, %s137
      %s155 = sphi 0, %s155
      %s157 = sphi 0, %s155
      %s158 = sphi 0, %s157
      %s172 = sphi 0, %s158
      %s176 = sphi 0, %s176
      %s178 = sphi 0, %s176
      %s179 = sphi 0, %s178
      %s193 = sphi 0, %s179
      %s203 = sphi 0, %s205
      %s206 = sphi 0, %s203
      %s207 = sphi 0, %s206
      %s223 = sphi 0, %s207
    $region4: #{tpu_custom_call.1} parent=1 // loop_header_branch
      %24 = sbr.rel (%p22) target = $region8
    $region5: #{tpu_custom_call.1} parent=1 // loop_body
      %s26 = ssub.s32 %s21, 1
      %s27 = ssub.s32 %s21, 2
      %s34 = sadd.s32 1, %s29
      %p35 = scmp.ge.s32.totalorder %s34, 2
      %s36 = scalar_select %p35, 0, %s34
      %s37 = sadd.s32 1, %s28
      %s38 = scalar_select %p35, %s37, %s28
      %p39 = scmp.ge.s32.totalorder %s38, 3
      %s40 = scalar_select %p39, 0, %s38
      %p41 = scmp.eq.s32.totalorder %s28, 0
      %s42 = scalar_select %p41, %s29, 0
      %p43 = scmp.eq.s32.totalorder %s40, 0
      %s44 = scalar_select %p43, %s36, 0
      %s45 = ssub.s32 %s42, %s44
      %p46 = scmp.eq.s32.totalorder %s45, 0
      %s48 = sadd.s32 %s47, 1
      %s49 = scalar_select %p46, %s47, %s48
      %p52 = pneg %p46
      %p53 = scmp.eq.s32.totalorder %s21, 5
      %p54 = por %p52, %p53
      %p55 = scmp.ne.s32.totalorder %s47, %s50
      %p56 = scmp.eq.s32.totalorder %s21, 0
      %p57 = por %p55, %p56
      %p58 = scmp.ne.s32.totalorder %s47, %s50
      %p59 = scmp.eq.s32.totalorder %s26, 5
      %p60 = por %p58, %p59
      %p61 = scmp.ne.s32.totalorder %s50, %s51
      %p62 = scmp.eq.s32.totalorder %s26, 0
      %p63 = por %p61, %p62
      %p64 = scmp.ne.s32.totalorder %s50, %s51
      %p65 = scmp.eq.s32.totalorder %s27, 5
      %p66 = por %p64, %p65
      %p68 = scmp.ne.s32.totalorder %s51, %s67
      %p69 = scmp.eq.s32.totalorder %s27, 0
      %p70 = por %p68, %p69
      %s72 = sadd.s32 %s71, 1
      %p75 = scmp.eq.s32.totalorder %s21, 5
      %p76 = scmp.ne.s32.totalorder %s71, %s73
      %p77 = scmp.eq.s32.totalorder %s21, 0
      %p78 = por %p76, %p77
      %p79 = scmp.ne.s32.totalorder %s71, %s73
      %p80 = scmp.eq.s32.totalorder %s26, 5
      %p81 = por %p79, %p80
      %p82 = scmp.ne.s32.totalorder %s73, %s74
      %p83 = scmp.eq.s32.totalorder %s26, 0
      %p84 = por %p82, %p83
      %p85 = scmp.ne.s32.totalorder %s73, %s74
      %p86 = scmp.eq.s32.totalorder %s27, 5
      %p87 = por %p85, %p86
      %p89 = scmp.ne.s32.totalorder %s74, %s88
      %p90 = scmp.eq.s32.totalorder %s27, 0
      %p91 = por %p89, %p90
      %s93 = sadd.s32 %s92, 1
      %p96 = scmp.eq.s32.totalorder %s21, 5
      %p97 = scmp.ne.s32.totalorder %s92, %s94
      %p98 = scmp.eq.s32.totalorder %s21, 0
      %p99 = por %p97, %p98
      %p100 = scmp.ne.s32.totalorder %s92, %s94
      %p101 = scmp.eq.s32.totalorder %s26, 5
      %p102 = por %p100, %p101
      %p103 = scmp.ne.s32.totalorder %s94, %s95
      %p104 = scmp.eq.s32.totalorder %s26, 0
      %p105 = por %p103, %p104
      %p106 = scmp.ne.s32.totalorder %s94, %s95
      %p107 = scmp.eq.s32.totalorder %s27, 5
      %p108 = por %p106, %p107
      %p110 = scmp.ne.s32.totalorder %s95, %s109
      %p111 = scmp.eq.s32.totalorder %s27, 0
      %p112 = por %p110, %p111
      %s114 = sadd.s32 %s113, 1
      %p117 = scmp.eq.s32.totalorder %s21, 5
      %p118 = scmp.ne.s32.totalorder %s113, %s115
      %p119 = scmp.eq.s32.totalorder %s21, 0
      %p120 = por %p118, %p119
      %p121 = scmp.ne.s32.totalorder %s113, %s115
      %p122 = scmp.eq.s32.totalorder %s26, 5
      %p123 = por %p121, %p122
      %p124 = scmp.ne.s32.totalorder %s115, %s116
      %p125 = scmp.eq.s32.totalorder %s26, 0
      %p126 = por %p124, %p125
      %p127 = scmp.ne.s32.totalorder %s115, %s116
      %p128 = scmp.eq.s32.totalorder %s27, 5
      %p129 = por %p127, %p128
      %p131 = scmp.ne.s32.totalorder %s116, %s130
      %p132 = scmp.eq.s32.totalorder %s27, 0
      %p133 = por %p131, %p132
      %s135 = sadd.s32 %s134, 1
      %p138 = scmp.eq.s32.totalorder %s21, 5
      %p139 = scmp.ne.s32.totalorder %s134, %s136
      %p140 = scmp.eq.s32.totalorder %s21, 0
      %p141 = por %p139, %p140
      %p142 = scmp.ne.s32.totalorder %s134, %s136
      %p143 = scmp.eq.s32.totalorder %s26, 5
      %p144 = por %p142, %p143
      %p145 = scmp.ne.s32.totalorder %s136, %s137
      %p146 = scmp.eq.s32.totalorder %s26, 0
      %p147 = por %p145, %p146
      %p148 = scmp.ne.s32.totalorder %s136, %s137
      %p149 = scmp.eq.s32.totalorder %s27, 5
      %p150 = por %p148, %p149
      %p152 = scmp.ne.s32.totalorder %s137, %s151
      %p153 = scmp.eq.s32.totalorder %s27, 0
      %p154 = por %p152, %p153
      %s156 = sadd.s32 %s155, 1
      %p159 = scmp.eq.s32.totalorder %s21, 5
      %p160 = scmp.ne.s32.totalorder %s155, %s157
      %p161 = scmp.eq.s32.totalorder %s21, 0
      %p162 = por %p160, %p161
      %p163 = scmp.ne.s32.totalorder %s155, %s157
      %p164 = scmp.eq.s32.totalorder %s26, 5
      %p165 = por %p163, %p164
      %p166 = scmp.ne.s32.totalorder %s157, %s158
      %p167 = scmp.eq.s32.totalorder %s26, 0
      %p168 = por %p166, %p167
      %p169 = scmp.ne.s32.totalorder %s157, %s158
      %p170 = scmp.eq.s32.totalorder %s27, 5
      %p171 = por %p169, %p170
      %p173 = scmp.ne.s32.totalorder %s158, %s172
      %p174 = scmp.eq.s32.totalorder %s27, 0
      %p175 = por %p173, %p174
      %s177 = sadd.s32 %s176, 1
      %p180 = scmp.eq.s32.totalorder %s21, 5
      %p181 = scmp.ne.s32.totalorder %s176, %s178
      %p182 = scmp.eq.s32.totalorder %s21, 0
      %p183 = por %p181, %p182
      %p184 = scmp.ne.s32.totalorder %s176, %s178
      %p185 = scmp.eq.s32.totalorder %s26, 5
      %p186 = por %p184, %p185
      %p187 = scmp.ne.s32.totalorder %s178, %s179
      %p188 = scmp.eq.s32.totalorder %s26, 0
      %p189 = por %p187, %p188
      %p190 = scmp.ne.s32.totalorder %s178, %s179
      %p191 = scmp.eq.s32.totalorder %s27, 5
      %p192 = por %p190, %p191
      %p194 = scmp.ne.s32.totalorder %s179, %s193
      %p195 = scmp.eq.s32.totalorder %s27, 0
      %p196 = por %p194, %p195
      %p197 = scmp.eq.s32.totalorder %s28, 2
      %s198 = scalar_select %p197, %s29, 0
      %p199 = scmp.eq.s32.totalorder %s40, 2
      %s200 = scalar_select %p199, %s36, 0
      %s201 = ssub.s32 %s198, %s200
      %p202 = scmp.eq.s32.totalorder %s201, 0
      %s204 = sadd.s32 %s203, 1
      %s205 = scalar_select %p202, %s203, %s204
      %p208 = pneg %p202
      %p209 = scmp.eq.s32.totalorder %s21, 5
      %p210 = por %p208, %p209
      %p211 = scmp.ne.s32.totalorder %s203, %s206
      %p212 = scmp.eq.s32.totalorder %s21, 0
      %p213 = por %p211, %p212
      %p214 = scmp.ne.s32.totalorder %s203, %s206
      %p215 = scmp.eq.s32.totalorder %s26, 5
      %p216 = por %p214, %p215
      %p217 = scmp.ne.s32.totalorder %s206, %s207
      %p218 = scmp.eq.s32.totalorder %s26, 0
      %p219 = por %p217, %p218
      %p220 = scmp.ne.s32.totalorder %s206, %s207
      %p221 = scmp.eq.s32.totalorder %s27, 5
      %p222 = por %p220, %p221
      %p224 = scmp.ne.s32.totalorder %s207, %s223
      %p225 = scmp.eq.s32.totalorder %s27, 0
      %p226 = por %p224, %p225
      %p227 = scmp.le.s32.totalorder 1, %s21
      %p228 = scmp.lt.s32.totalorder %s21, 7
      %p229 = pnand %p227, %p228
      %p230 = pneg %p229
      // Predicated region
      $region9: #{tpu_custom_call.1} parent=5 // pred_check
        _
      $region10: #{tpu_custom_call.1} parent=5 // pred_check_branch
        %232 = sbr.rel (%p229) target = $region12
      $region11: #{tpu_custom_call.1} parent=5 // pred_region
        %s233 = ssub.s32 %s21, 1
        // Predicated region
        $region13: #{tpu_custom_call.1} parent=11 // pred_check
          %p234 = pneg %p84
        $region14: #{tpu_custom_call.1} parent=11 // pred_check_branch
          %236 = sbr.rel (%p234) target = $region16
        $region15: #{tpu_custom_call.1} parent=11 // pred_region
          %s238 = ssub.s32 16384, 16384
          %239 = vsyncadd [#allocation12], %s238
          %s240 = sshll.u32 [#allocation11], 4
          %s241 = int_to_ptr.vmem [resolvable:$true] %s240
          %246 = dma.hbm_to_vmem [thread:$0]  %s1, 16384, %s241, [#allocation12], 256, 256, 16
        $region16: #{tpu_custom_call.1} parent=11 // pred_fallthru
          _
        // Predicated region
        $region17: #{tpu_custom_call.1} parent=11 // pred_check
          %p247 = pneg %p105
        $region18: #{tpu_custom_call.1} parent=11 // pred_check_branch
          %249 = sbr.rel (%p247) target = $region20
        $region19: #{tpu_custom_call.1} parent=11 // pred_region
          %s251 = ssub.s32 64, 64
          %252 = vsyncadd [#allocation12], %s251
          %s254 = sshll.u32 [#allocation13], 4
          %s255 = int_to_ptr.vmem [resolvable:$true] %s254
          %257 = dma.hbm_to_vmem [thread:$0]  %s2, 64, %s255, [#allocation12]
        $region20: #{tpu_custom_call.1} parent=11 // pred_fallthru
          _
        // Predicated region
        $region21: #{tpu_custom_call.1} parent=11 // pred_check
          %p258 = pneg %p126
        $region22: #{tpu_custom_call.1} parent=11 // pred_check_branch
          %260 = sbr.rel (%p258) target = $region24
        $region23: #{tpu_custom_call.1} parent=11 // pred_region
          _
        $region24: #{tpu_custom_call.1} parent=11 // pred_fallthru
          _
        // Predicated region
        $region25: #{tpu_custom_call.1} parent=11 // pred_check
          %p261 = pneg %p147
        $region26: #{tpu_custom_call.1} parent=11 // pred_check_branch
          %263 = sbr.rel (%p261) target = $region28
        $region27: #{tpu_custom_call.1} parent=11 // pred_region
          %s265 = ssub.s32 8192, 8192
          %266 = vsyncadd [#allocation15], %s265
          %s267 = sshll.u32 [#allocation14], 4
          %s268 = int_to_ptr.vmem [resolvable:$true] %s267
          %273 = dma.hbm_to_vmem [thread:$0]  %s4, 8192, %s268, [#allocation15], 128, 128, 8
        $region28: #{tpu_custom_call.1} parent=11 // pred_fallthru
          _
        // Predicated region
        $region29: #{tpu_custom_call.1} parent=11 // pred_check
          %p274 = pneg %p168
        $region30: #{tpu_custom_call.1} parent=11 // pred_check_branch
          %276 = sbr.rel (%p274) target = $region32
        $region31: #{tpu_custom_call.1} parent=11 // pred_region
          _
        $region32: #{tpu_custom_call.1} parent=11 // pred_fallthru
          _
        // Predicated region
        $region33: #{tpu_custom_call.1} parent=11 // pred_check
          %p277 = pneg %p189
        $region34: #{tpu_custom_call.1} parent=11 // pred_check_branch
          %279 = sbr.rel (%p277) target = $region36
        $region35: #{tpu_custom_call.1} parent=11 // pred_region
          _
        $region36: #{tpu_custom_call.1} parent=11 // pred_fallthru
          _
      $region12: #{tpu_custom_call.1} parent=5 // pred_fallthru
        _
      %p280 = scmp.lt.s32.totalorder %s21, 6
      // Predicated region
      $region37: #{tpu_custom_call.1} parent=5 // pred_check
        %p281 = pneg %p280
      $region38: #{tpu_custom_call.1} parent=5 // pred_check_branch
        %283 = sbr.rel (%p281) target = $region40
      $region39: #{tpu_custom_call.1} parent=5 // pred_region
        // Predicated region
        $region41: #{tpu_custom_call.1} parent=39 // pred_check
          %p284 = pneg %p57
        $region42: #{tpu_custom_call.1} parent=39 // pred_check_branch
          %286 = sbr.rel (%p284) target = $region44
        $region43: #{tpu_custom_call.1} parent=39 // pred_region
          %s287 = sand.u32 %s47, 1
          %s288 = scalar_lea.sflag [#allocation9], %s287
          %s289 = sand.u32 %s47, 1
          %s290 = smul.addr %s289, 512
          %s291 = scalar_lea.vmem [#allocation8], %s290
          %p292 = scmp.eq.s32.totalorder %s28, 0
          %s293 = scalar_select %p292, %s29, 0
          %s294 = smul.u32 16, %s293
          %s296 = ssub.s32 8192, 8192
          %297 = vsyncadd %s288, %s296
          %s298 = smul.addr %s294, 4
          %s299 = smul.addr %s298, 128
          %s300 = scalar_lea.hbm %s0, %s299
          %s301 = sshll.u32 %s291, 4
          %s302 = int_to_ptr.vmem [resolvable:$true] %s301
          %307 = dma.hbm_to_vmem [thread:$0]  %s300, 8192, %s302, %s288, 512, 512, 32
        $region44: #{tpu_custom_call.1} parent=39 // pred_fallthru
          _
      $region40: #{tpu_custom_call.1} parent=5 // pred_fallthru
        _
      %p308 = scmp.le.s32.totalorder 1, %s21
      %p309 = scmp.lt.s32.totalorder %s21, 7
      %p310 = pnand %p308, %p309
      %p311 = pneg %p310
      // Predicated region
      $region45: #{tpu_custom_call.1} parent=5 // pred_check
        _
      $region46: #{tpu_custom_call.1} parent=5 // pred_check_branch
        %313 = sbr.rel (%p310) target = $region48
      $region47: #{tpu_custom_call.1} parent=5 // pred_region
        %s314 = ssub.s32 %s21, 1
        %s315 = sand.u32 %s50, 1
        %s316 = scalar_lea.sflag [#allocation9], %s315
        %s317 = sand.u32 %s50, 1
        %s318 = smul.addr %s317, 512
        %s319 = scalar_lea.vmem [#allocation8], %s318
        // Predicated region
        $region49: #{tpu_custom_call.1} parent=47 // pred_check
          %p320 = pneg %p63
        $region50: #{tpu_custom_call.1} parent=47 // pred_check_branch
          %322 = sbr.rel (%p320) target = $region52
        $region51: #{tpu_custom_call.1} parent=47 // pred_region
          %323 = dma.done %s316, 8192
        $region52: #{tpu_custom_call.1} parent=47 // pred_fallthru
          _
        // Predicated region
        $region53: #{tpu_custom_call.1} parent=47 // pred_check
          %p324 = pneg %p84
        $region54: #{tpu_custom_call.1} parent=47 // pred_check_branch
          %326 = sbr.rel (%p324) target = $region56
        $region55: #{tpu_custom_call.1} parent=47 // pred_region
          %327 = dma.done [#allocation12], 16384
        $region56: #{tpu_custom_call.1} parent=47 // pred_fallthru
          _
        // Predicated region
        $region57: #{tpu_custom_call.1} parent=47 // pred_check
          %p328 = pneg %p105
        $region58: #{tpu_custom_call.1} parent=47 // pred_check_branch
          %330 = sbr.rel (%p328) target = $region60
        $region59: #{tpu_custom_call.1} parent=47 // pred_region
          %331 = dma.done [#allocation12], 64
        $region60: #{tpu_custom_call.1} parent=47 // pred_fallthru
          _
        // Predicated region
        $region61: #{tpu_custom_call.1} parent=47 // pred_check
          %p332 = pneg %p147
        $region62: #{tpu_custom_call.1} parent=47 // pred_check_branch
          %334 = sbr.rel (%p332) target = $region64
        $region63: #{tpu_custom_call.1} parent=47 // pred_region
          %335 = dma.done [#allocation15], 8192
        $region64: #{tpu_custom_call.1} parent=47 // pred_fallthru
          _
        %s336 = sand.u32 %s50, 1
        %s337 = scalar_lea.sflag [#allocation9], %s336
        %s338 = sand.u32 %s50, 1
        %s339 = smul.addr %s338, 512
        %s340 = scalar_lea.vmem [#allocation8], %s339
        %p341 = pneg %p63
        %p342 = pneg %p60
        %p343 = pneg %p84
        %p344 = pneg %p81
        %p345 = pneg %p105
        %p346 = pneg %p102
        %p347 = pneg %p126
        %p348 = pneg %p123
        %p349 = pneg %p147
        %p350 = pneg %p144
        %p351 = pneg %p168
        %p352 = pneg %p165
        %p353 = pneg %p189
        %p354 = pneg %p186
        %p355 = pneg %p219
        %p356 = pneg %p216
        %s357 = sand.u32 %s206, 1
        %s358 = scalar_lea.sflag [#allocation10], %s357
        %s359 = sand.u32 %s206, 1
        %s360 = smul.addr %s359, 256
        %s361 = scalar_lea.vmem [#allocation16], %s360
        %p362 = scmp.eq.s32.totalorder %s30, 0
        %s363 = scalar_select %p362, %s31, 0
        %s364 = smul.u32 16, %s363
        %p365 = scmp.eq.s32.totalorder %s30, 2
        %s366 = scalar_select %p365, %s31, 0
        %s367 = smul.u32 16, %s366
        %s368 = smul.u32 %s31, 128
        %p369 = scmp.eq.s32.totalorder %s30, 0
        // Predicated region
        $region65: #{tpu_custom_call.1} parent=47 // pred_check
          %p370 = pneg %p369
        $region66: #{tpu_custom_call.1} parent=47 // pred_check_branch
          %372 = sbr.rel (%p370) target = $region68
        $region67: #{tpu_custom_call.1} parent=47 // pred_region
          %p373 = scmp.eq.s32.totalorder %s31, 0
          // Predicated region
          $region69: #{tpu_custom_call.1} parent=67 // pred_check
            %p374 = pneg %p373
          $region70: #{tpu_custom_call.1} parent=67 // pred_check_branch
            %376 = sbr.rel (%p374) target = $region72
          $region71: #{tpu_custom_call.1} parent=67 // pred_region
            %v377 = vlaneseq
            %vm378 = vcmp.ge.s32.totalorder %v377, 0
            %vm379 = vcmp.lt.s32.totalorder %v377, 512
            %vm380 = vmand %vm378, %vm379
            %381 = vst.msk [vmem:[#allocation4] sm:$0xf] %vm380, 0.0
            %382 = vst.msk [vmem:[#allocation5] sm:$0xf] %vm380, 0.0
            %vm383 = vcmp.lt.s32.totalorder %v377, 256
            %vm384 = vmand %vm378, %vm383
            %385 = vst.msk [vmem:[#allocation6] sm:$0x3] %vm384, 0.0
            %386 = vst.msk [vmem:[#allocation7] sm:$0x3] %vm384, 0.0
          $region72: #{tpu_custom_call.1} parent=67 // pred_fallthru
            _
          %v387 = vld [vmem:[%s319] sm:$0xff]
          %v388 = vld [vmem:[%s319 + $0x8] sm:$0xff]
          %v389 = vld [vmem:[%s319 + $0x10] sm:$0xff]
          %v390 = vld [vmem:[%s319 + $0x18] sm:$0xff]
          %v391 = vld [vmem:[%s319 + $0x20] sm:$0xff]
          %v392 = vld [vmem:[%s319 + $0x28] sm:$0xff]
          %v393 = vld [vmem:[%s319 + $0x30] sm:$0xff]
          %v394 = vld [vmem:[%s319 + $0x38] sm:$0xff]
          %v395 = vld [vmem:[%s319 + $0x40] sm:$0xff]
          %v396 = vld [vmem:[%s319 + $0x48] sm:$0xff]
          %v397 = vld [vmem:[%s319 + $0x50] sm:$0xff]
          %v398 = vld [vmem:[%s319 + $0x58] sm:$0xff]
          %v399 = vld [vmem:[%s319 + $0x60] sm:$0xff]
          %v400 = vld [vmem:[%s319 + $0x68] sm:$0xff]
          %v401 = vld [vmem:[%s319 + $0x70] sm:$0xff]
          %v402 = vld [vmem:[%s319 + $0x78] sm:$0xff]
          %v403 = vld [vmem:[%s319 + $0x80] sm:$0xff]
          %v404 = vld [vmem:[%s319 + $0x88] sm:$0xff]
          %v405 = vld [vmem:[%s319 + $0x90] sm:$0xff]
          %v406 = vld [vmem:[%s319 + $0x98] sm:$0xff]
          %v407 = vld [vmem:[%s319 + $0xa0] sm:$0xff]
          %v408 = vld [vmem:[%s319 + $0xa8] sm:$0xff]
          %v409 = vld [vmem:[%s319 + $0xb0] sm:$0xff]
          %v410 = vld [vmem:[%s319 + $0xb8] sm:$0xff]
          %v411 = vld [vmem:[%s319 + $0xc0] sm:$0xff]
          %v412 = vld [vmem:[%s319 + $0xc8] sm:$0xff]
          %v413 = vld [vmem:[%s319 + $0xd0] sm:$0xff]
          %v414 = vld [vmem:[%s319 + $0xd8] sm:$0xff]
          %v415 = vld [vmem:[%s319 + $0xe0] sm:$0xff]
          %v416 = vld [vmem:[%s319 + $0xe8] sm:$0xff]
          %v417 = vld [vmem:[%s319 + $0xf0] sm:$0xff]
          %v418 = vld [vmem:[%s319 + $0xf8] sm:$0xff]
          %v419 = vld [vmem:[%s319 + $0x100] sm:$0xff]
          %v420 = vld [vmem:[%s319 + $0x108] sm:$0xff]
          %v421 = vld [vmem:[%s319 + $0x110] sm:$0xff]
          %v422 = vld [vmem:[%s319 + $0x118] sm:$0xff]
          %v423 = vld [vmem:[%s319 + $0x120] sm:$0xff]
          %v424 = vld [vmem:[%s319 + $0x128] sm:$0xff]
          %v425 = vld [vmem:[%s319 + $0x130] sm:$0xff]
          %v426 = vld [vmem:[%s319 + $0x138] sm:$0xff]
          %v427 = vld [vmem:[%s319 + $0x140] sm:$0xff]
          %v428 = vld [vmem:[%s319 + $0x148] sm:$0xff]
          %v429 = vld [vmem:[%s319 + $0x150] sm:$0xff]
          %v430 = vld [vmem:[%s319 + $0x158] sm:$0xff]
          %v431 = vld [vmem:[%s319 + $0x160] sm:$0xff]
          %v432 = vld [vmem:[%s319 + $0x168] sm:$0xff]
          %v433 = vld [vmem:[%s319 + $0x170] sm:$0xff]
          %v434 = vld [vmem:[%s319 + $0x178] sm:$0xff]
          %v435 = vld [vmem:[%s319 + $0x180] sm:$0xff]
          %v436 = vld [vmem:[%s319 + $0x188] sm:$0xff]
          %v437 = vld [vmem:[%s319 + $0x190] sm:$0xff]
          %v438 = vld [vmem:[%s319 + $0x198] sm:$0xff]
          %v439 = vld [vmem:[%s319 + $0x1a0] sm:$0xff]
          %v440 = vld [vmem:[%s319 + $0x1a8] sm:$0xff]
          %v441 = vld [vmem:[%s319 + $0x1b0] sm:$0xff]
          %v442 = vld [vmem:[%s319 + $0x1b8] sm:$0xff]
          %v443 = vld [vmem:[%s319 + $0x1c0] sm:$0xff]
          %v444 = vld [vmem:[%s319 + $0x1c8] sm:$0xff]
          %v445 = vld [vmem:[%s319 + $0x1d0] sm:$0xff]
          %v446 = vld [vmem:[%s319 + $0x1d8] sm:$0xff]
          %v447 = vld [vmem:[%s319 + $0x1e0] sm:$0xff]
          %v448 = vld [vmem:[%s319 + $0x1e8] sm:$0xff]
          %v449 = vld [vmem:[%s319 + $0x1f0] sm:$0xff]
          %v450 = vld [vmem:[%s319 + $0x1f8] sm:$0xff]
          %v451 = vpack.c.bf16 %v391, %v387
          %v452 = vpack.c.bf16 %v392, %v388
          %v453 = vpack.c.bf16 %v393, %v389
          %v454 = vpack.c.bf16 %v394, %v390
          %v455 = vpack.c.bf16 %v399, %v395
          %v456 = vpack.c.bf16 %v400, %v396
          %v457 = vpack.c.bf16 %v401, %v397
          %v458 = vpack.c.bf16 %v402, %v398
          %v459 = vpack.c.bf16 %v407, %v403
          %v460 = vpack.c.bf16 %v408, %v404
          %v461 = vpack.c.bf16 %v409, %v405
          %v462 = vpack.c.bf16 %v410, %v406
          %v463 = vpack.c.bf16 %v415, %v411
          %v464 = vpack.c.bf16 %v416, %v412
          %v465 = vpack.c.bf16 %v417, %v413
          %v466 = vpack.c.bf16 %v418, %v414
          %v467 = vpack.c.bf16 %v423, %v419
          %v468 = vpack.c.bf16 %v424, %v420
          %v469 = vpack.c.bf16 %v425, %v421
          %v470 = vpack.c.bf16 %v426, %v422
          %v471 = vpack.c.bf16 %v431, %v427
          %v472 = vpack.c.bf16 %v432, %v428
          %v473 = vpack.c.bf16 %v433, %v429
          %v474 = vpack.c.bf16 %v434, %v430
          %v475 = vpack.c.bf16 %v439, %v435
          %v476 = vpack.c.bf16 %v440, %v436
          %v477 = vpack.c.bf16 %v441, %v437
          %v478 = vpack.c.bf16 %v442, %v438
          %v479 = vpack.c.bf16 %v447, %v443
          %v480 = vpack.c.bf16 %v448, %v444
          %v481 = vpack.c.bf16 %v449, %v445
          %v482 = vpack.c.bf16 %v450, %v446
          %v483 = vld [vmem:[#allocation11] sm:$0xff]
          %v484 = vld [vmem:[#allocation11 + $0x8] sm:$0xff]
          %v485 = vld [vmem:[#allocation11 + $0x10] sm:$0xff]
          %v486 = vld [vmem:[#allocation11 + $0x18] sm:$0xff]
          %v487 = vld [vmem:[#allocation11 + $0x20] sm:$0xff]
          %v488 = vld [vmem:[#allocation11 + $0x28] sm:$0xff]
          %v489 = vld [vmem:[#allocation11 + $0x30] sm:$0xff]
          %v490 = vld [vmem:[#allocation11 + $0x38] sm:$0xff]
          %v491 = vld [vmem:[#allocation11 + $0x40] sm:$0xff]
          %v492 = vld [vmem:[#allocation11 + $0x48] sm:$0xff]
          %v493 = vld [vmem:[#allocation11 + $0x50] sm:$0xff]
          %v494 = vld [vmem:[#allocation11 + $0x58] sm:$0xff]
          %v495 = vld [vmem:[#allocation11 + $0x60] sm:$0xff]
          %v496 = vld [vmem:[#allocation11 + $0x68] sm:$0xff]
          %v497 = vld [vmem:[#allocation11 + $0x70] sm:$0xff]
          %v498 = vld [vmem:[#allocation11 + $0x78] sm:$0xff]
          %v499 = vld [vmem:[#allocation11 + $0x80] sm:$0xff]
          %v500 = vld [vmem:[#allocation11 + $0x88] sm:$0xff]
          %v501 = vld [vmem:[#allocation11 + $0x90] sm:$0xff]
          %v502 = vld [vmem:[#allocation11 + $0x98] sm:$0xff]
          %v503 = vld [vmem:[#allocation11 + $0xa0] sm:$0xff]
          %v504 = vld [vmem:[#allocation11 + $0xa8] sm:$0xff]
          %v505 = vld [vmem:[#allocation11 + $0xb0] sm:$0xff]
          %v506 = vld [vmem:[#allocation11 + $0xb8] sm:$0xff]
          %v507 = vld [vmem:[#allocation11 + $0xc0] sm:$0xff]
          %v508 = vld [vmem:[#allocation11 + $0xc8] sm:$0xff]
          %v509 = vld [vmem:[#allocation11 + $0xd0] sm:$0xff]
          %v510 = vld [vmem:[#allocation11 + $0xd8] sm:$0xff]
          %v511 = vld [vmem:[#allocation11 + $0xe0] sm:$0xff]
          %v512 = vld [vmem:[#allocation11 + $0xe8] sm:$0xff]
          %v513 = vld [vmem:[#allocation11 + $0xf0] sm:$0xff]
          %v514 = vld [vmem:[#allocation11 + $0xf8] sm:$0xff]
          %v515 = vld [vmem:[#allocation11 + $0x100] sm:$0xff]
          %v516 = vld [vmem:[#allocation11 + $0x108] sm:$0xff]
          %v517 = vld [vmem:[#allocation11 + $0x110] sm:$0xff]
          %v518 = vld [vmem:[#allocation11 + $0x118] sm:$0xff]
          %v519 = vld [vmem:[#allocation11 + $0x120] sm:$0xff]
          %v520 = vld [vmem:[#allocation11 + $0x128] sm:$0xff]
          %v521 = vld [vmem:[#allocation11 + $0x130] sm:$0xff]
          %v522 = vld [vmem:[#allocation11 + $0x138] sm:$0xff]
          %v523 = vld [vmem:[#allocation11 + $0x140] sm:$0xff]
          %v524 = vld [vmem:[#allocation11 + $0x148] sm:$0xff]
          %v525 = vld [vmem:[#allocation11 + $0x150] sm:$0xff]
          %v526 = vld [vmem:[#allocation11 + $0x158] sm:$0xff]
          %v527 = vld [vmem:[#allocation11 + $0x160] sm:$0xff]
          %v528 = vld [vmem:[#allocation11 + $0x168] sm:$0xff]
          %v529 = vld [vmem:[#allocation11 + $0x170] sm:$0xff]
          %v530 = vld [vmem:[#allocation11 + $0x178] sm:$0xff]
          %v531 = vld [vmem:[#allocation11 + $0x180] sm:$0xff]
          %v532 = vld [vmem:[#allocation11 + $0x188] sm:$0xff]
          %v533 = vld [vmem:[#allocation11 + $0x190] sm:$0xff]
          %v534 = vld [vmem:[#allocation11 + $0x198] sm:$0xff]
          %v535 = vld [vmem:[#allocation11 + $0x1a0] sm:$0xff]
          %v536 = vld [vmem:[#allocation11 + $0x1a8] sm:$0xff]
          %v537 = vld [vmem:[#allocation11 + $0x1b0] sm:$0xff]
          %v538 = vld [vmem:[#allocation11 + $0x1b8] sm:$0xff]
          %v539 = vld [vmem:[#allocation11 + $0x1c0] sm:$0xff]
          %v540 = vld [vmem:[#allocation11 + $0x1c8] sm:$0xff]
          %v541 = vld [vmem:[#allocation11 + $0x1d0] sm:$0xff]
          %v542 = vld [vmem:[#allocation11 + $0x1d8] sm:$0xff]
          %v543 = vld [vmem:[#allocation11 + $0x1e0] sm:$0xff]
          %v544 = vld [vmem:[#allocation11 + $0x1e8] sm:$0xff]
          %v545 = vld [vmem:[#allocation11 + $0x1f0] sm:$0xff]
          %v546 = vld [vmem:[#allocation11 + $0x1f8] sm:$0xff]
          %v547 = vld [vmem:[#allocation11 + $0x200] sm:$0xff]
          %v548 = vld [vmem:[#allocation11 + $0x208] sm:$0xff]
          %v549 = vld [vmem:[#allocation11 + $0x210] sm:$0xff]
          %v550 = vld [vmem:[#allocation11 + $0x218] sm:$0xff]
          %v551 = vld [vmem:[#allocation11 + $0x220] sm:$0xff]
          %v552 = vld [vmem:[#allocation11 + $0x228] sm:$0xff]
          %v553 = vld [vmem:[#allocation11 + $0x230] sm:$0xff]
          %v554 = vld [vmem:[#allocation11 + $0x238] sm:$0xff]
          %v555 = vld [vmem:[#allocation11 + $0x240] sm:$0xff]
          %v556 = vld [vmem:[#allocation11 + $0x248] sm:$0xff]
          %v557 = vld [vmem:[#allocation11 + $0x250] sm:$0xff]
          %v558 = vld [vmem:[#allocation11 + $0x258] sm:$0xff]
          %v559 = vld [vmem:[#allocation11 + $0x260] sm:$0xff]
          %v560 = vld [vmem:[#allocation11 + $0x268] sm:$0xff]
          %v561 = vld [vmem:[#allocation11 + $0x270] sm:$0xff]
          %v562 = vld [vmem:[#allocation11 + $0x278] sm:$0xff]
          %v563 = vld [vmem:[#allocation11 + $0x280] sm:$0xff]
          %v564 = vld [vmem:[#allocation11 + $0x288] sm:$0xff]
          %v565 = vld [vmem:[#allocation11 + $0x290] sm:$0xff]
          %v566 = vld [vmem:[#allocation11 + $0x298] sm:$0xff]
          %v567 = vld [vmem:[#allocation11 + $0x2a0] sm:$0xff]
          %v568 = vld [vmem:[#allocation11 + $0x2a8] sm:$0xff]
          %v569 = vld [vmem:[#allocation11 + $0x2b0] sm:$0xff]
          %v570 = vld [vmem:[#allocation11 + $0x2b8] sm:$0xff]
          %v571 = vld [vmem:[#allocation11 + $0x2c0] sm:$0xff]
          %v572 = vld [vmem:[#allocation11 + $0x2c8] sm:$0xff]
          %v573 = vld [vmem:[#allocation11 + $0x2d0] sm:$0xff]
          %v574 = vld [vmem:[#allocation11 + $0x2d8] sm:$0xff]
          %v575 = vld [vmem:[#allocation11 + $0x2e0] sm:$0xff]
          %v576 = vld [vmem:[#allocation11 + $0x2e8] sm:$0xff]
          %v577 = vld [vmem:[#allocation11 + $0x2f0] sm:$0xff]
          %v578 = vld [vmem:[#allocation11 + $0x2f8] sm:$0xff]
          %v579 = vld [vmem:[#allocation11 + $0x300] sm:$0xff]
          %v580 = vld [vmem:[#allocation11 + $0x308] sm:$0xff]
          %v581 = vld [vmem:[#allocation11 + $0x310] sm:$0xff]
          %v582 = vld [vmem:[#allocation11 + $0x318] sm:$0xff]
          %v583 = vld [vmem:[#allocation11 + $0x320] sm:$0xff]
          %v584 = vld [vmem:[#allocation11 + $0x328] sm:$0xff]
          %v585 = vld [vmem:[#allocation11 + $0x330] sm:$0xff]
          %v586 = vld [vmem:[#allocation11 + $0x338] sm:$0xff]
          %v587 = vld [vmem:[#allocation11 + $0x340] sm:$0xff]
          %v588 = vld [vmem:[#allocation11 + $0x348] sm:$0xff]
          %v589 = vld [vmem:[#allocation11 + $0x350] sm:$0xff]
          %v590 = vld [vmem:[#allocation11 + $0x358] sm:$0xff]
          %v591 = vld [vmem:[#allocation11 + $0x360] sm:$0xff]
          %v592 = vld [vmem:[#allocation11 + $0x368] sm:$0xff]
          %v593 = vld [vmem:[#allocation11 + $0x370] sm:$0xff]
          %v594 = vld [vmem:[#allocation11 + $0x378] sm:$0xff]
          %v595 = vld [vmem:[#allocation11 + $0x380] sm:$0xff]
          %v596 = vld [vmem:[#allocation11 + $0x388] sm:$0xff]
          %v597 = vld [vmem:[#allocation11 + $0x390] sm:$0xff]
          %v598 = vld [vmem:[#allocation11 + $0x398] sm:$0xff]
          %v599 = vld [vmem:[#allocation11 + $0x3a0] sm:$0xff]
          %v600 = vld [vmem:[#allocation11 + $0x3a8] sm:$0xff]
          %v601 = vld [vmem:[#allocation11 + $0x3b0] sm:$0xff]
          %v602 = vld [vmem:[#allocation11 + $0x3b8] sm:$0xff]
          %v603 = vld [vmem:[#allocation11 + $0x3c0] sm:$0xff]
          %v604 = vld [vmem:[#allocation11 + $0x3c8] sm:$0xff]
          %v605 = vld [vmem:[#allocation11 + $0x3d0] sm:$0xff]
          %v606 = vld [vmem:[#allocation11 + $0x3d8] sm:$0xff]
          %v607 = vld [vmem:[#allocation11 + $0x3e0] sm:$0xff]
          %v608 = vld [vmem:[#allocation11 + $0x3e8] sm:$0xff]
          %v609 = vld [vmem:[#allocation11 + $0x3f0] sm:$0xff]
          %v610 = vld [vmem:[#allocation11 + $0x3f8] sm:$0xff]
          %v739 = vunpack.c.l.b16 %v483
          %v740 = vunpack.c.h.b16 %v483
          %v741 = vunpack.c.l.b16 %v484
          %v742 = vunpack.c.h.b16 %v484
          %v743 = vunpack.c.l.b16 %v485
          %v744 = vunpack.c.h.b16 %v485
          %v745 = vunpack.c.l.b16 %v486
          %v746 = vunpack.c.h.b16 %v486
          %v747 = vunpack.c.l.b16 %v487
          %v748 = vunpack.c.h.b16 %v487
          %v749 = vunpack.c.l.b16 %v488
          %v750 = vunpack.c.h.b16 %v488
          %v751 = vunpack.c.l.b16 %v489
          %v752 = vunpack.c.h.b16 %v489
          %v753 = vunpack.c.l.b16 %v490
          %v754 = vunpack.c.h.b16 %v490
          %v755 = vunpack.c.l.b16 %v491
          %v756 = vunpack.c.h.b16 %v491
          %v757 = vunpack.c.l.b16 %v492
          %v758 = vunpack.c.h.b16 %v492
          %v759 = vunpack.c.l.b16 %v493
          %v760 = vunpack.c.h.b16 %v493
          %v761 = vunpack.c.l.b16 %v494
          %v762 = vunpack.c.h.b16 %v494
          %v763 = vunpack.c.l.b16 %v495
          %v764 = vunpack.c.h.b16 %v495
          %v765 = vunpack.c.l.b16 %v496
          %v766 = vunpack.c.h.b16 %v496
          %v767 = vunpack.c.l.b16 %v497
          %v768 = vunpack.c.h.b16 %v497
          %v769 = vunpack.c.l.b16 %v498
          %v770 = vunpack.c.h.b16 %v498
          %v771 = vunpack.c.l.b16 %v499
          %v772 = vunpack.c.h.b16 %v499
          %v773 = vunpack.c.l.b16 %v500
          %v774 = vunpack.c.h.b16 %v500
          %v775 = vunpack.c.l.b16 %v501
          %v776 = vunpack.c.h.b16 %v501
          %v777 = vunpack.c.l.b16 %v502
          %v778 = vunpack.c.h.b16 %v502
          %v779 = vunpack.c.l.b16 %v503
          %v780 = vunpack.c.h.b16 %v503
          %v781 = vunpack.c.l.b16 %v504
          %v782 = vunpack.c.h.b16 %v504
          %v783 = vunpack.c.l.b16 %v505
          %v784 = vunpack.c.h.b16 %v505
          %v785 = vunpack.c.l.b16 %v506
          %v786 = vunpack.c.h.b16 %v506
          %v787 = vunpack.c.l.b16 %v507
          %v788 = vunpack.c.h.b16 %v507
          %v789 = vunpack.c.l.b16 %v508
          %v790 = vunpack.c.h.b16 %v508
          %v791 = vunpack.c.l.b16 %v509
          %v792 = vunpack.c.h.b16 %v509
          %v793 = vunpack.c.l.b16 %v510
          %v794 = vunpack.c.h.b16 %v510
          %v795 = vunpack.c.l.b16 %v511
          %v796 = vunpack.c.h.b16 %v511
          %v797 = vunpack.c.l.b16 %v512
          %v798 = vunpack.c.h.b16 %v512
          %v799 = vunpack.c.l.b16 %v513
          %v800 = vunpack.c.h.b16 %v513
          %v801 = vunpack.c.l.b16 %v514
          %v802 = vunpack.c.h.b16 %v514
          %v803 = vunpack.c.l.b16 %v515
          %v804 = vunpack.c.h.b16 %v515
          %v805 = vunpack.c.l.b16 %v516
          %v806 = vunpack.c.h.b16 %v516
          %v807 = vunpack.c.l.b16 %v517
          %v808 = vunpack.c.h.b16 %v517
          %v809 = vunpack.c.l.b16 %v518
          %v810 = vunpack.c.h.b16 %v518
          %v811 = vunpack.c.l.b16 %v519
          %v812 = vunpack.c.h.b16 %v519
          %v813 = vunpack.c.l.b16 %v520
          %v814 = vunpack.c.h.b16 %v520
          %v815 = vunpack.c.l.b16 %v521
          %v816 = vunpack.c.h.b16 %v521
          %v817 = vunpack.c.l.b16 %v522
          %v818 = vunpack.c.h.b16 %v522
          %v819 = vunpack.c.l.b16 %v523
          %v820 = vunpack.c.h.b16 %v523
          %v821 = vunpack.c.l.b16 %v524
          %v822 = vunpack.c.h.b16 %v524
          %v823 = vunpack.c.l.b16 %v525
          %v824 = vunpack.c.h.b16 %v525
          %v825 = vunpack.c.l.b16 %v526
          %v826 = vunpack.c.h.b16 %v526
          %v827 = vunpack.c.l.b16 %v527
          %v828 = vunpack.c.h.b16 %v527
          %v829 = vunpack.c.l.b16 %v528
          %v830 = vunpack.c.h.b16 %v528
          %v831 = vunpack.c.l.b16 %v529
          %v832 = vunpack.c.h.b16 %v529
          %v833 = vunpack.c.l.b16 %v530
          %v834 = vunpack.c.h.b16 %v530
          %v835 = vunpack.c.l.b16 %v531
          %v836 = vunpack.c.h.b16 %v531
          %v837 = vunpack.c.l.b16 %v532
          %v838 = vunpack.c.h.b16 %v532
          %v839 = vunpack.c.l.b16 %v533
          %v840 = vunpack.c.h.b16 %v533
          %v841 = vunpack.c.l.b16 %v534
          %v842 = vunpack.c.h.b16 %v534
          %v843 = vunpack.c.l.b16 %v535
          %v844 = vunpack.c.h.b16 %v535
          %v845 = vunpack.c.l.b16 %v536
          %v846 = vunpack.c.h.b16 %v536
          %v847 = vunpack.c.l.b16 %v537
          %v848 = vunpack.c.h.b16 %v537
          %v849 = vunpack.c.l.b16 %v538
          %v850 = vunpack.c.h.b16 %v538
          %v851 = vunpack.c.l.b16 %v539
          %v852 = vunpack.c.h.b16 %v539
          %v853 = vunpack.c.l.b16 %v540
          %v854 = vunpack.c.h.b16 %v540
          %v855 = vunpack.c.l.b16 %v541
          %v856 = vunpack.c.h.b16 %v541
          %v857 = vunpack.c.l.b16 %v542
          %v858 = vunpack.c.h.b16 %v542
          %v859 = vunpack.c.l.b16 %v543
          %v860 = vunpack.c.h.b16 %v543
          %v861 = vunpack.c.l.b16 %v544
          %v862 = vunpack.c.h.b16 %v544
          %v863 = vunpack.c.l.b16 %v545
          %v864 = vunpack.c.h.b16 %v545
          %v865 = vunpack.c.l.b16 %v546
          %v866 = vunpack.c.h.b16 %v546
          %v867 = vunpack.c.l.b16 %v547
          %v868 = vunpack.c.h.b16 %v547
          %v869 = vunpack.c.l.b16 %v548
          %v870 = vunpack.c.h.b16 %v548
          %v871 = vunpack.c.l.b16 %v549
          %v872 = vunpack.c.h.b16 %v549
          %v873 = vunpack.c.l.b16 %v550
          %v874 = vunpack.c.h.b16 %v550
          %v875 = vunpack.c.l.b16 %v551
          %v876 = vunpack.c.h.b16 %v551
          %v877 = vunpack.c.l.b16 %v552
          %v878 = vunpack.c.h.b16 %v552
          %v879 = vunpack.c.l.b16 %v553
          %v880 = vunpack.c.h.b16 %v553
          %v881 = vunpack.c.l.b16 %v554
          %v882 = vunpack.c.h.b16 %v554
          %v883 = vunpack.c.l.b16 %v555
          %v884 = vunpack.c.h.b16 %v555
          %v885 = vunpack.c.l.b16 %v556
          %v886 = vunpack.c.h.b16 %v556
          %v887 = vunpack.c.l.b16 %v557
          %v888 = vunpack.c.h.b16 %v557
          %v889 = vunpack.c.l.b16 %v558
          %v890 = vunpack.c.h.b16 %v558
          %v891 = vunpack.c.l.b16 %v559
          %v892 = vunpack.c.h.b16 %v559
          %v893 = vunpack.c.l.b16 %v560
          %v894 = vunpack.c.h.b16 %v560
          %v895 = vunpack.c.l.b16 %v561
          %v896 = vunpack.c.h.b16 %v561
          %v897 = vunpack.c.l.b16 %v562
          %v898 = vunpack.c.h.b16 %v562
          %v899 = vunpack.c.l.b16 %v563
          %v900 = vunpack.c.h.b16 %v563
          %v901 = vunpack.c.l.b16 %v564
          %v902 = vunpack.c.h.b16 %v564
          %v903 = vunpack.c.l.b16 %v565
          %v904 = vunpack.c.h.b16 %v565
          %v905 = vunpack.c.l.b16 %v566
          %v906 = vunpack.c.h.b16 %v566
          %v907 = vunpack.c.l.b16 %v567
          %v908 = vunpack.c.h.b16 %v567
          %v909 = vunpack.c.l.b16 %v568
          %v910 = vunpack.c.h.b16 %v568
          %v911 = vunpack.c.l.b16 %v569
          %v912 = vunpack.c.h.b16 %v569
          %v913 = vunpack.c.l.b16 %v570
          %v914 = vunpack.c.h.b16 %v570
          %v915 = vunpack.c.l.b16 %v571
          %v916 = vunpack.c.h.b16 %v571
          %v917 = vunpack.c.l.b16 %v572
          %v918 = vunpack.c.h.b16 %v572
          %v919 = vunpack.c.l.b16 %v573
          %v920 = vunpack.c.h.b16 %v573
          %v921 = vunpack.c.l.b16 %v574
          %v922 = vunpack.c.h.b16 %v574
          %v923 = vunpack.c.l.b16 %v575
          %v924 = vunpack.c.h.b16 %v575
          %v925 = vunpack.c.l.b16 %v576
          %v926 = vunpack.c.h.b16 %v576
          %v927 = vunpack.c.l.b16 %v577
          %v928 = vunpack.c.h.b16 %v577
          %v929 = vunpack.c.l.b16 %v578
          %v930 = vunpack.c.h.b16 %v578
          %v931 = vunpack.c.l.b16 %v579
          %v932 = vunpack.c.h.b16 %v579
          %v933 = vunpack.c.l.b16 %v580
          %v934 = vunpack.c.h.b16 %v580
          %v935 = vunpack.c.l.b16 %v581
          %v936 = vunpack.c.h.b16 %v581
          %v937 = vunpack.c.l.b16 %v582
          %v938 = vunpack.c.h.b16 %v582
          %v939 = vunpack.c.l.b16 %v583
          %v940 = vunpack.c.h.b16 %v583
          %v941 = vunpack.c.l.b16 %v584
          %v942 = vunpack.c.h.b16 %v584
          %v943 = vunpack.c.l.b16 %v585
          %v944 = vunpack.c.h.b16 %v585
          %v945 = vunpack.c.l.b16 %v586
          %v946 = vunpack.c.h.b16 %v586
          %v947 = vunpack.c.l.b16 %v587
          %v948 = vunpack.c.h.b16 %v587
          %v949 = vunpack.c.l.b16 %v588
          %v950 = vunpack.c.h.b16 %v588
          %v951 = vunpack.c.l.b16 %v589
          %v952 = vunpack.c.h.b16 %v589
          %v953 = vunpack.c.l.b16 %v590
          %v954 = vunpack.c.h.b16 %v590
          %v955 = vunpack.c.l.b16 %v591
          %v956 = vunpack.c.h.b16 %v591
          %v957 = vunpack.c.l.b16 %v592
          %v958 = vunpack.c.h.b16 %v592
          %v959 = vunpack.c.l.b16 %v593
          %v960 = vunpack.c.h.b16 %v593
          %v961 = vunpack.c.l.b16 %v594
          %v962 = vunpack.c.h.b16 %v594
          %v963 = vunpack.c.l.b16 %v595
          %v964 = vunpack.c.h.b16 %v595
          %v965 = vunpack.c.l.b16 %v596
          %v966 = vunpack.c.h.b16 %v596
          %v967 = vunpack.c.l.b16 %v597
          %v968 = vunpack.c.h.b16 %v597
          %v969 = vunpack.c.l.b16 %v598
          %v970 = vunpack.c.h.b16 %v598
          %v971 = vunpack.c.l.b16 %v599
          %v972 = vunpack.c.h.b16 %v599
          %v973 = vunpack.c.l.b16 %v600
          %v974 = vunpack.c.h.b16 %v600
          %v975 = vunpack.c.l.b16 %v601
          %v976 = vunpack.c.h.b16 %v601
          %v977 = vunpack.c.l.b16 %v602
          %v978 = vunpack.c.h.b16 %v602
          %v979 = vunpack.c.l.b16 %v603
          %v980 = vunpack.c.h.b16 %v603
          %v981 = vunpack.c.l.b16 %v604
          %v982 = vunpack.c.h.b16 %v604
          %v983 = vunpack.c.l.b16 %v605
          %v984 = vunpack.c.h.b16 %v605
          %v985 = vunpack.c.l.b16 %v606
          %v986 = vunpack.c.h.b16 %v606
          %v987 = vunpack.c.l.b16 %v607
          %v988 = vunpack.c.h.b16 %v607
          %v989 = vunpack.c.l.b16 %v608
          %v990 = vunpack.c.h.b16 %v608
          %v991 = vunpack.c.l.b16 %v609
          %v992 = vunpack.c.h.b16 %v609
          %v993 = vunpack.c.l.b16 %v610
          %v994 = vunpack.c.h.b16 %v610
          %v995 = vpack.c.b16 %v743, %v739
          %v996 = vpack.c.b16 %v744, %v740
          %v997 = vpack.c.b16 %v745, %v741
          %v998 = vpack.c.b16 %v746, %v742
          %v999 = vpack.c.b16 %v751, %v747
          %v1000 = vpack.c.b16 %v752, %v748
          %v1001 = vpack.c.b16 %v753, %v749
          %v1002 = vpack.c.b16 %v754, %v750
          %v1003 = vpack.c.b16 %v759, %v755
          %v1004 = vpack.c.b16 %v760, %v756
          %v1005 = vpack.c.b16 %v761, %v757
          %v1006 = vpack.c.b16 %v762, %v758
          %v1007 = vpack.c.b16 %v767, %v763
          %v1008 = vpack.c.b16 %v768, %v764
          %v1009 = vpack.c.b16 %v769, %v765
          %v1010 = vpack.c.b16 %v770, %v766
          %v1011 = vpack.c.b16 %v775, %v771
          %v1012 = vpack.c.b16 %v776, %v772
          %v1013 = vpack.c.b16 %v777, %v773
          %v1014 = vpack.c.b16 %v778, %v774
          %v1015 = vpack.c.b16 %v783, %v779
          %v1016 = vpack.c.b16 %v784, %v780
          %v1017 = vpack.c.b16 %v785, %v781
          %v1018 = vpack.c.b16 %v786, %v782
          %v1019 = vpack.c.b16 %v791, %v787
          %v1020 = vpack.c.b16 %v792, %v788
          %v1021 = vpack.c.b16 %v793, %v789
          %v1022 = vpack.c.b16 %v794, %v790
          %v1023 = vpack.c.b16 %v799, %v795
          %v1024 = vpack.c.b16 %v800, %v796
          %v1025 = vpack.c.b16 %v801, %v797
          %v1026 = vpack.c.b16 %v802, %v798
          %v1027 = vpack.c.b16 %v807, %v803
          %v1028 = vpack.c.b16 %v808, %v804
          %v1029 = vpack.c.b16 %v809, %v805
          %v1030 = vpack.c.b16 %v810, %v806
          %v1031 = vpack.c.b16 %v815, %v811
          %v1032 = vpack.c.b16 %v816, %v812
          %v1033 = vpack.c.b16 %v817, %v813
          %v1034 = vpack.c.b16 %v818, %v814
          %v1035 = vpack.c.b16 %v823, %v819
          %v1036 = vpack.c.b16 %v824, %v820
          %v1037 = vpack.c.b16 %v825, %v821
          %v1038 = vpack.c.b16 %v826, %v822
          %v1039 = vpack.c.b16 %v831, %v827
          %v1040 = vpack.c.b16 %v832, %v828
          %v1041 = vpack.c.b16 %v833, %v829
          %v1042 = vpack.c.b16 %v834, %v830
          %v1043 = vpack.c.b16 %v839, %v835
          %v1044 = vpack.c.b16 %v840, %v836
          %v1045 = vpack.c.b16 %v841, %v837
          %v1046 = vpack.c.b16 %v842, %v838
          %v1047 = vpack.c.b16 %v847, %v843
          %v1048 = vpack.c.b16 %v848, %v844
          %v1049 = vpack.c.b16 %v849, %v845
          %v1050 = vpack.c.b16 %v850, %v846
          %v1051 = vpack.c.b16 %v855, %v851
          %v1052 = vpack.c.b16 %v856, %v852
          %v1053 = vpack.c.b16 %v857, %v853
          %v1054 = vpack.c.b16 %v858, %v854
          %v1055 = vpack.c.b16 %v863, %v859
          %v1056 = vpack.c.b16 %v864, %v860
          %v1057 = vpack.c.b16 %v865, %v861
          %v1058 = vpack.c.b16 %v866, %v862
          %v1059 = vpack.c.b16 %v871, %v867
          %v1060 = vpack.c.b16 %v872, %v868
          %v1061 = vpack.c.b16 %v873, %v869
          %v1062 = vpack.c.b16 %v874, %v870
          %v1063 = vpack.c.b16 %v879, %v875
          %v1064 = vpack.c.b16 %v880, %v876
          %v1065 = vpack.c.b16 %v881, %v877
          %v1066 = vpack.c.b16 %v882, %v878
          %v1067 = vpack.c.b16 %v887, %v883
          %v1068 = vpack.c.b16 %v888, %v884
          %v1069 = vpack.c.b16 %v889, %v885
          %v1070 = vpack.c.b16 %v890, %v886
          %v1071 = vpack.c.b16 %v895, %v891
          %v1072 = vpack.c.b16 %v896, %v892
          %v1073 = vpack.c.b16 %v897, %v893
          %v1074 = vpack.c.b16 %v898, %v894
          %v1075 = vpack.c.b16 %v903, %v899
          %v1076 = vpack.c.b16 %v904, %v900
          %v1077 = vpack.c.b16 %v905, %v901
          %v1078 = vpack.c.b16 %v906, %v902
          %v1079 = vpack.c.b16 %v911, %v907
          %v1080 = vpack.c.b16 %v912, %v908
          %v1081 = vpack.c.b16 %v913, %v909
          %v1082 = vpack.c.b16 %v914, %v910
          %v1083 = vpack.c.b16 %v919, %v915
          %v1084 = vpack.c.b16 %v920, %v916
          %v1085 = vpack.c.b16 %v921, %v917
          %v1086 = vpack.c.b16 %v922, %v918
          %v1087 = vpack.c.b16 %v927, %v923
          %v1088 = vpack.c.b16 %v928, %v924
          %v1089 = vpack.c.b16 %v929, %v925
          %v1090 = vpack.c.b16 %v930, %v926
          %v1091 = vpack.c.b16 %v935, %v931
          %v1092 = vpack.c.b16 %v936, %v932
          %v1093 = vpack.c.b16 %v937, %v933
          %v1094 = vpack.c.b16 %v938, %v934
          %v1095 = vpack.c.b16 %v943, %v939
          %v1096 = vpack.c.b16 %v944, %v940
          %v1097 = vpack.c.b16 %v945, %v941
          %v1098 = vpack.c.b16 %v946, %v942
          %v1099 = vpack.c.b16 %v951, %v947
          %v1100 = vpack.c.b16 %v952, %v948
          %v1101 = vpack.c.b16 %v953, %v949
          %v1102 = vpack.c.b16 %v954, %v950
          %v1103 = vpack.c.b16 %v959, %v955
          %v1104 = vpack.c.b16 %v960, %v956
          %v1105 = vpack.c.b16 %v961, %v957
          %v1106 = vpack.c.b16 %v962, %v958
          %v1107 = vpack.c.b16 %v967, %v963
          %v1108 = vpack.c.b16 %v968, %v964
          %v1109 = vpack.c.b16 %v969, %v965
          %v1110 = vpack.c.b16 %v970, %v966
          %v1111 = vpack.c.b16 %v975, %v971
          %v1112 = vpack.c.b16 %v976, %v972
          %v1113 = vpack.c.b16 %v977, %v973
          %v1114 = vpack.c.b16 %v978, %v974
          %v1115 = vpack.c.b16 %v983, %v979
          %v1116 = vpack.c.b16 %v984, %v980
          %v1117 = vpack.c.b16 %v985, %v981
          %v1118 = vpack.c.b16 %v986, %v982
          %v1119 = vpack.c.b16 %v991, %v987
          %v1120 = vpack.c.b16 %v992, %v988
          %v1121 = vpack.c.b16 %v993, %v989
          %v1122 = vpack.c.b16 %v994, %v990
          %1251 = vmatprep.subr.bf16.mxu0 %v1024
          %1252 = vmatpush1.bf16.msra.mxu0 %v1023
          %1253 = vmatprep.subr.bf16.mxu0 %v1020
          %1254 = vmatpush1.bf16.msra.mxu0 %v1019
          %1255 = vmatprep.subr.bf16.mxu0 %v1016
          %1256 = vmatpush1.bf16.msra.mxu0 %v1015
          %1257 = vmatprep.subr.bf16.mxu0 %v1012
          %1258 = vmatpush1.bf16.msra.mxu0 %v1011
          %1259 = vmatprep.subr.bf16.mxu0 %v1008
          %1260 = vmatpush1.bf16.msra.mxu0 %v1007
          %1261 = vmatprep.subr.bf16.mxu0 %v1004
          %1262 = vmatpush1.bf16.msra.mxu0 %v1003
          %1263 = vmatprep.subr.bf16.mxu0 %v1000
          %1264 = vmatpush1.bf16.msra.mxu0 %v999
          %1265 = vmatprep.subr.bf16.mxu0 %v996
          %1266 = vmatpush1.bf16.msra.mxu0 %v995
          %1267 = vmatprep.subr.bf16.mxu0 %v1056
          %1268 = vmatpush2.bf16.msra.mxu0 %v1055
          %1269 = vmatprep.subr.bf16.mxu0 %v1052
          %1270 = vmatpush2.bf16.msra.mxu0 %v1051
          %1271 = vmatprep.subr.bf16.mxu0 %v1048
          %1272 = vmatpush2.bf16.msra.mxu0 %v1047
          %1273 = vmatprep.subr.bf16.mxu0 %v1044
          %1274 = vmatpush2.bf16.msra.mxu0 %v1043
          %1275 = vmatprep.subr.bf16.mxu0 %v1040
          %1276 = vmatpush2.bf16.msra.mxu0 %v1039
          %1277 = vmatprep.subr.bf16.mxu0 %v1036
          %1278 = vmatpush2.bf16.msra.mxu0 %v1035
          %1279 = vmatprep.subr.bf16.mxu0 %v1032
          %1280 = vmatpush2.bf16.msra.mxu0 %v1031
          %1281 = vmatprep.subr.bf16.mxu0 %v1028
          %1282 = vmatpush2.bf16.msra.mxu0 %v1027
          %1283 = vmatprep.mubr.bf16.mxu0 %v452
          %1284 = vmatmul.mubr.bf16.gmra.mxu0 %v451
          %v1285 = vpop.f32.mrf.mxu0
          %v1286 = vadd.f32 0.0, %v1285
          %v1287 = vpop.f32.mrf.mxu0
          %v1288 = vadd.f32 0.0, %v1287
          %v1289 = vpop.f32.mrf.mxu0
          %v1290 = vadd.f32 0.0, %v1289
          %v1291 = vpop.f32.mrf.mxu0
          %v1292 = vadd.f32 0.0, %v1291
          %1293 = vmatprep.mubr.bf16.mxu0 %v456
          %1294 = vmatmul.mubr.bf16.gmra.mxu0 %v455
          %v1295 = vpop.f32.mrf.mxu0
          %v1296 = vadd.f32 0.0, %v1295
          %v1297 = vpop.f32.mrf.mxu0
          %v1298 = vadd.f32 0.0, %v1297
          %v1299 = vpop.f32.mrf.mxu0
          %v1300 = vadd.f32 0.0, %v1299
          %v1301 = vpop.f32.mrf.mxu0
          %v1302 = vadd.f32 0.0, %v1301
          %1303 = vmatprep.mubr.bf16.mxu0 %v460
          %1304 = vmatmul.mubr.bf16.gmra.mxu0 %v459
          %v1305 = vpop.f32.mrf.mxu0
          %v1306 = vadd.f32 0.0, %v1305
          %v1307 = vpop.f32.mrf.mxu0
          %v1308 = vadd.f32 0.0, %v1307
          %v1309 = vpop.f32.mrf.mxu0
          %v1310 = vadd.f32 0.0, %v1309
          %v1311 = vpop.f32.mrf.mxu0
          %v1312 = vadd.f32 0.0, %v1311
          %1313 = vmatprep.mubr.bf16.mxu0 %v464
          %1314 = vmatmul.mubr.bf16.gmra.mxu0 %v463
          %v1315 = vpop.f32.mrf.mxu0
          %v1316 = vadd.f32 0.0, %v1315
          %v1317 = vpop.f32.mrf.mxu0
          %v1318 = vadd.f32 0.0, %v1317
          %v1319 = vpop.f32.mrf.mxu0
          %v1320 = vadd.f32 0.0, %v1319
          %v1321 = vpop.f32.mrf.mxu0
          %v1322 = vadd.f32 0.0, %v1321
          %1323 = vmatprep.mubr.bf16.mxu0 %v468
          %1324 = vmatmul.mubr.bf16.gmra.mxu0 %v467
          %v1325 = vpop.f32.mrf.mxu0
          %v1326 = vadd.f32 0.0, %v1325
          %v1327 = vpop.f32.mrf.mxu0
          %v1328 = vadd.f32 0.0, %v1327
          %v1329 = vpop.f32.mrf.mxu0
          %v1330 = vadd.f32 0.0, %v1329
          %v1331 = vpop.f32.mrf.mxu0
          %v1332 = vadd.f32 0.0, %v1331
          %1333 = vmatprep.mubr.bf16.mxu0 %v472
          %1334 = vmatmul.mubr.bf16.gmra.mxu0 %v471
          %v1335 = vpop.f32.mrf.mxu0
          %v1336 = vadd.f32 0.0, %v1335
          %v1337 = vpop.f32.mrf.mxu0
          %v1338 = vadd.f32 0.0, %v1337
          %v1339 = vpop.f32.mrf.mxu0
          %v1340 = vadd.f32 0.0, %v1339
          %v1341 = vpop.f32.mrf.mxu0
          %v1342 = vadd.f32 0.0, %v1341
          %1343 = vmatprep.mubr.bf16.mxu0 %v476
          %1344 = vmatmul.mubr.bf16.gmra.mxu0 %v475
          %v1345 = vpop.f32.mrf.mxu0
          %v1346 = vadd.f32 0.0, %v1345
          %v1347 = vpop.f32.mrf.mxu0
          %v1348 = vadd.f32 0.0, %v1347
          %v1349 = vpop.f32.mrf.mxu0
          %v1350 = vadd.f32 0.0, %v1349
          %v1351 = vpop.f32.mrf.mxu0
          %v1352 = vadd.f32 0.0, %v1351
          %1353 = vmatprep.mubr.bf16.mxu0 %v480
          %1354 = vmatmul.mubr.bf16.gmra.mxu0 %v479
          %v1355 = vpop.f32.mrf.mxu0
          %v1356 = vadd.f32 0.0, %v1355
          %v1357 = vpop.f32.mrf.mxu0
          %v1358 = vadd.f32 0.0, %v1357
          %v1359 = vpop.f32.mrf.mxu0
          %v1360 = vadd.f32 0.0, %v1359
          %v1361 = vpop.f32.mrf.mxu0
          %v1362 = vadd.f32 0.0, %v1361
          %1363 = vdwg.mxu0
          %1364 = vmatprep.subr.bf16.mxu0 %v1088
          %1365 = vmatpush1.bf16.msra.mxu0 %v1087
          %1366 = vmatprep.subr.bf16.mxu0 %v1084
          %1367 = vmatpush1.bf16.msra.mxu0 %v1083
          %1368 = vmatprep.subr.bf16.mxu0 %v1080
          %1369 = vmatpush1.bf16.msra.mxu0 %v1079
          %1370 = vmatprep.subr.bf16.mxu0 %v1076
          %1371 = vmatpush1.bf16.msra.mxu0 %v1075
          %1372 = vmatprep.subr.bf16.mxu0 %v1072
          %1373 = vmatpush1.bf16.msra.mxu0 %v1071
          %1374 = vmatprep.subr.bf16.mxu0 %v1068
          %1375 = vmatpush1.bf16.msra.mxu0 %v1067
          %1376 = vmatprep.subr.bf16.mxu0 %v1064
          %1377 = vmatpush1.bf16.msra.mxu0 %v1063
          %1378 = vmatprep.subr.bf16.mxu0 %v1060
          %1379 = vmatpush1.bf16.msra.mxu0 %v1059
          %1380 = vmatprep.subr.bf16.mxu0 %v1120
          %1381 = vmatpush2.bf16.msra.mxu0 %v1119
          %1382 = vmatprep.subr.bf16.mxu0 %v1116
          %1383 = vmatpush2.bf16.msra.mxu0 %v1115
          %1384 = vmatprep.subr.bf16.mxu0 %v1112
          %1385 = vmatpush2.bf16.msra.mxu0 %v1111
          %1386 = vmatprep.subr.bf16.mxu0 %v1108
          %1387 = vmatpush2.bf16.msra.mxu0 %v1107
          %1388 = vmatprep.subr.bf16.mxu0 %v1104
          %1389 = vmatpush2.bf16.msra.mxu0 %v1103
          %1390 = vmatprep.subr.bf16.mxu0 %v1100
          %1391 = vmatpush2.bf16.msra.mxu0 %v1099
          %1392 = vmatprep.subr.bf16.mxu0 %v1096
          %1393 = vmatpush2.bf16.msra.mxu0 %v1095
          %1394 = vmatprep.subr.bf16.mxu0 %v1092
          %1395 = vmatpush2.bf16.msra.mxu0 %v1091
          %1396 = vmatprep.mubr.bf16.mxu0 %v454
          %1397 = vmatmul.mubr.bf16.gmra.mxu0 %v453
          %v1398 = vpop.f32.mrf.mxu0
          %v1399 = vadd.f32 %v1286, %v1398
          %v1400 = vpop.f32.mrf.mxu0
          %v1401 = vadd.f32 %v1288, %v1400
          %v1402 = vpop.f32.mrf.mxu0
          %v1403 = vadd.f32 %v1290, %v1402
          %v1404 = vpop.f32.mrf.mxu0
          %v1405 = vadd.f32 %v1292, %v1404
          %1406 = vmatprep.mubr.bf16.mxu0 %v458
          %1407 = vmatmul.mubr.bf16.gmra.mxu0 %v457
          %v1408 = vpop.f32.mrf.mxu0
          %v1409 = vadd.f32 %v1296, %v1408
          %v1410 = vpop.f32.mrf.mxu0
          %v1411 = vadd.f32 %v1298, %v1410
          %v1412 = vpop.f32.mrf.mxu0
          %v1413 = vadd.f32 %v1300, %v1412
          %v1414 = vpop.f32.mrf.mxu0
          %v1415 = vadd.f32 %v1302, %v1414
          %1416 = vmatprep.mubr.bf16.mxu0 %v462
          %1417 = vmatmul.mubr.bf16.gmra.mxu0 %v461
          %v1418 = vpop.f32.mrf.mxu0
          %v1419 = vadd.f32 %v1306, %v1418
          %v1420 = vpop.f32.mrf.mxu0
          %v1421 = vadd.f32 %v1308, %v1420
          %v1422 = vpop.f32.mrf.mxu0
          %v1423 = vadd.f32 %v1310, %v1422
          %v1424 = vpop.f32.mrf.mxu0
          %v1425 = vadd.f32 %v1312, %v1424
          %1426 = vmatprep.mubr.bf16.mxu0 %v466
          %1427 = vmatmul.mubr.bf16.gmra.mxu0 %v465
          %v1428 = vpop.f32.mrf.mxu0
          %v1429 = vadd.f32 %v1316, %v1428
          %v1430 = vpop.f32.mrf.mxu0
          %v1431 = vadd.f32 %v1318, %v1430
          %v1432 = vpop.f32.mrf.mxu0
          %v1433 = vadd.f32 %v1320, %v1432
          %v1434 = vpop.f32.mrf.mxu0
          %v1435 = vadd.f32 %v1322, %v1434
          %1436 = vmatprep.mubr.bf16.mxu0 %v470
          %1437 = vmatmul.mubr.bf16.gmra.mxu0 %v469
          %v1438 = vpop.f32.mrf.mxu0
          %v1439 = vadd.f32 %v1326, %v1438
          %v1440 = vpop.f32.mrf.mxu0
          %v1441 = vadd.f32 %v1328, %v1440
          %v1442 = vpop.f32.mrf.mxu0
          %v1443 = vadd.f32 %v1330, %v1442
          %v1444 = vpop.f32.mrf.mxu0
          %v1445 = vadd.f32 %v1332, %v1444
          %1446 = vmatprep.mubr.bf16.mxu0 %v474
          %1447 = vmatmul.mubr.bf16.gmra.mxu0 %v473
          %v1448 = vpop.f32.mrf.mxu0
          %v1449 = vadd.f32 %v1336, %v1448
          %v1450 = vpop.f32.mrf.mxu0
          %v1451 = vadd.f32 %v1338, %v1450
          %v1452 = vpop.f32.mrf.mxu0
          %v1453 = vadd.f32 %v1340, %v1452
          %v1454 = vpop.f32.mrf.mxu0
          %v1455 = vadd.f32 %v1342, %v1454
          %1456 = vmatprep.mubr.bf16.mxu0 %v478
          %1457 = vmatmul.mubr.bf16.gmra.mxu0 %v477
          %v1458 = vpop.f32.mrf.mxu0
          %v1459 = vadd.f32 %v1346, %v1458
          %v1460 = vpop.f32.mrf.mxu0
          %v1461 = vadd.f32 %v1348, %v1460
          %v1462 = vpop.f32.mrf.mxu0
          %v1463 = vadd.f32 %v1350, %v1462
          %v1464 = vpop.f32.mrf.mxu0
          %v1465 = vadd.f32 %v1352, %v1464
          %1466 = vmatprep.mubr.bf16.mxu0 %v482
          %1467 = vmatmul.mubr.bf16.gmra.mxu0 %v481
          %v1468 = vpop.f32.mrf.mxu0
          %v1469 = vadd.f32 %v1356, %v1468
          %v1470 = vpop.f32.mrf.mxu0
          %v1471 = vadd.f32 %v1358, %v1470
          %v1472 = vpop.f32.mrf.mxu0
          %v1473 = vadd.f32 %v1360, %v1472
          %v1474 = vpop.f32.mrf.mxu0
          %v1475 = vadd.f32 %v1362, %v1474
          %1476 = vdwg.mxu0
          %1477 = vmatprep.subr.bf16.mxu0 %v1026
          %1478 = vmatpush1.bf16.msra.mxu0 %v1025
          %1479 = vmatprep.subr.bf16.mxu0 %v1022
          %1480 = vmatpush1.bf16.msra.mxu0 %v1021
          %1481 = vmatprep.subr.bf16.mxu0 %v1018
          %1482 = vmatpush1.bf16.msra.mxu0 %v1017
          %1483 = vmatprep.subr.bf16.mxu0 %v1014
          %1484 = vmatpush1.bf16.msra.mxu0 %v1013
          %1485 = vmatprep.subr.bf16.mxu0 %v1010
          %1486 = vmatpush1.bf16.msra.mxu0 %v1009
          %1487 = vmatprep.subr.bf16.mxu0 %v1006
          %1488 = vmatpush1.bf16.msra.mxu0 %v1005
          %1489 = vmatprep.subr.bf16.mxu0 %v1002
          %1490 = vmatpush1.bf16.msra.mxu0 %v1001
          %1491 = vmatprep.subr.bf16.mxu0 %v998
          %1492 = vmatpush1.bf16.msra.mxu0 %v997
          %1493 = vmatprep.subr.bf16.mxu0 %v1058
          %1494 = vmatpush2.bf16.msra.mxu0 %v1057
          %1495 = vmatprep.subr.bf16.mxu0 %v1054
          %1496 = vmatpush2.bf16.msra.mxu0 %v1053
          %1497 = vmatprep.subr.bf16.mxu0 %v1050
          %1498 = vmatpush2.bf16.msra.mxu0 %v1049
          %1499 = vmatprep.subr.bf16.mxu0 %v1046
          %1500 = vmatpush2.bf16.msra.mxu0 %v1045
          %1501 = vmatprep.subr.bf16.mxu0 %v1042
          %1502 = vmatpush2.bf16.msra.mxu0 %v1041
          %1503 = vmatprep.subr.bf16.mxu0 %v1038
          %1504 = vmatpush2.bf16.msra.mxu0 %v1037
          %1505 = vmatprep.subr.bf16.mxu0 %v1034
          %1506 = vmatpush2.bf16.msra.mxu0 %v1033
          %1507 = vmatprep.subr.bf16.mxu0 %v1030
          %1508 = vmatpush2.bf16.msra.mxu0 %v1029
          %1509 = vmatprep.mubr.bf16.mxu0 %v452
          %1510 = vmatmul.mubr.bf16.gmra.mxu0 %v451
          %v1511 = vpop.f32.mrf.mxu0
          %v1512 = vadd.f32 0.0, %v1511
          %v1513 = vpop.f32.mrf.mxu0
          %v1514 = vadd.f32 0.0, %v1513
          %v1515 = vpop.f32.mrf.mxu0
          %v1516 = vadd.f32 0.0, %v1515
          %v1517 = vpop.f32.mrf.mxu0
          %v1518 = vadd.f32 0.0, %v1517
          %1519 = vmatprep.mubr.bf16.mxu0 %v456
          %1520 = vmatmul.mubr.bf16.gmra.mxu0 %v455
          %v1521 = vpop.f32.mrf.mxu0
          %v1522 = vadd.f32 0.0, %v1521
          %v1523 = vpop.f32.mrf.mxu0
          %v1524 = vadd.f32 0.0, %v1523
          %v1525 = vpop.f32.mrf.mxu0
          %v1526 = vadd.f32 0.0, %v1525
          %v1527 = vpop.f32.mrf.mxu0
          %v1528 = vadd.f32 0.0, %v1527
          %1529 = vmatprep.mubr.bf16.mxu0 %v460
          %1530 = vmatmul.mubr.bf16.gmra.mxu0 %v459
          %v1531 = vpop.f32.mrf.mxu0
          %v1532 = vadd.f32 0.0, %v1531
          %v1533 = vpop.f32.mrf.mxu0
          %v1534 = vadd.f32 0.0, %v1533
          %v1535 = vpop.f32.mrf.mxu0
          %v1536 = vadd.f32 0.0, %v1535
          %v1537 = vpop.f32.mrf.mxu0
          %v1538 = vadd.f32 0.0, %v1537
          %1539 = vmatprep.mubr.bf16.mxu0 %v464
          %1540 = vmatmul.mubr.bf16.gmra.mxu0 %v463
          %v1541 = vpop.f32.mrf.mxu0
          %v1542 = vadd.f32 0.0, %v1541
          %v1543 = vpop.f32.mrf.mxu0
          %v1544 = vadd.f32 0.0, %v1543
          %v1545 = vpop.f32.mrf.mxu0
          %v1546 = vadd.f32 0.0, %v1545
          %v1547 = vpop.f32.mrf.mxu0
          %v1548 = vadd.f32 0.0, %v1547
          %1549 = vmatprep.mubr.bf16.mxu0 %v468
          %1550 = vmatmul.mubr.bf16.gmra.mxu0 %v467
          %v1551 = vpop.f32.mrf.mxu0
          %v1552 = vadd.f32 0.0, %v1551
          %v1553 = vpop.f32.mrf.mxu0
          %v1554 = vadd.f32 0.0, %v1553
          %v1555 = vpop.f32.mrf.mxu0
          %v1556 = vadd.f32 0.0, %v1555
          %v1557 = vpop.f32.mrf.mxu0
          %v1558 = vadd.f32 0.0, %v1557
          %1559 = vmatprep.mubr.bf16.mxu0 %v472
          %1560 = vmatmul.mubr.bf16.gmra.mxu0 %v471
          %v1561 = vpop.f32.mrf.mxu0
          %v1562 = vadd.f32 0.0, %v1561
          %v1563 = vpop.f32.mrf.mxu0
          %v1564 = vadd.f32 0.0, %v1563
          %v1565 = vpop.f32.mrf.mxu0
          %v1566 = vadd.f32 0.0, %v1565
          %v1567 = vpop.f32.mrf.mxu0
          %v1568 = vadd.f32 0.0, %v1567
          %1569 = vmatprep.mubr.bf16.mxu0 %v476
          %1570 = vmatmul.mubr.bf16.gmra.mxu0 %v475
          %v1571 = vpop.f32.mrf.mxu0
          %v1572 = vadd.f32 0.0, %v1571
          %v1573 = vpop.f32.mrf.mxu0
          %v1574 = vadd.f32 0.0, %v1573
          %v1575 = vpop.f32.mrf.mxu0
          %v1576 = vadd.f32 0.0, %v1575
          %v1577 = vpop.f32.mrf.mxu0
          %v1578 = vadd.f32 0.0, %v1577
          %1579 = vmatprep.mubr.bf16.mxu0 %v480
          %1580 = vmatmul.mubr.bf16.gmra.mxu0 %v479
          %v1581 = vpop.f32.mrf.mxu0
          %v1582 = vadd.f32 0.0, %v1581
          %v1583 = vpop.f32.mrf.mxu0
          %v1584 = vadd.f32 0.0, %v1583
          %v1585 = vpop.f32.mrf.mxu0
          %v1586 = vadd.f32 0.0, %v1585
          %v1587 = vpop.f32.mrf.mxu0
          %v1588 = vadd.f32 0.0, %v1587
          %1589 = vdwg.mxu0
          %1590 = vmatprep.subr.bf16.mxu0 %v1090
          %1591 = vmatpush1.bf16.msra.mxu0 %v1089
          %1592 = vmatprep.subr.bf16.mxu0 %v1086
          %1593 = vmatpush1.bf16.msra.mxu0 %v1085
          %1594 = vmatprep.subr.bf16.mxu0 %v1082
          %1595 = vmatpush1.bf16.msra.mxu0 %v1081
          %1596 = vmatprep.subr.bf16.mxu0 %v1078
          %1597 = vmatpush1.bf16.msra.mxu0 %v1077
          %1598 = vmatprep.subr.bf16.mxu0 %v1074
          %1599 = vmatpush1.bf16.msra.mxu0 %v1073
          %1600 = vmatprep.subr.bf16.mxu0 %v1070
          %1601 = vmatpush1.bf16.msra.mxu0 %v1069
          %1602 = vmatprep.subr.bf16.mxu0 %v1066
          %1603 = vmatpush1.bf16.msra.mxu0 %v1065
          %1604 = vmatprep.subr.bf16.mxu0 %v1062
          %1605 = vmatpush1.bf16.msra.mxu0 %v1061
          %1606 = vmatprep.subr.bf16.mxu0 %v1122
          %1607 = vmatpush2.bf16.msra.mxu0 %v1121
          %1608 = vmatprep.subr.bf16.mxu0 %v1118
          %1609 = vmatpush2.bf16.msra.mxu0 %v1117
          %1610 = vmatprep.subr.bf16.mxu0 %v1114
          %1611 = vmatpush2.bf16.msra.mxu0 %v1113
          %1612 = vmatprep.subr.bf16.mxu0 %v1110
          %1613 = vmatpush2.bf16.msra.mxu0 %v1109
          %1614 = vmatprep.subr.bf16.mxu0 %v1106
          %1615 = vmatpush2.bf16.msra.mxu0 %v1105
          %1616 = vmatprep.subr.bf16.mxu0 %v1102
          %1617 = vmatpush2.bf16.msra.mxu0 %v1101
          %1618 = vmatprep.subr.bf16.mxu0 %v1098
          %1619 = vmatpush2.bf16.msra.mxu0 %v1097
          %1620 = vmatprep.subr.bf16.mxu0 %v1094
          %1621 = vmatpush2.bf16.msra.mxu0 %v1093
          %1622 = vmatprep.mubr.bf16.mxu0 %v454
          %1623 = vmatmul.mubr.bf16.gmra.mxu0 %v453
          %v1624 = vpop.f32.mrf.mxu0
          %v1625 = vadd.f32 %v1512, %v1624
          %v1626 = vpop.f32.mrf.mxu0
          %v1627 = vadd.f32 %v1514, %v1626
          %v1628 = vpop.f32.mrf.mxu0
          %v1629 = vadd.f32 %v1516, %v1628
          %v1630 = vpop.f32.mrf.mxu0
          %v1631 = vadd.f32 %v1518, %v1630
          %1632 = vmatprep.mubr.bf16.mxu0 %v458
          %1633 = vmatmul.mubr.bf16.gmra.mxu0 %v457
          %v1634 = vpop.f32.mrf.mxu0
          %v1635 = vadd.f32 %v1522, %v1634
          %v1636 = vpop.f32.mrf.mxu0
          %v1637 = vadd.f32 %v1524, %v1636
          %v1638 = vpop.f32.mrf.mxu0
          %v1639 = vadd.f32 %v1526, %v1638
          %v1640 = vpop.f32.mrf.mxu0
          %v1641 = vadd.f32 %v1528, %v1640
          %1642 = vmatprep.mubr.bf16.mxu0 %v462
          %1643 = vmatmul.mubr.bf16.gmra.mxu0 %v461
          %v1644 = vpop.f32.mrf.mxu0
          %v1645 = vadd.f32 %v1532, %v1644
          %v1646 = vpop.f32.mrf.mxu0
          %v1647 = vadd.f32 %v1534, %v1646
          %v1648 = vpop.f32.mrf.mxu0
          %v1649 = vadd.f32 %v1536, %v1648
          %v1650 = vpop.f32.mrf.mxu0
          %v1651 = vadd.f32 %v1538, %v1650
          %1652 = vmatprep.mubr.bf16.mxu0 %v466
          %1653 = vmatmul.mubr.bf16.gmra.mxu0 %v465
          %v1654 = vpop.f32.mrf.mxu0
          %v1655 = vadd.f32 %v1542, %v1654
          %v1656 = vpop.f32.mrf.mxu0
          %v1657 = vadd.f32 %v1544, %v1656
          %v1658 = vpop.f32.mrf.mxu0
          %v1659 = vadd.f32 %v1546, %v1658
          %v1660 = vpop.f32.mrf.mxu0
          %v1661 = vadd.f32 %v1548, %v1660
          %1662 = vmatprep.mubr.bf16.mxu0 %v470
          %1663 = vmatmul.mubr.bf16.gmra.mxu0 %v469
          %v1664 = vpop.f32.mrf.mxu0
          %v1665 = vadd.f32 %v1552, %v1664
          %v1666 = vpop.f32.mrf.mxu0
          %v1667 = vadd.f32 %v1554, %v1666
          %v1668 = vpop.f32.mrf.mxu0
          %v1669 = vadd.f32 %v1556, %v1668
          %v1670 = vpop.f32.mrf.mxu0
          %v1671 = vadd.f32 %v1558, %v1670
          %1672 = vmatprep.mubr.bf16.mxu0 %v474
          %1673 = vmatmul.mubr.bf16.gmra.mxu0 %v473
          %v1674 = vpop.f32.mrf.mxu0
          %v1675 = vadd.f32 %v1562, %v1674
          %v1676 = vpop.f32.mrf.mxu0
          %v1677 = vadd.f32 %v1564, %v1676
          %v1678 = vpop.f32.mrf.mxu0
          %v1679 = vadd.f32 %v1566, %v1678
          %v1680 = vpop.f32.mrf.mxu0
          %v1681 = vadd.f32 %v1568, %v1680
          %1682 = vmatprep.mubr.bf16.mxu0 %v478
          %1683 = vmatmul.mubr.bf16.gmra.mxu0 %v477
          %v1684 = vpop.f32.mrf.mxu0
          %v1685 = vadd.f32 %v1572, %v1684
          %v1686 = vpop.f32.mrf.mxu0
          %v1687 = vadd.f32 %v1574, %v1686
          %v1688 = vpop.f32.mrf.mxu0
          %v1689 = vadd.f32 %v1576, %v1688
          %v1690 = vpop.f32.mrf.mxu0
          %v1691 = vadd.f32 %v1578, %v1690
          %1692 = vmatprep.mubr.bf16.mxu0 %v482
          %1693 = vmatmul.mubr.bf16.gmra.mxu0 %v481
          %v1694 = vpop.f32.mrf.mxu0
          %v1695 = vadd.f32 %v1582, %v1694
          %v1696 = vpop.f32.mrf.mxu0
          %v1697 = vadd.f32 %v1584, %v1696
          %v1698 = vpop.f32.mrf.mxu0
          %v1699 = vadd.f32 %v1586, %v1698
          %v1700 = vpop.f32.mrf.mxu0
          %v1701 = vadd.f32 %v1588, %v1700
          %1702 = vdwg.mxu0
          %s1703 = sshra.s32 %s368, 3
          %s1704 = sand.u32 %s368, 7
          %s1705 = smul.u32 %s1703, 4
          %s1706 = smul.addr %s1705, 8
          %s1707 = scalar_lea.vmem [#allocation2], %s1706
          %1708 = vst [vmem:[%s1707] sm:$0xff] %v1399
          %1709 = vst [vmem:[%s1707 + $0x8] sm:$0xff] %v1401
          %1710 = vst [vmem:[%s1707 + $0x10] sm:$0xff] %v1625
          %1711 = vst [vmem:[%s1707 + $0x18] sm:$0xff] %v1627
          %1712 = vst [vmem:[%s1707 + $0x20] sm:$0xff] %v1403
          %1713 = vst [vmem:[%s1707 + $0x28] sm:$0xff] %v1405
          %1714 = vst [vmem:[%s1707 + $0x30] sm:$0xff] %v1629
          %1715 = vst [vmem:[%s1707 + $0x38] sm:$0xff] %v1631
          %1716 = vst [vmem:[%s1707 + $0x40] sm:$0xff] %v1409
          %1717 = vst [vmem:[%s1707 + $0x48] sm:$0xff] %v1411
          %1718 = vst [vmem:[%s1707 + $0x50] sm:$0xff] %v1635
          %1719 = vst [vmem:[%s1707 + $0x58] sm:$0xff] %v1637
          %1720 = vst [vmem:[%s1707 + $0x60] sm:$0xff] %v1413
          %1721 = vst [vmem:[%s1707 + $0x68] sm:$0xff] %v1415
          %1722 = vst [vmem:[%s1707 + $0x70] sm:$0xff] %v1639
          %1723 = vst [vmem:[%s1707 + $0x78] sm:$0xff] %v1641
          %1724 = vst [vmem:[%s1707 + $0x80] sm:$0xff] %v1419
          %1725 = vst [vmem:[%s1707 + $0x88] sm:$0xff] %v1421
          %1726 = vst [vmem:[%s1707 + $0x90] sm:$0xff] %v1645
          %1727 = vst [vmem:[%s1707 + $0x98] sm:$0xff] %v1647
          %1728 = vst [vmem:[%s1707 + $0xa0] sm:$0xff] %v1423
          %1729 = vst [vmem:[%s1707 + $0xa8] sm:$0xff] %v1425
          %1730 = vst [vmem:[%s1707 + $0xb0] sm:$0xff] %v1649
          %1731 = vst [vmem:[%s1707 + $0xb8] sm:$0xff] %v1651
          %1732 = vst [vmem:[%s1707 + $0xc0] sm:$0xff] %v1429
          %1733 = vst [vmem:[%s1707 + $0xc8] sm:$0xff] %v1431
          %1734 = vst [vmem:[%s1707 + $0xd0] sm:$0xff] %v1655
          %1735 = vst [vmem:[%s1707 + $0xd8] sm:$0xff] %v1657
          %1736 = vst [vmem:[%s1707 + $0xe0] sm:$0xff] %v1433
          %1737 = vst [vmem:[%s1707 + $0xe8] sm:$0xff] %v1435
          %1738 = vst [vmem:[%s1707 + $0xf0] sm:$0xff] %v1659
          %1739 = vst [vmem:[%s1707 + $0xf8] sm:$0xff] %v1661
          %1740 = vst [vmem:[%s1707 + $0x100] sm:$0xff] %v1439
          %1741 = vst [vmem:[%s1707 + $0x108] sm:$0xff] %v1441
          %1742 = vst [vmem:[%s1707 + $0x110] sm:$0xff] %v1665
          %1743 = vst [vmem:[%s1707 + $0x118] sm:$0xff] %v1667
          %1744 = vst [vmem:[%s1707 + $0x120] sm:$0xff] %v1443
          %1745 = vst [vmem:[%s1707 + $0x128] sm:$0xff] %v1445
          %1746 = vst [vmem:[%s1707 + $0x130] sm:$0xff] %v1669
          %1747 = vst [vmem:[%s1707 + $0x138] sm:$0xff] %v1671
          %1748 = vst [vmem:[%s1707 + $0x140] sm:$0xff] %v1449
          %1749 = vst [vmem:[%s1707 + $0x148] sm:$0xff] %v1451
          %1750 = vst [vmem:[%s1707 + $0x150] sm:$0xff] %v1675
          %1751 = vst [vmem:[%s1707 + $0x158] sm:$0xff] %v1677
          %1752 = vst [vmem:[%s1707 + $0x160] sm:$0xff] %v1453
          %1753 = vst [vmem:[%s1707 + $0x168] sm:$0xff] %v1455
          %1754 = vst [vmem:[%s1707 + $0x170] sm:$0xff] %v1679
          %1755 = vst [vmem:[%s1707 + $0x178] sm:$0xff] %v1681
          %1756 = vst [vmem:[%s1707 + $0x180] sm:$0xff] %v1459
          %1757 = vst [vmem:[%s1707 + $0x188] sm:$0xff] %v1461
          %1758 = vst [vmem:[%s1707 + $0x190] sm:$0xff] %v1685
          %1759 = vst [vmem:[%s1707 + $0x198] sm:$0xff] %v1687
          %1760 = vst [vmem:[%s1707 + $0x1a0] sm:$0xff] %v1463
          %1761 = vst [vmem:[%s1707 + $0x1a8] sm:$0xff] %v1465
          %1762 = vst [vmem:[%s1707 + $0x1b0] sm:$0xff] %v1689
          %1763 = vst [vmem:[%s1707 + $0x1b8] sm:$0xff] %v1691
          %1764 = vst [vmem:[%s1707 + $0x1c0] sm:$0xff] %v1469
          %1765 = vst [vmem:[%s1707 + $0x1c8] sm:$0xff] %v1471
          %1766 = vst [vmem:[%s1707 + $0x1d0] sm:$0xff] %v1695
          %1767 = vst [vmem:[%s1707 + $0x1d8] sm:$0xff] %v1697
          %1768 = vst [vmem:[%s1707 + $0x1e0] sm:$0xff] %v1473
          %1769 = vst [vmem:[%s1707 + $0x1e8] sm:$0xff] %v1475
          %1770 = vst [vmem:[%s1707 + $0x1f0] sm:$0xff] %v1699
          %1771 = vst [vmem:[%s1707 + $0x1f8] sm:$0xff] %v1701
          %v1772 = vld [vmem:[#allocation4] sm:$0xf]
          %v1773 = vadd.f32 %v1399, %v1403
          %v1774 = vadd.f32 %v1773, %v1409
          %v1775 = vadd.f32 %v1774, %v1413
          %v1776 = vadd.f32 %v1775, %v1419
          %v1777 = vadd.f32 %v1776, %v1423
          %v1778 = vadd.f32 %v1777, %v1429
          %v1779 = vadd.f32 %v1778, %v1433
          %v1780 = vadd.f32 %v1779, %v1439
          %v1781 = vadd.f32 %v1780, %v1443
          %v1782 = vadd.f32 %v1781, %v1449
          %v1783 = vadd.f32 %v1782, %v1453
          %v1784 = vadd.f32 %v1783, %v1459
          %v1785 = vadd.f32 %v1784, %v1463
          %v1786 = vadd.f32 %v1785, %v1469
          %v1787 = vadd.f32 %v1786, %v1473
          %v1788 = vrot.slane %v1787, 4
          %v1789 = vadd.f32 %v1787, %v1788
          %v1790 = vrot.slane %v1789, 2
          %v1791 = vadd.f32 %v1789, %v1790
          %v1792 = vrot.slane %v1791, 1
          %v1793 = vadd.f32 %v1791, %v1792
          %v1794 = vadd.f32 %v1401, %v1405
          %v1795 = vadd.f32 %v1794, %v1411
          %v1796 = vadd.f32 %v1795, %v1415
          %v1797 = vadd.f32 %v1796, %v1421
          %v1798 = vadd.f32 %v1797, %v1425
          %v1799 = vadd.f32 %v1798, %v1431
          %v1800 = vadd.f32 %v1799, %v1435
          %v1801 = vadd.f32 %v1800, %v1441
          %v1802 = vadd.f32 %v1801, %v1445
          %v1803 = vadd.f32 %v1802, %v1451
          %v1804 = vadd.f32 %v1803, %v1455
          %v1805 = vadd.f32 %v1804, %v1461
          %v1806 = vadd.f32 %v1805, %v1465
          %v1807 = vadd.f32 %v1806, %v1471
          %v1808 = vadd.f32 %v1807, %v1475
          %v1809 = vrot.slane %v1808, 4
          %v1810 = vadd.f32 %v1808, %v1809
          %v1811 = vrot.slane %v1810, 2
          %v1812 = vadd.f32 %v1810, %v1811
          %v1813 = vrot.slane %v1812, 1
          %v1814 = vadd.f32 %v1812, %v1813
          %v1815 = vadd.f32 %v1625, %v1629
          %v1816 = vadd.f32 %v1815, %v1635
          %v1817 = vadd.f32 %v1816, %v1639
          %v1818 = vadd.f32 %v1817, %v1645
          %v1819 = vadd.f32 %v1818, %v1649
          %v1820 = vadd.f32 %v1819, %v1655
          %v1821 = vadd.f32 %v1820, %v1659
          %v1822 = vadd.f32 %v1821, %v1665
          %v1823 = vadd.f32 %v1822, %v1669
          %v1824 = vadd.f32 %v1823, %v1675
          %v1825 = vadd.f32 %v1824, %v1679
          %v1826 = vadd.f32 %v1825, %v1685
          %v1827 = vadd.f32 %v1826, %v1689
          %v1828 = vadd.f32 %v1827, %v1695
          %v1829 = vadd.f32 %v1828, %v1699
          %v1830 = vrot.slane %v1829, 4
          %v1831 = vadd.f32 %v1829, %v1830
          %v1832 = vrot.slane %v1831, 2
          %v1833 = vadd.f32 %v1831, %v1832
          %v1834 = vrot.slane %v1833, 1
          %v1835 = vadd.f32 %v1833, %v1834
          %v1836 = vadd.f32 %v1627, %v1631
          %v1837 = vadd.f32 %v1836, %v1637
          %v1838 = vadd.f32 %v1837, %v1641
          %v1839 = vadd.f32 %v1838, %v1647
          %v1840 = vadd.f32 %v1839, %v1651
          %v1841 = vadd.f32 %v1840, %v1657
          %v1842 = vadd.f32 %v1841, %v1661
          %v1843 = vadd.f32 %v1842, %v1667
          %v1844 = vadd.f32 %v1843, %v1671
          %v1845 = vadd.f32 %v1844, %v1677
          %v1846 = vadd.f32 %v1845, %v1681
          %v1847 = vadd.f32 %v1846, %v1687
          %v1848 = vadd.f32 %v1847, %v1691
          %v1849 = vadd.f32 %v1848, %v1697
          %v1850 = vadd.f32 %v1849, %v1701
          %v1851 = vrot.slane %v1850, 4
          %v1852 = vadd.f32 %v1850, %v1851
          %v1853 = vrot.slane %v1852, 2
          %v1854 = vadd.f32 %v1852, %v1853
          %v1855 = vrot.slane %v1854, 1
          %v1856 = vadd.f32 %v1854, %v1855
          %v1861 = vcombine.low %v1793, %v1814
          %v1862 = vcombine.low %v1835, %v1856
          %v1864 = vunpack.c.l.s4 1966171168
          %v1865 = vunpack.c.0.s8 %v1864
          %v1866 = vlaneseq
          %v1867 = vshrl.u32 %v1866, 7
          %v1868 = vsub.s32 %v1865, %v1867
          %v1869 = vrot.slane %v1861, %v1868
          %v1871 = vunpack.c.l.s4 1966171168
          %v1872 = vunpack.c.0.s8 %v1871
          %v1873 = vlaneseq
          %v1874 = vshrl.u32 %v1873, 7
          %v1875 = vsub.s32 %v1872, %v1874
          %v1876 = vrot.slane %v1862, %v1875
          %v1877 = vcombine.low %v1869, %v1876
          %v1879 = vunpack.c.l.s4 1966171168
          %v1880 = vunpack.c.0.s8 %v1879
          %v1881 = vlaneseq
          %v1882 = vshrl.u32 %v1881, 7
          %v1883 = vsub.s32 %v1880, %v1882
          %v1884 = vrot.slane %v1877, %v1883
          %v1886 = vadd.f32 %v1772, %v1884
          %v1887 = vlaneseq
          %vm1888 = vcmp.ge.s32.totalorder %v1887, 0
          %vm1889 = vcmp.lt.s32.totalorder %v1887, 512
          %vm1890 = vmand %vm1888, %vm1889
          %1891 = vst.msk [vmem:[#allocation4] sm:$0xf] %vm1890, %v1886
          %v1892 = vld [vmem:[#allocation5] sm:$0xf]
          %v1893 = vmul.f32 %v1399, %v1399
          %v1894 = vmul.f32 %v1401, %v1401
          %v1895 = vmul.f32 %v1625, %v1625
          %v1896 = vmul.f32 %v1627, %v1627
          %v1897 = vmul.f32 %v1403, %v1403
          %v1898 = vmul.f32 %v1405, %v1405
          %v1899 = vmul.f32 %v1629, %v1629
          %v1900 = vmul.f32 %v1631, %v1631
          %v1901 = vmul.f32 %v1409, %v1409
          %v1902 = vmul.f32 %v1411, %v1411
          %v1903 = vmul.f32 %v1635, %v1635
          %v1904 = vmul.f32 %v1637, %v1637
          %v1905 = vmul.f32 %v1413, %v1413
          %v1906 = vmul.f32 %v1415, %v1415
          %v1907 = vmul.f32 %v1639, %v1639
          %v1908 = vmul.f32 %v1641, %v1641
          %v1909 = vmul.f32 %v1419, %v1419
          %v1910 = vmul.f32 %v1421, %v1421
          %v1911 = vmul.f32 %v1645, %v1645
          %v1912 = vmul.f32 %v1647, %v1647
          %v1913 = vmul.f32 %v1423, %v1423
          %v1914 = vmul.f32 %v1425, %v1425
          %v1915 = vmul.f32 %v1649, %v1649
          %v1916 = vmul.f32 %v1651, %v1651
          %v1917 = vmul.f32 %v1429, %v1429
          %v1918 = vmul.f32 %v1431, %v1431
          %v1919 = vmul.f32 %v1655, %v1655
          %v1920 = vmul.f32 %v1657, %v1657
          %v1921 = vmul.f32 %v1433, %v1433
          %v1922 = vmul.f32 %v1435, %v1435
          %v1923 = vmul.f32 %v1659, %v1659
          %v1924 = vmul.f32 %v1661, %v1661
          %v1925 = vmul.f32 %v1439, %v1439
          %v1926 = vmul.f32 %v1441, %v1441
          %v1927 = vmul.f32 %v1665, %v1665
          %v1928 = vmul.f32 %v1667, %v1667
          %v1929 = vmul.f32 %v1443, %v1443
          %v1930 = vmul.f32 %v1445, %v1445
          %v1931 = vmul.f32 %v1669, %v1669
          %v1932 = vmul.f32 %v1671, %v1671
          %v1933 = vmul.f32 %v1449, %v1449
          %v1934 = vmul.f32 %v1451, %v1451
          %v1935 = vmul.f32 %v1675, %v1675
          %v1936 = vmul.f32 %v1677, %v1677
          %v1937 = vmul.f32 %v1453, %v1453
          %v1938 = vmul.f32 %v1455, %v1455
          %v1939 = vmul.f32 %v1679, %v1679
          %v1940 = vmul.f32 %v1681, %v1681
          %v1941 = vmul.f32 %v1459, %v1459
          %v1942 = vmul.f32 %v1461, %v1461
          %v1943 = vmul.f32 %v1685, %v1685
          %v1944 = vmul.f32 %v1687, %v1687
          %v1945 = vmul.f32 %v1463, %v1463
          %v1946 = vmul.f32 %v1465, %v1465
          %v1947 = vmul.f32 %v1689, %v1689
          %v1948 = vmul.f32 %v1691, %v1691
          %v1949 = vmul.f32 %v1469, %v1469
          %v1950 = vmul.f32 %v1471, %v1471
          %v1951 = vmul.f32 %v1695, %v1695
          %v1952 = vmul.f32 %v1697, %v1697
          %v1953 = vmul.f32 %v1473, %v1473
          %v1954 = vmul.f32 %v1475, %v1475
          %v1955 = vmul.f32 %v1699, %v1699
          %v1956 = vmul.f32 %v1701, %v1701
          %v1957 = vadd.f32 %v1893, %v1897
          %v1958 = vadd.f32 %v1957, %v1901
          %v1959 = vadd.f32 %v1958, %v1905
          %v1960 = vadd.f32 %v1959, %v1909
          %v1961 = vadd.f32 %v1960, %v1913
          %v1962 = vadd.f32 %v1961, %v1917
          %v1963 = vadd.f32 %v1962, %v1921
          %v1964 = vadd.f32 %v1963, %v1925
          %v1965 = vadd.f32 %v1964, %v1929
          %v1966 = vadd.f32 %v1965, %v1933
          %v1967 = vadd.f32 %v1966, %v1937
          %v1968 = vadd.f32 %v1967, %v1941
          %v1969 = vadd.f32 %v1968, %v1945
          %v1970 = vadd.f32 %v1969, %v1949
          %v1971 = vadd.f32 %v1970, %v1953
          %v1972 = vrot.slane %v1971, 4
          %v1973 = vadd.f32 %v1971, %v1972
          %v1974 = vrot.slane %v1973, 2
          %v1975 = vadd.f32 %v1973, %v1974
          %v1976 = vrot.slane %v1975, 1
          %v1977 = vadd.f32 %v1975, %v1976
          %v1978 = vadd.f32 %v1894, %v1898
          %v1979 = vadd.f32 %v1978, %v1902
          %v1980 = vadd.f32 %v1979, %v1906
          %v1981 = vadd.f32 %v1980, %v1910
          %v1982 = vadd.f32 %v1981, %v1914
          %v1983 = vadd.f32 %v1982, %v1918
          %v1984 = vadd.f32 %v1983, %v1922
          %v1985 = vadd.f32 %v1984, %v1926
          %v1986 = vadd.f32 %v1985, %v1930
          %v1987 = vadd.f32 %v1986, %v1934
          %v1988 = vadd.f32 %v1987, %v1938
          %v1989 = vadd.f32 %v1988, %v1942
          %v1990 = vadd.f32 %v1989, %v1946
          %v1991 = vadd.f32 %v1990, %v1950
          %v1992 = vadd.f32 %v1991, %v1954
          %v1993 = vrot.slane %v1992, 4
          %v1994 = vadd.f32 %v1992, %v1993
          %v1995 = vrot.slane %v1994, 2
          %v1996 = vadd.f32 %v1994, %v1995
          %v1997 = vrot.slane %v1996, 1
          %v1998 = vadd.f32 %v1996, %v1997
          %v1999 = vadd.f32 %v1895, %v1899
          %v2000 = vadd.f32 %v1999, %v1903
          %v2001 = vadd.f32 %v2000, %v1907
          %v2002 = vadd.f32 %v2001, %v1911
          %v2003 = vadd.f32 %v2002, %v1915
          %v2004 = vadd.f32 %v2003, %v1919
          %v2005 = vadd.f32 %v2004, %v1923
          %v2006 = vadd.f32 %v2005, %v1927
          %v2007 = vadd.f32 %v2006, %v1931
          %v2008 = vadd.f32 %v2007, %v1935
          %v2009 = vadd.f32 %v2008, %v1939
          %v2010 = vadd.f32 %v2009, %v1943
          %v2011 = vadd.f32 %v2010, %v1947
          %v2012 = vadd.f32 %v2011, %v1951
          %v2013 = vadd.f32 %v2012, %v1955
          %v2014 = vrot.slane %v2013, 4
          %v2015 = vadd.f32 %v2013, %v2014
          %v2016 = vrot.slane %v2015, 2
          %v2017 = vadd.f32 %v2015, %v2016
          %v2018 = vrot.slane %v2017, 1
          %v2019 = vadd.f32 %v2017, %v2018
          %v2020 = vadd.f32 %v1896, %v1900
          %v2021 = vadd.f32 %v2020, %v1904
          %v2022 = vadd.f32 %v2021, %v1908
          %v2023 = vadd.f32 %v2022, %v1912
          %v2024 = vadd.f32 %v2023, %v1916
          %v2025 = vadd.f32 %v2024, %v1920
          %v2026 = vadd.f32 %v2025, %v1924
          %v2027 = vadd.f32 %v2026, %v1928
          %v2028 = vadd.f32 %v2027, %v1932
          %v2029 = vadd.f32 %v2028, %v1936
          %v2030 = vadd.f32 %v2029, %v1940
          %v2031 = vadd.f32 %v2030, %v1944
          %v2032 = vadd.f32 %v2031, %v1948
          %v2033 = vadd.f32 %v2032, %v1952
          %v2034 = vadd.f32 %v2033, %v1956
          %v2035 = vrot.slane %v2034, 4
          %v2036 = vadd.f32 %v2034, %v2035
          %v2037 = vrot.slane %v2036, 2
          %v2038 = vadd.f32 %v2036, %v2037
          %v2039 = vrot.slane %v2038, 1
          %v2040 = vadd.f32 %v2038, %v2039
          %v2045 = vcombine.low %v1977, %v1998
          %v2046 = vcombine.low %v2019, %v2040
          %v2048 = vunpack.c.l.s4 1966171168
          %v2049 = vunpack.c.0.s8 %v2048
          %v2050 = vlaneseq
          %v2051 = vshrl.u32 %v2050, 7
          %v2052 = vsub.s32 %v2049, %v2051
          %v2053 = vrot.slane %v2045, %v2052
          %v2055 = vunpack.c.l.s4 1966171168
          %v2056 = vunpack.c.0.s8 %v2055
          %v2057 = vlaneseq
          %v2058 = vshrl.u32 %v2057, 7
          %v2059 = vsub.s32 %v2056, %v2058
          %v2060 = vrot.slane %v2046, %v2059
          %v2061 = vcombine.low %v2053, %v2060
          %v2063 = vunpack.c.l.s4 1966171168
          %v2064 = vunpack.c.0.s8 %v2063
          %v2065 = vlaneseq
          %v2066 = vshrl.u32 %v2065, 7
          %v2067 = vsub.s32 %v2064, %v2066
          %v2068 = vrot.slane %v2061, %v2067
          %v2070 = vadd.f32 %v1892, %v2068
          %2071 = vst.msk [vmem:[#allocation5] sm:$0xf] %vm1890, %v2070
        $region68: #{tpu_custom_call.1} parent=47 // pred_fallthru
          _
        %p2072 = scmp.eq.s32.totalorder %s30, 1
        // Predicated region
        $region73: #{tpu_custom_call.1} parent=47 // pred_check
          %p2073 = pneg %p2072
        $region74: #{tpu_custom_call.1} parent=47 // pred_check_branch
          %2075 = sbr.rel (%p2073) target = $region76
        $region75: #{tpu_custom_call.1} parent=47 // pred_region
          %s2076 = sshra.s32 %s368, 3
          %s2077 = sand.u32 %s368, 7
          %s2078 = smul.u32 %s2076, 4
          %s2079 = smul.addr %s2078, 8
          %s2080 = scalar_lea.vmem [#allocation2], %s2079
          %v2081 = vld [vmem:[%s2080] sm:$0xff]
          %v2082 = vld [vmem:[%s2080 + $0x8] sm:$0xff]
          %v2083 = vld [vmem:[%s2080 + $0x10] sm:$0xff]
          %v2084 = vld [vmem:[%s2080 + $0x18] sm:$0xff]
          %v2085 = vld [vmem:[%s2080 + $0x20] sm:$0xff]
          %v2086 = vld [vmem:[%s2080 + $0x28] sm:$0xff]
          %v2087 = vld [vmem:[%s2080 + $0x30] sm:$0xff]
          %v2088 = vld [vmem:[%s2080 + $0x38] sm:$0xff]
          %v2089 = vld [vmem:[%s2080 + $0x40] sm:$0xff]
          %v2090 = vld [vmem:[%s2080 + $0x48] sm:$0xff]
          %v2091 = vld [vmem:[%s2080 + $0x50] sm:$0xff]
          %v2092 = vld [vmem:[%s2080 + $0x58] sm:$0xff]
          %v2093 = vld [vmem:[%s2080 + $0x60] sm:$0xff]
          %v2094 = vld [vmem:[%s2080 + $0x68] sm:$0xff]
          %v2095 = vld [vmem:[%s2080 + $0x70] sm:$0xff]
          %v2096 = vld [vmem:[%s2080 + $0x78] sm:$0xff]
          %v2097 = vld [vmem:[%s2080 + $0x80] sm:$0xff]
          %v2098 = vld [vmem:[%s2080 + $0x88] sm:$0xff]
          %v2099 = vld [vmem:[%s2080 + $0x90] sm:$0xff]
          %v2100 = vld [vmem:[%s2080 + $0x98] sm:$0xff]
          %v2101 = vld [vmem:[%s2080 + $0xa0] sm:$0xff]
          %v2102 = vld [vmem:[%s2080 + $0xa8] sm:$0xff]
          %v2103 = vld [vmem:[%s2080 + $0xb0] sm:$0xff]
          %v2104 = vld [vmem:[%s2080 + $0xb8] sm:$0xff]
          %v2105 = vld [vmem:[%s2080 + $0xc0] sm:$0xff]
          %v2106 = vld [vmem:[%s2080 + $0xc8] sm:$0xff]
          %v2107 = vld [vmem:[%s2080 + $0xd0] sm:$0xff]
          %v2108 = vld [vmem:[%s2080 + $0xd8] sm:$0xff]
          %v2109 = vld [vmem:[%s2080 + $0xe0] sm:$0xff]
          %v2110 = vld [vmem:[%s2080 + $0xe8] sm:$0xff]
          %v2111 = vld [vmem:[%s2080 + $0xf0] sm:$0xff]
          %v2112 = vld [vmem:[%s2080 + $0xf8] sm:$0xff]
          %v2113 = vld [vmem:[%s2080 + $0x100] sm:$0xff]
          %v2114 = vld [vmem:[%s2080 + $0x108] sm:$0xff]
          %v2115 = vld [vmem:[%s2080 + $0x110] sm:$0xff]
          %v2116 = vld [vmem:[%s2080 + $0x118] sm:$0xff]
          %v2117 = vld [vmem:[%s2080 + $0x120] sm:$0xff]
          %v2118 = vld [vmem:[%s2080 + $0x128] sm:$0xff]
          %v2119 = vld [vmem:[%s2080 + $0x130] sm:$0xff]
          %v2120 = vld [vmem:[%s2080 + $0x138] sm:$0xff]
          %v2121 = vld [vmem:[%s2080 + $0x140] sm:$0xff]
          %v2122 = vld [vmem:[%s2080 + $0x148] sm:$0xff]
          %v2123 = vld [vmem:[%s2080 + $0x150] sm:$0xff]
          %v2124 = vld [vmem:[%s2080 + $0x158] sm:$0xff]
          %v2125 = vld [vmem:[%s2080 + $0x160] sm:$0xff]
          %v2126 = vld [vmem:[%s2080 + $0x168] sm:$0xff]
          %v2127 = vld [vmem:[%s2080 + $0x170] sm:$0xff]
          %v2128 = vld [vmem:[%s2080 + $0x178] sm:$0xff]
          %v2129 = vld [vmem:[%s2080 + $0x180] sm:$0xff]
          %v2130 = vld [vmem:[%s2080 + $0x188] sm:$0xff]
          %v2131 = vld [vmem:[%s2080 + $0x190] sm:$0xff]
          %v2132 = vld [vmem:[%s2080 + $0x198] sm:$0xff]
          %v2133 = vld [vmem:[%s2080 + $0x1a0] sm:$0xff]
          %v2134 = vld [vmem:[%s2080 + $0x1a8] sm:$0xff]
          %v2135 = vld [vmem:[%s2080 + $0x1b0] sm:$0xff]
          %v2136 = vld [vmem:[%s2080 + $0x1b8] sm:$0xff]
          %v2137 = vld [vmem:[%s2080 + $0x1c0] sm:$0xff]
          %v2138 = vld [vmem:[%s2080 + $0x1c8] sm:$0xff]
          %v2139 = vld [vmem:[%s2080 + $0x1d0] sm:$0xff]
          %v2140 = vld [vmem:[%s2080 + $0x1d8] sm:$0xff]
          %v2141 = vld [vmem:[%s2080 + $0x1e0] sm:$0xff]
          %v2142 = vld [vmem:[%s2080 + $0x1e8] sm:$0xff]
          %v2143 = vld [vmem:[%s2080 + $0x1f0] sm:$0xff]
          %v2144 = vld [vmem:[%s2080 + $0x1f8] sm:$0xff]
          %v2145 = vld [vmem:[#allocation4] sm:$0xf]
          %v2146 = vmul.f32 %v2145, 0.00390625
          %v2147 = vld [vmem:[#allocation5] sm:$0xf]
          %v2148 = vmul.f32 %v2147, 0.00390625
          %v2149 = vmul.f32 %v2146, %v2146
          %v2150 = vsub.f32 %v2148, %v2149
          %v2151 = vmax.f32 %v2150, 0.0
          %v2152 = vld [vmem:[#allocation13] sm:$0xf]
          %v2153 = vadd.f32 %v2151, 1e-05
          %v2154 = vrsqrt.pop %v2153
          %v2155 = vmul.f32 %v2152, %v2154
          %v2156 = vld [vmem:[%s3] sm:$0xf]
          %v2157 = vmul.f32 %v2146, %v2155
          %v2158 = vsub.f32 %v2156, %v2157
          %v2160 = vlaneseq
          %v2161 = vshrl.u32 %v2160, 7
          %v2162 = vsub.s32 0, %v2161
          %v2163 = vrot.slane %v2155, %v2162
          %v2164 = vlaneseq
          %v2165 = vshrl.u32 %v2164, 7
          %v2166 = vsub.s32 1, %v2165
          %v2167 = vrot.slane %v2155, %v2166
          %v2168 = vlaneseq
          %v2169 = vshrl.u32 %v2168, 7
          %v2170 = vsub.s32 2, %v2169
          %v2171 = vrot.slane %v2155, %v2170
          %v2172 = vlaneseq
          %v2173 = vshrl.u32 %v2172, 7
          %v2174 = vsub.s32 3, %v2173
          %v2175 = vrot.slane %v2155, %v2174
          %v2180 = vmul.f32 %v2081, %v2163
          %v2181 = vmul.f32 %v2082, %v2167
          %v2182 = vmul.f32 %v2083, %v2171
          %v2183 = vmul.f32 %v2084, %v2175
          %v2184 = vmul.f32 %v2085, %v2163
          %v2185 = vmul.f32 %v2086, %v2167
          %v2186 = vmul.f32 %v2087, %v2171
          %v2187 = vmul.f32 %v2088, %v2175
          %v2188 = vmul.f32 %v2089, %v2163
          %v2189 = vmul.f32 %v2090, %v2167
          %v2190 = vmul.f32 %v2091, %v2171
          %v2191 = vmul.f32 %v2092, %v2175
          %v2192 = vmul.f32 %v2093, %v2163
          %v2193 = vmul.f32 %v2094, %v2167
          %v2194 = vmul.f32 %v2095, %v2171
          %v2195 = vmul.f32 %v2096, %v2175
          %v2196 = vmul.f32 %v2097, %v2163
          %v2197 = vmul.f32 %v2098, %v2167
          %v2198 = vmul.f32 %v2099, %v2171
          %v2199 = vmul.f32 %v2100, %v2175
          %v2200 = vmul.f32 %v2101, %v2163
          %v2201 = vmul.f32 %v2102, %v2167
          %v2202 = vmul.f32 %v2103, %v2171
          %v2203 = vmul.f32 %v2104, %v2175
          %v2204 = vmul.f32 %v2105, %v2163
          %v2205 = vmul.f32 %v2106, %v2167
          %v2206 = vmul.f32 %v2107, %v2171
          %v2207 = vmul.f32 %v2108, %v2175
          %v2208 = vmul.f32 %v2109, %v2163
          %v2209 = vmul.f32 %v2110, %v2167
          %v2210 = vmul.f32 %v2111, %v2171
          %v2211 = vmul.f32 %v2112, %v2175
          %v2212 = vmul.f32 %v2113, %v2163
          %v2213 = vmul.f32 %v2114, %v2167
          %v2214 = vmul.f32 %v2115, %v2171
          %v2215 = vmul.f32 %v2116, %v2175
          %v2216 = vmul.f32 %v2117, %v2163
          %v2217 = vmul.f32 %v2118, %v2167
          %v2218 = vmul.f32 %v2119, %v2171
          %v2219 = vmul.f32 %v2120, %v2175
          %v2220 = vmul.f32 %v2121, %v2163
          %v2221 = vmul.f32 %v2122, %v2167
          %v2222 = vmul.f32 %v2123, %v2171
          %v2223 = vmul.f32 %v2124, %v2175
          %v2224 = vmul.f32 %v2125, %v2163
          %v2225 = vmul.f32 %v2126, %v2167
          %v2226 = vmul.f32 %v2127, %v2171
          %v2227 = vmul.f32 %v2128, %v2175
          %v2228 = vmul.f32 %v2129, %v2163
          %v2229 = vmul.f32 %v2130, %v2167
          %v2230 = vmul.f32 %v2131, %v2171
          %v2231 = vmul.f32 %v2132, %v2175
          %v2232 = vmul.f32 %v2133, %v2163
          %v2233 = vmul.f32 %v2134, %v2167
          %v2234 = vmul.f32 %v2135, %v2171
          %v2235 = vmul.f32 %v2136, %v2175
          %v2236 = vmul.f32 %v2137, %v2163
          %v2237 = vmul.f32 %v2138, %v2167
          %v2238 = vmul.f32 %v2139, %v2171
          %v2239 = vmul.f32 %v2140, %v2175
          %v2240 = vmul.f32 %v2141, %v2163
          %v2241 = vmul.f32 %v2142, %v2167
          %v2242 = vmul.f32 %v2143, %v2171
          %v2243 = vmul.f32 %v2144, %v2175
          %v2245 = vlaneseq
          %v2246 = vshrl.u32 %v2245, 7
          %v2247 = vsub.s32 0, %v2246
          %v2248 = vrot.slane %v2158, %v2247
          %v2249 = vlaneseq
          %v2250 = vshrl.u32 %v2249, 7
          %v2251 = vsub.s32 1, %v2250
          %v2252 = vrot.slane %v2158, %v2251
          %v2253 = vlaneseq
          %v2254 = vshrl.u32 %v2253, 7
          %v2255 = vsub.s32 2, %v2254
          %v2256 = vrot.slane %v2158, %v2255
          %v2257 = vlaneseq
          %v2258 = vshrl.u32 %v2257, 7
          %v2259 = vsub.s32 3, %v2258
          %v2260 = vrot.slane %v2158, %v2259
          %v2265 = vadd.f32 %v2180, %v2248
          %v2266 = vadd.f32 %v2181, %v2252
          %v2267 = vadd.f32 %v2182, %v2256
          %v2268 = vadd.f32 %v2183, %v2260
          %v2269 = vadd.f32 %v2184, %v2248
          %v2270 = vadd.f32 %v2185, %v2252
          %v2271 = vadd.f32 %v2186, %v2256
          %v2272 = vadd.f32 %v2187, %v2260
          %v2273 = vadd.f32 %v2188, %v2248
          %v2274 = vadd.f32 %v2189, %v2252
          %v2275 = vadd.f32 %v2190, %v2256
          %v2276 = vadd.f32 %v2191, %v2260
          %v2277 = vadd.f32 %v2192, %v2248
          %v2278 = vadd.f32 %v2193, %v2252
          %v2279 = vadd.f32 %v2194, %v2256
          %v2280 = vadd.f32 %v2195, %v2260
          %v2281 = vadd.f32 %v2196, %v2248
          %v2282 = vadd.f32 %v2197, %v2252
          %v2283 = vadd.f32 %v2198, %v2256
          %v2284 = vadd.f32 %v2199, %v2260
          %v2285 = vadd.f32 %v2200, %v2248
          %v2286 = vadd.f32 %v2201, %v2252
          %v2287 = vadd.f32 %v2202, %v2256
          %v2288 = vadd.f32 %v2203, %v2260
          %v2289 = vadd.f32 %v2204, %v2248
          %v2290 = vadd.f32 %v2205, %v2252
          %v2291 = vadd.f32 %v2206, %v2256
          %v2292 = vadd.f32 %v2207, %v2260
          %v2293 = vadd.f32 %v2208, %v2248
          %v2294 = vadd.f32 %v2209, %v2252
          %v2295 = vadd.f32 %v2210, %v2256
          %v2296 = vadd.f32 %v2211, %v2260
          %v2297 = vadd.f32 %v2212, %v2248
          %v2298 = vadd.f32 %v2213, %v2252
          %v2299 = vadd.f32 %v2214, %v2256
          %v2300 = vadd.f32 %v2215, %v2260
          %v2301 = vadd.f32 %v2216, %v2248
          %v2302 = vadd.f32 %v2217, %v2252
          %v2303 = vadd.f32 %v2218, %v2256
          %v2304 = vadd.f32 %v2219, %v2260
          %v2305 = vadd.f32 %v2220, %v2248
          %v2306 = vadd.f32 %v2221, %v2252
          %v2307 = vadd.f32 %v2222, %v2256
          %v2308 = vadd.f32 %v2223, %v2260
          %v2309 = vadd.f32 %v2224, %v2248
          %v2310 = vadd.f32 %v2225, %v2252
          %v2311 = vadd.f32 %v2226, %v2256
          %v2312 = vadd.f32 %v2227, %v2260
          %v2313 = vadd.f32 %v2228, %v2248
          %v2314 = vadd.f32 %v2229, %v2252
          %v2315 = vadd.f32 %v2230, %v2256
          %v2316 = vadd.f32 %v2231, %v2260
          %v2317 = vadd.f32 %v2232, %v2248
          %v2318 = vadd.f32 %v2233, %v2252
          %v2319 = vadd.f32 %v2234, %v2256
          %v2320 = vadd.f32 %v2235, %v2260
          %v2321 = vadd.f32 %v2236, %v2248
          %v2322 = vadd.f32 %v2237, %v2252
          %v2323 = vadd.f32 %v2238, %v2256
          %v2324 = vadd.f32 %v2239, %v2260
          %v2325 = vadd.f32 %v2240, %v2248
          %v2326 = vadd.f32 %v2241, %v2252
          %v2327 = vadd.f32 %v2242, %v2256
          %v2328 = vadd.f32 %v2243, %v2260
          %v2329 = vmax.f32 %v2265, 0.0
          %v2330 = vmax.f32 %v2266, 0.0
          %v2331 = vmax.f32 %v2267, 0.0
          %v2332 = vmax.f32 %v2268, 0.0
          %v2333 = vmax.f32 %v2269, 0.0
          %v2334 = vmax.f32 %v2270, 0.0
          %v2335 = vmax.f32 %v2271, 0.0
          %v2336 = vmax.f32 %v2272, 0.0
          %v2337 = vmax.f32 %v2273, 0.0
          %v2338 = vmax.f32 %v2274, 0.0
          %v2339 = vmax.f32 %v2275, 0.0
          %v2340 = vmax.f32 %v2276, 0.0
          %v2341 = vmax.f32 %v2277, 0.0
          %v2342 = vmax.f32 %v2278, 0.0
          %v2343 = vmax.f32 %v2279, 0.0
          %v2344 = vmax.f32 %v2280, 0.0
          %v2345 = vmax.f32 %v2281, 0.0
          %v2346 = vmax.f32 %v2282, 0.0
          %v2347 = vmax.f32 %v2283, 0.0
          %v2348 = vmax.f32 %v2284, 0.0
          %v2349 = vmax.f32 %v2285, 0.0
          %v2350 = vmax.f32 %v2286, 0.0
          %v2351 = vmax.f32 %v2287, 0.0
          %v2352 = vmax.f32 %v2288, 0.0
          %v2353 = vmax.f32 %v2289, 0.0
          %v2354 = vmax.f32 %v2290, 0.0
          %v2355 = vmax.f32 %v2291, 0.0
          %v2356 = vmax.f32 %v2292, 0.0
          %v2357 = vmax.f32 %v2293, 0.0
          %v2358 = vmax.f32 %v2294, 0.0
          %v2359 = vmax.f32 %v2295, 0.0
          %v2360 = vmax.f32 %v2296, 0.0
          %v2361 = vmax.f32 %v2297, 0.0
          %v2362 = vmax.f32 %v2298, 0.0
          %v2363 = vmax.f32 %v2299, 0.0
          %v2364 = vmax.f32 %v2300, 0.0
          %v2365 = vmax.f32 %v2301, 0.0
          %v2366 = vmax.f32 %v2302, 0.0
          %v2367 = vmax.f32 %v2303, 0.0
          %v2368 = vmax.f32 %v2304, 0.0
          %v2369 = vmax.f32 %v2305, 0.0
          %v2370 = vmax.f32 %v2306, 0.0
          %v2371 = vmax.f32 %v2307, 0.0
          %v2372 = vmax.f32 %v2308, 0.0
          %v2373 = vmax.f32 %v2309, 0.0
          %v2374 = vmax.f32 %v2310, 0.0
          %v2375 = vmax.f32 %v2311, 0.0
          %v2376 = vmax.f32 %v2312, 0.0
          %v2377 = vmax.f32 %v2313, 0.0
          %v2378 = vmax.f32 %v2314, 0.0
          %v2379 = vmax.f32 %v2315, 0.0
          %v2380 = vmax.f32 %v2316, 0.0
          %v2381 = vmax.f32 %v2317, 0.0
          %v2382 = vmax.f32 %v2318, 0.0
          %v2383 = vmax.f32 %v2319, 0.0
          %v2384 = vmax.f32 %v2320, 0.0
          %v2385 = vmax.f32 %v2321, 0.0
          %v2386 = vmax.f32 %v2322, 0.0
          %v2387 = vmax.f32 %v2323, 0.0
          %v2388 = vmax.f32 %v2324, 0.0
          %v2389 = vmax.f32 %v2325, 0.0
          %v2390 = vmax.f32 %v2326, 0.0
          %v2391 = vmax.f32 %v2327, 0.0
          %v2392 = vmax.f32 %v2328, 0.0
          %v2393 = vpack.c.bf16 %v2333, %v2329
          %v2394 = vpack.c.bf16 %v2334, %v2330
          %v2395 = vpack.c.bf16 %v2335, %v2331
          %v2396 = vpack.c.bf16 %v2336, %v2332
          %v2397 = vpack.c.bf16 %v2341, %v2337
          %v2398 = vpack.c.bf16 %v2342, %v2338
          %v2399 = vpack.c.bf16 %v2343, %v2339
          %v2400 = vpack.c.bf16 %v2344, %v2340
          %v2401 = vpack.c.bf16 %v2349, %v2345
          %v2402 = vpack.c.bf16 %v2350, %v2346
          %v2403 = vpack.c.bf16 %v2351, %v2347
          %v2404 = vpack.c.bf16 %v2352, %v2348
          %v2405 = vpack.c.bf16 %v2357, %v2353
          %v2406 = vpack.c.bf16 %v2358, %v2354
          %v2407 = vpack.c.bf16 %v2359, %v2355
          %v2408 = vpack.c.bf16 %v2360, %v2356
          %v2409 = vpack.c.bf16 %v2365, %v2361
          %v2410 = vpack.c.bf16 %v2366, %v2362
          %v2411 = vpack.c.bf16 %v2367, %v2363
          %v2412 = vpack.c.bf16 %v2368, %v2364
          %v2413 = vpack.c.bf16 %v2373, %v2369
          %v2414 = vpack.c.bf16 %v2374, %v2370
          %v2415 = vpack.c.bf16 %v2375, %v2371
          %v2416 = vpack.c.bf16 %v2376, %v2372
          %v2417 = vpack.c.bf16 %v2381, %v2377
          %v2418 = vpack.c.bf16 %v2382, %v2378
          %v2419 = vpack.c.bf16 %v2383, %v2379
          %v2420 = vpack.c.bf16 %v2384, %v2380
          %v2421 = vpack.c.bf16 %v2389, %v2385
          %v2422 = vpack.c.bf16 %v2390, %v2386
          %v2423 = vpack.c.bf16 %v2391, %v2387
          %v2424 = vpack.c.bf16 %v2392, %v2388
          %v2425 = vld [vmem:[#allocation14] sm:$0xff]
          %v2426 = vld [vmem:[#allocation14 + $0x8] sm:$0xff]
          %v2427 = vld [vmem:[#allocation14 + $0x10] sm:$0xff]
          %v2428 = vld [vmem:[#allocation14 + $0x18] sm:$0xff]
          %v2429 = vld [vmem:[#allocation14 + $0x20] sm:$0xff]
          %v2430 = vld [vmem:[#allocation14 + $0x28] sm:$0xff]
          %v2431 = vld [vmem:[#allocation14 + $0x30] sm:$0xff]
          %v2432 = vld [vmem:[#allocation14 + $0x38] sm:$0xff]
          %v2433 = vld [vmem:[#allocation14 + $0x40] sm:$0xff]
          %v2434 = vld [vmem:[#allocation14 + $0x48] sm:$0xff]
          %v2435 = vld [vmem:[#allocation14 + $0x50] sm:$0xff]
          %v2436 = vld [vmem:[#allocation14 + $0x58] sm:$0xff]
          %v2437 = vld [vmem:[#allocation14 + $0x60] sm:$0xff]
          %v2438 = vld [vmem:[#allocation14 + $0x68] sm:$0xff]
          %v2439 = vld [vmem:[#allocation14 + $0x70] sm:$0xff]
          %v2440 = vld [vmem:[#allocation14 + $0x78] sm:$0xff]
          %v2441 = vld [vmem:[#allocation14 + $0x80] sm:$0xff]
          %v2442 = vld [vmem:[#allocation14 + $0x88] sm:$0xff]
          %v2443 = vld [vmem:[#allocation14 + $0x90] sm:$0xff]
          %v2444 = vld [vmem:[#allocation14 + $0x98] sm:$0xff]
          %v2445 = vld [vmem:[#allocation14 + $0xa0] sm:$0xff]
          %v2446 = vld [vmem:[#allocation14 + $0xa8] sm:$0xff]
          %v2447 = vld [vmem:[#allocation14 + $0xb0] sm:$0xff]
          %v2448 = vld [vmem:[#allocation14 + $0xb8] sm:$0xff]
          %v2449 = vld [vmem:[#allocation14 + $0xc0] sm:$0xff]
          %v2450 = vld [vmem:[#allocation14 + $0xc8] sm:$0xff]
          %v2451 = vld [vmem:[#allocation14 + $0xd0] sm:$0xff]
          %v2452 = vld [vmem:[#allocation14 + $0xd8] sm:$0xff]
          %v2453 = vld [vmem:[#allocation14 + $0xe0] sm:$0xff]
          %v2454 = vld [vmem:[#allocation14 + $0xe8] sm:$0xff]
          %v2455 = vld [vmem:[#allocation14 + $0xf0] sm:$0xff]
          %v2456 = vld [vmem:[#allocation14 + $0xf8] sm:$0xff]
          %v2457 = vld [vmem:[#allocation14 + $0x100] sm:$0xff]
          %v2458 = vld [vmem:[#allocation14 + $0x108] sm:$0xff]
          %v2459 = vld [vmem:[#allocation14 + $0x110] sm:$0xff]
          %v2460 = vld [vmem:[#allocation14 + $0x118] sm:$0xff]
          %v2461 = vld [vmem:[#allocation14 + $0x120] sm:$0xff]
          %v2462 = vld [vmem:[#allocation14 + $0x128] sm:$0xff]
          %v2463 = vld [vmem:[#allocation14 + $0x130] sm:$0xff]
          %v2464 = vld [vmem:[#allocation14 + $0x138] sm:$0xff]
          %v2465 = vld [vmem:[#allocation14 + $0x140] sm:$0xff]
          %v2466 = vld [vmem:[#allocation14 + $0x148] sm:$0xff]
          %v2467 = vld [vmem:[#allocation14 + $0x150] sm:$0xff]
          %v2468 = vld [vmem:[#allocation14 + $0x158] sm:$0xff]
          %v2469 = vld [vmem:[#allocation14 + $0x160] sm:$0xff]
          %v2470 = vld [vmem:[#allocation14 + $0x168] sm:$0xff]
          %v2471 = vld [vmem:[#allocation14 + $0x170] sm:$0xff]
          %v2472 = vld [vmem:[#allocation14 + $0x178] sm:$0xff]
          %v2473 = vld [vmem:[#allocation14 + $0x180] sm:$0xff]
          %v2474 = vld [vmem:[#allocation14 + $0x188] sm:$0xff]
          %v2475 = vld [vmem:[#allocation14 + $0x190] sm:$0xff]
          %v2476 = vld [vmem:[#allocation14 + $0x198] sm:$0xff]
          %v2477 = vld [vmem:[#allocation14 + $0x1a0] sm:$0xff]
          %v2478 = vld [vmem:[#allocation14 + $0x1a8] sm:$0xff]
          %v2479 = vld [vmem:[#allocation14 + $0x1b0] sm:$0xff]
          %v2480 = vld [vmem:[#allocation14 + $0x1b8] sm:$0xff]
          %v2481 = vld [vmem:[#allocation14 + $0x1c0] sm:$0xff]
          %v2482 = vld [vmem:[#allocation14 + $0x1c8] sm:$0xff]
          %v2483 = vld [vmem:[#allocation14 + $0x1d0] sm:$0xff]
          %v2484 = vld [vmem:[#allocation14 + $0x1d8] sm:$0xff]
          %v2485 = vld [vmem:[#allocation14 + $0x1e0] sm:$0xff]
          %v2486 = vld [vmem:[#allocation14 + $0x1e8] sm:$0xff]
          %v2487 = vld [vmem:[#allocation14 + $0x1f0] sm:$0xff]
          %v2488 = vld [vmem:[#allocation14 + $0x1f8] sm:$0xff]
          %v2553 = vunpack.c.l.b16 %v2425
          %v2554 = vunpack.c.h.b16 %v2425
          %v2555 = vunpack.c.l.b16 %v2426
          %v2556 = vunpack.c.h.b16 %v2426
          %v2557 = vunpack.c.l.b16 %v2427
          %v2558 = vunpack.c.h.b16 %v2427
          %v2559 = vunpack.c.l.b16 %v2428
          %v2560 = vunpack.c.h.b16 %v2428
          %v2561 = vunpack.c.l.b16 %v2429
          %v2562 = vunpack.c.h.b16 %v2429
          %v2563 = vunpack.c.l.b16 %v2430
          %v2564 = vunpack.c.h.b16 %v2430
          %v2565 = vunpack.c.l.b16 %v2431
          %v2566 = vunpack.c.h.b16 %v2431
          %v2567 = vunpack.c.l.b16 %v2432
          %v2568 = vunpack.c.h.b16 %v2432
          %v2569 = vunpack.c.l.b16 %v2433
          %v2570 = vunpack.c.h.b16 %v2433
          %v2571 = vunpack.c.l.b16 %v2434
          %v2572 = vunpack.c.h.b16 %v2434
          %v2573 = vunpack.c.l.b16 %v2435
          %v2574 = vunpack.c.h.b16 %v2435
          %v2575 = vunpack.c.l.b16 %v2436
          %v2576 = vunpack.c.h.b16 %v2436
          %v2577 = vunpack.c.l.b16 %v2437
          %v2578 = vunpack.c.h.b16 %v2437
          %v2579 = vunpack.c.l.b16 %v2438
          %v2580 = vunpack.c.h.b16 %v2438
          %v2581 = vunpack.c.l.b16 %v2439
          %v2582 = vunpack.c.h.b16 %v2439
          %v2583 = vunpack.c.l.b16 %v2440
          %v2584 = vunpack.c.h.b16 %v2440
          %v2585 = vunpack.c.l.b16 %v2441
          %v2586 = vunpack.c.h.b16 %v2441
          %v2587 = vunpack.c.l.b16 %v2442
          %v2588 = vunpack.c.h.b16 %v2442
          %v2589 = vunpack.c.l.b16 %v2443
          %v2590 = vunpack.c.h.b16 %v2443
          %v2591 = vunpack.c.l.b16 %v2444
          %v2592 = vunpack.c.h.b16 %v2444
          %v2593 = vunpack.c.l.b16 %v2445
          %v2594 = vunpack.c.h.b16 %v2445
          %v2595 = vunpack.c.l.b16 %v2446
          %v2596 = vunpack.c.h.b16 %v2446
          %v2597 = vunpack.c.l.b16 %v2447
          %v2598 = vunpack.c.h.b16 %v2447
          %v2599 = vunpack.c.l.b16 %v2448
          %v2600 = vunpack.c.h.b16 %v2448
          %v2601 = vunpack.c.l.b16 %v2449
          %v2602 = vunpack.c.h.b16 %v2449
          %v2603 = vunpack.c.l.b16 %v2450
          %v2604 = vunpack.c.h.b16 %v2450
          %v2605 = vunpack.c.l.b16 %v2451
          %v2606 = vunpack.c.h.b16 %v2451
          %v2607 = vunpack.c.l.b16 %v2452
          %v2608 = vunpack.c.h.b16 %v2452
          %v2609 = vunpack.c.l.b16 %v2453
          %v2610 = vunpack.c.h.b16 %v2453
          %v2611 = vunpack.c.l.b16 %v2454
          %v2612 = vunpack.c.h.b16 %v2454
          %v2613 = vunpack.c.l.b16 %v2455
          %v2614 = vunpack.c.h.b16 %v2455
          %v2615 = vunpack.c.l.b16 %v2456
          %v2616 = vunpack.c.h.b16 %v2456
          %v2617 = vunpack.c.l.b16 %v2457
          %v2618 = vunpack.c.h.b16 %v2457
          %v2619 = vunpack.c.l.b16 %v2458
          %v2620 = vunpack.c.h.b16 %v2458
          %v2621 = vunpack.c.l.b16 %v2459
          %v2622 = vunpack.c.h.b16 %v2459
          %v2623 = vunpack.c.l.b16 %v2460
          %v2624 = vunpack.c.h.b16 %v2460
          %v2625 = vunpack.c.l.b16 %v2461
          %v2626 = vunpack.c.h.b16 %v2461
          %v2627 = vunpack.c.l.b16 %v2462
          %v2628 = vunpack.c.h.b16 %v2462
          %v2629 = vunpack.c.l.b16 %v2463
          %v2630 = vunpack.c.h.b16 %v2463
          %v2631 = vunpack.c.l.b16 %v2464
          %v2632 = vunpack.c.h.b16 %v2464
          %v2633 = vunpack.c.l.b16 %v2465
          %v2634 = vunpack.c.h.b16 %v2465
          %v2635 = vunpack.c.l.b16 %v2466
          %v2636 = vunpack.c.h.b16 %v2466
          %v2637 = vunpack.c.l.b16 %v2467
          %v2638 = vunpack.c.h.b16 %v2467
          %v2639 = vunpack.c.l.b16 %v2468
          %v2640 = vunpack.c.h.b16 %v2468
          %v2641 = vunpack.c.l.b16 %v2469
          %v2642 = vunpack.c.h.b16 %v2469
          %v2643 = vunpack.c.l.b16 %v2470
          %v2644 = vunpack.c.h.b16 %v2470
          %v2645 = vunpack.c.l.b16 %v2471
          %v2646 = vunpack.c.h.b16 %v2471
          %v2647 = vunpack.c.l.b16 %v2472
          %v2648 = vunpack.c.h.b16 %v2472
          %v2649 = vunpack.c.l.b16 %v2473
          %v2650 = vunpack.c.h.b16 %v2473
          %v2651 = vunpack.c.l.b16 %v2474
          %v2652 = vunpack.c.h.b16 %v2474
          %v2653 = vunpack.c.l.b16 %v2475
          %v2654 = vunpack.c.h.b16 %v2475
          %v2655 = vunpack.c.l.b16 %v2476
          %v2656 = vunpack.c.h.b16 %v2476
          %v2657 = vunpack.c.l.b16 %v2477
          %v2658 = vunpack.c.h.b16 %v2477
          %v2659 = vunpack.c.l.b16 %v2478
          %v2660 = vunpack.c.h.b16 %v2478
          %v2661 = vunpack.c.l.b16 %v2479
          %v2662 = vunpack.c.h.b16 %v2479
          %v2663 = vunpack.c.l.b16 %v2480
          %v2664 = vunpack.c.h.b16 %v2480
          %v2665 = vunpack.c.l.b16 %v2481
          %v2666 = vunpack.c.h.b16 %v2481
          %v2667 = vunpack.c.l.b16 %v2482
          %v2668 = vunpack.c.h.b16 %v2482
          %v2669 = vunpack.c.l.b16 %v2483
          %v2670 = vunpack.c.h.b16 %v2483
          %v2671 = vunpack.c.l.b16 %v2484
          %v2672 = vunpack.c.h.b16 %v2484
          %v2673 = vunpack.c.l.b16 %v2485
          %v2674 = vunpack.c.h.b16 %v2485
          %v2675 = vunpack.c.l.b16 %v2486
          %v2676 = vunpack.c.h.b16 %v2486
          %v2677 = vunpack.c.l.b16 %v2487
          %v2678 = vunpack.c.h.b16 %v2487
          %v2679 = vunpack.c.l.b16 %v2488
          %v2680 = vunpack.c.h.b16 %v2488
          %v2681 = vpack.c.b16 %v2555, %v2553
          %v2682 = vpack.c.b16 %v2556, %v2554
          %v2683 = vpack.c.b16 %v2559, %v2557
          %v2684 = vpack.c.b16 %v2560, %v2558
          %v2685 = vpack.c.b16 %v2563, %v2561
          %v2686 = vpack.c.b16 %v2564, %v2562
          %v2687 = vpack.c.b16 %v2567, %v2565
          %v2688 = vpack.c.b16 %v2568, %v2566
          %v2689 = vpack.c.b16 %v2571, %v2569
          %v2690 = vpack.c.b16 %v2572, %v2570
          %v2691 = vpack.c.b16 %v2575, %v2573
          %v2692 = vpack.c.b16 %v2576, %v2574
          %v2693 = vpack.c.b16 %v2579, %v2577
          %v2694 = vpack.c.b16 %v2580, %v2578
          %v2695 = vpack.c.b16 %v2583, %v2581
          %v2696 = vpack.c.b16 %v2584, %v2582
          %v2697 = vpack.c.b16 %v2587, %v2585
          %v2698 = vpack.c.b16 %v2588, %v2586
          %v2699 = vpack.c.b16 %v2591, %v2589
          %v2700 = vpack.c.b16 %v2592, %v2590
          %v2701 = vpack.c.b16 %v2595, %v2593
          %v2702 = vpack.c.b16 %v2596, %v2594
          %v2703 = vpack.c.b16 %v2599, %v2597
          %v2704 = vpack.c.b16 %v2600, %v2598
          %v2705 = vpack.c.b16 %v2603, %v2601
          %v2706 = vpack.c.b16 %v2604, %v2602
          %v2707 = vpack.c.b16 %v2607, %v2605
          %v2708 = vpack.c.b16 %v2608, %v2606
          %v2709 = vpack.c.b16 %v2611, %v2609
          %v2710 = vpack.c.b16 %v2612, %v2610
          %v2711 = vpack.c.b16 %v2615, %v2613
          %v2712 = vpack.c.b16 %v2616, %v2614
          %v2713 = vpack.c.b16 %v2619, %v2617
          %v2714 = vpack.c.b16 %v2620, %v2618
          %v2715 = vpack.c.b16 %v2623, %v2621
          %v2716 = vpack.c.b16 %v2624, %v2622
          %v2717 = vpack.c.b16 %v2627, %v2625
          %v2718 = vpack.c.b16 %v2628, %v2626
          %v2719 = vpack.c.b16 %v2631, %v2629
          %v2720 = vpack.c.b16 %v2632, %v2630
          %v2721 = vpack.c.b16 %v2635, %v2633
          %v2722 = vpack.c.b16 %v2636, %v2634
          %v2723 = vpack.c.b16 %v2639, %v2637
          %v2724 = vpack.c.b16 %v2640, %v2638
          %v2725 = vpack.c.b16 %v2643, %v2641
          %v2726 = vpack.c.b16 %v2644, %v2642
          %v2727 = vpack.c.b16 %v2647, %v2645
          %v2728 = vpack.c.b16 %v2648, %v2646
          %v2729 = vpack.c.b16 %v2651, %v2649
          %v2730 = vpack.c.b16 %v2652, %v2650
          %v2731 = vpack.c.b16 %v2655, %v2653
          %v2732 = vpack.c.b16 %v2656, %v2654
          %v2733 = vpack.c.b16 %v2659, %v2657
          %v2734 = vpack.c.b16 %v2660, %v2658
          %v2735 = vpack.c.b16 %v2663, %v2661
          %v2736 = vpack.c.b16 %v2664, %v2662
          %v2737 = vpack.c.b16 %v2667, %v2665
          %v2738 = vpack.c.b16 %v2668, %v2666
          %v2739 = vpack.c.b16 %v2671, %v2669
          %v2740 = vpack.c.b16 %v2672, %v2670
          %v2741 = vpack.c.b16 %v2675, %v2673
          %v2742 = vpack.c.b16 %v2676, %v2674
          %v2743 = vpack.c.b16 %v2679, %v2677
          %v2744 = vpack.c.b16 %v2680, %v2678
          %2809 = vmatprep.subr.bf16.mxu0 %v2696
          %2810 = vmatpush1.bf16.msra.mxu0 %v2695
          %2811 = vmatprep.subr.bf16.mxu0 %v2694
          %2812 = vmatpush1.bf16.msra.mxu0 %v2693
          %2813 = vmatprep.subr.bf16.mxu0 %v2692
          %2814 = vmatpush1.bf16.msra.mxu0 %v2691
          %2815 = vmatprep.subr.bf16.mxu0 %v2690
          %2816 = vmatpush1.bf16.msra.mxu0 %v2689
          %2817 = vmatprep.subr.bf16.mxu0 %v2688
          %2818 = vmatpush1.bf16.msra.mxu0 %v2687
          %2819 = vmatprep.subr.bf16.mxu0 %v2686
          %2820 = vmatpush1.bf16.msra.mxu0 %v2685
          %2821 = vmatprep.subr.bf16.mxu0 %v2684
          %2822 = vmatpush1.bf16.msra.mxu0 %v2683
          %2823 = vmatprep.subr.bf16.mxu0 %v2682
          %2824 = vmatpush1.bf16.msra.mxu0 %v2681
          %2825 = vmatprep.subr.bf16.mxu0 %v2712
          %2826 = vmatpush2.bf16.msra.mxu0 %v2711
          %2827 = vmatprep.subr.bf16.mxu0 %v2710
          %2828 = vmatpush2.bf16.msra.mxu0 %v2709
          %2829 = vmatprep.subr.bf16.mxu0 %v2708
          %2830 = vmatpush2.bf16.msra.mxu0 %v2707
          %2831 = vmatprep.subr.bf16.mxu0 %v2706
          %2832 = vmatpush2.bf16.msra.mxu0 %v2705
          %2833 = vmatprep.subr.bf16.mxu0 %v2704
          %2834 = vmatpush2.bf16.msra.mxu0 %v2703
          %2835 = vmatprep.subr.bf16.mxu0 %v2702
          %2836 = vmatpush2.bf16.msra.mxu0 %v2701
          %2837 = vmatprep.subr.bf16.mxu0 %v2700
          %2838 = vmatpush2.bf16.msra.mxu0 %v2699
          %2839 = vmatprep.subr.bf16.mxu0 %v2698
          %2840 = vmatpush2.bf16.msra.mxu0 %v2697
          %2841 = vmatprep.mubr.bf16.mxu0 %v2394
          %2842 = vmatmul.mubr.bf16.gmra.mxu0 %v2393
          %v2843 = vpop.f32.mrf.mxu0
          %v2844 = vadd.f32 0.0, %v2843
          %v2845 = vpop.f32.mrf.mxu0
          %v2846 = vadd.f32 0.0, %v2845
          %v2847 = vpop.f32.mrf.mxu0
          %v2848 = vadd.f32 0.0, %v2847
          %v2849 = vpop.f32.mrf.mxu0
          %v2850 = vadd.f32 0.0, %v2849
          %2851 = vmatprep.mubr.bf16.mxu0 %v2398
          %2852 = vmatmul.mubr.bf16.gmra.mxu0 %v2397
          %v2853 = vpop.f32.mrf.mxu0
          %v2854 = vadd.f32 0.0, %v2853
          %v2855 = vpop.f32.mrf.mxu0
          %v2856 = vadd.f32 0.0, %v2855
          %v2857 = vpop.f32.mrf.mxu0
          %v2858 = vadd.f32 0.0, %v2857
          %v2859 = vpop.f32.mrf.mxu0
          %v2860 = vadd.f32 0.0, %v2859
          %2861 = vmatprep.mubr.bf16.mxu0 %v2402
          %2862 = vmatmul.mubr.bf16.gmra.mxu0 %v2401
          %v2863 = vpop.f32.mrf.mxu0
          %v2864 = vadd.f32 0.0, %v2863
          %v2865 = vpop.f32.mrf.mxu0
          %v2866 = vadd.f32 0.0, %v2865
          %v2867 = vpop.f32.mrf.mxu0
          %v2868 = vadd.f32 0.0, %v2867
          %v2869 = vpop.f32.mrf.mxu0
          %v2870 = vadd.f32 0.0, %v2869
          %2871 = vmatprep.mubr.bf16.mxu0 %v2406
          %2872 = vmatmul.mubr.bf16.gmra.mxu0 %v2405
          %v2873 = vpop.f32.mrf.mxu0
          %v2874 = vadd.f32 0.0, %v2873
          %v2875 = vpop.f32.mrf.mxu0
          %v2876 = vadd.f32 0.0, %v2875
          %v2877 = vpop.f32.mrf.mxu0
          %v2878 = vadd.f32 0.0, %v2877
          %v2879 = vpop.f32.mrf.mxu0
          %v2880 = vadd.f32 0.0, %v2879
          %2881 = vmatprep.mubr.bf16.mxu0 %v2410
          %2882 = vmatmul.mubr.bf16.gmra.mxu0 %v2409
          %v2883 = vpop.f32.mrf.mxu0
          %v2884 = vadd.f32 0.0, %v2883
          %v2885 = vpop.f32.mrf.mxu0
          %v2886 = vadd.f32 0.0, %v2885
          %v2887 = vpop.f32.mrf.mxu0
          %v2888 = vadd.f32 0.0, %v2887
          %v2889 = vpop.f32.mrf.mxu0
          %v2890 = vadd.f32 0.0, %v2889
          %2891 = vmatprep.mubr.bf16.mxu0 %v2414
          %2892 = vmatmul.mubr.bf16.gmra.mxu0 %v2413
          %v2893 = vpop.f32.mrf.mxu0
          %v2894 = vadd.f32 0.0, %v2893
          %v2895 = vpop.f32.mrf.mxu0
          %v2896 = vadd.f32 0.0, %v2895
          %v2897 = vpop.f32.mrf.mxu0
          %v2898 = vadd.f32 0.0, %v2897
          %v2899 = vpop.f32.mrf.mxu0
          %v2900 = vadd.f32 0.0, %v2899
          %2901 = vmatprep.mubr.bf16.mxu0 %v2418
          %2902 = vmatmul.mubr.bf16.gmra.mxu0 %v2417
          %v2903 = vpop.f32.mrf.mxu0
          %v2904 = vadd.f32 0.0, %v2903
          %v2905 = vpop.f32.mrf.mxu0
          %v2906 = vadd.f32 0.0, %v2905
          %v2907 = vpop.f32.mrf.mxu0
          %v2908 = vadd.f32 0.0, %v2907
          %v2909 = vpop.f32.mrf.mxu0
          %v2910 = vadd.f32 0.0, %v2909
          %2911 = vmatprep.mubr.bf16.mxu0 %v2422
          %2912 = vmatmul.mubr.bf16.gmra.mxu0 %v2421
          %v2913 = vpop.f32.mrf.mxu0
          %v2914 = vadd.f32 0.0, %v2913
          %v2915 = vpop.f32.mrf.mxu0
          %v2916 = vadd.f32 0.0, %v2915
          %v2917 = vpop.f32.mrf.mxu0
          %v2918 = vadd.f32 0.0, %v2917
          %v2919 = vpop.f32.mrf.mxu0
          %v2920 = vadd.f32 0.0, %v2919
          %2921 = vdwg.mxu0
          %2922 = vmatprep.subr.bf16.mxu0 %v2728
          %2923 = vmatpush1.bf16.msra.mxu0 %v2727
          %2924 = vmatprep.subr.bf16.mxu0 %v2726
          %2925 = vmatpush1.bf16.msra.mxu0 %v2725
          %2926 = vmatprep.subr.bf16.mxu0 %v2724
          %2927 = vmatpush1.bf16.msra.mxu0 %v2723
          %2928 = vmatprep.subr.bf16.mxu0 %v2722
          %2929 = vmatpush1.bf16.msra.mxu0 %v2721
          %2930 = vmatprep.subr.bf16.mxu0 %v2720
          %2931 = vmatpush1.bf16.msra.mxu0 %v2719
          %2932 = vmatprep.subr.bf16.mxu0 %v2718
          %2933 = vmatpush1.bf16.msra.mxu0 %v2717
          %2934 = vmatprep.subr.bf16.mxu0 %v2716
          %2935 = vmatpush1.bf16.msra.mxu0 %v2715
          %2936 = vmatprep.subr.bf16.mxu0 %v2714
          %2937 = vmatpush1.bf16.msra.mxu0 %v2713
          %2938 = vmatprep.subr.bf16.mxu0 %v2744
          %2939 = vmatpush2.bf16.msra.mxu0 %v2743
          %2940 = vmatprep.subr.bf16.mxu0 %v2742
          %2941 = vmatpush2.bf16.msra.mxu0 %v2741
          %2942 = vmatprep.subr.bf16.mxu0 %v2740
          %2943 = vmatpush2.bf16.msra.mxu0 %v2739
          %2944 = vmatprep.subr.bf16.mxu0 %v2738
          %2945 = vmatpush2.bf16.msra.mxu0 %v2737
          %2946 = vmatprep.subr.bf16.mxu0 %v2736
          %2947 = vmatpush2.bf16.msra.mxu0 %v2735
          %2948 = vmatprep.subr.bf16.mxu0 %v2734
          %2949 = vmatpush2.bf16.msra.mxu0 %v2733
          %2950 = vmatprep.subr.bf16.mxu0 %v2732
          %2951 = vmatpush2.bf16.msra.mxu0 %v2731
          %2952 = vmatprep.subr.bf16.mxu0 %v2730
          %2953 = vmatpush2.bf16.msra.mxu0 %v2729
          %2954 = vmatprep.mubr.bf16.mxu0 %v2396
          %2955 = vmatmul.mubr.bf16.gmra.mxu0 %v2395
          %v2956 = vpop.f32.mrf.mxu0
          %v2957 = vadd.f32 %v2844, %v2956
          %v2958 = vpop.f32.mrf.mxu0
          %v2959 = vadd.f32 %v2846, %v2958
          %v2960 = vpop.f32.mrf.mxu0
          %v2961 = vadd.f32 %v2848, %v2960
          %v2962 = vpop.f32.mrf.mxu0
          %v2963 = vadd.f32 %v2850, %v2962
          %2964 = vmatprep.mubr.bf16.mxu0 %v2400
          %2965 = vmatmul.mubr.bf16.gmra.mxu0 %v2399
          %v2966 = vpop.f32.mrf.mxu0
          %v2967 = vadd.f32 %v2854, %v2966
          %v2968 = vpop.f32.mrf.mxu0
          %v2969 = vadd.f32 %v2856, %v2968
          %v2970 = vpop.f32.mrf.mxu0
          %v2971 = vadd.f32 %v2858, %v2970
          %v2972 = vpop.f32.mrf.mxu0
          %v2973 = vadd.f32 %v2860, %v2972
          %2974 = vmatprep.mubr.bf16.mxu0 %v2404
          %2975 = vmatmul.mubr.bf16.gmra.mxu0 %v2403
          %v2976 = vpop.f32.mrf.mxu0
          %v2977 = vadd.f32 %v2864, %v2976
          %v2978 = vpop.f32.mrf.mxu0
          %v2979 = vadd.f32 %v2866, %v2978
          %v2980 = vpop.f32.mrf.mxu0
          %v2981 = vadd.f32 %v2868, %v2980
          %v2982 = vpop.f32.mrf.mxu0
          %v2983 = vadd.f32 %v2870, %v2982
          %2984 = vmatprep.mubr.bf16.mxu0 %v2408
          %2985 = vmatmul.mubr.bf16.gmra.mxu0 %v2407
          %v2986 = vpop.f32.mrf.mxu0
          %v2987 = vadd.f32 %v2874, %v2986
          %v2988 = vpop.f32.mrf.mxu0
          %v2989 = vadd.f32 %v2876, %v2988
          %v2990 = vpop.f32.mrf.mxu0
          %v2991 = vadd.f32 %v2878, %v2990
          %v2992 = vpop.f32.mrf.mxu0
          %v2993 = vadd.f32 %v2880, %v2992
          %2994 = vmatprep.mubr.bf16.mxu0 %v2412
          %2995 = vmatmul.mubr.bf16.gmra.mxu0 %v2411
          %v2996 = vpop.f32.mrf.mxu0
          %v2997 = vadd.f32 %v2884, %v2996
          %v2998 = vpop.f32.mrf.mxu0
          %v2999 = vadd.f32 %v2886, %v2998
          %v3000 = vpop.f32.mrf.mxu0
          %v3001 = vadd.f32 %v2888, %v3000
          %v3002 = vpop.f32.mrf.mxu0
          %v3003 = vadd.f32 %v2890, %v3002
          %3004 = vmatprep.mubr.bf16.mxu0 %v2416
          %3005 = vmatmul.mubr.bf16.gmra.mxu0 %v2415
          %v3006 = vpop.f32.mrf.mxu0
          %v3007 = vadd.f32 %v2894, %v3006
          %v3008 = vpop.f32.mrf.mxu0
          %v3009 = vadd.f32 %v2896, %v3008
          %v3010 = vpop.f32.mrf.mxu0
          %v3011 = vadd.f32 %v2898, %v3010
          %v3012 = vpop.f32.mrf.mxu0
          %v3013 = vadd.f32 %v2900, %v3012
          %3014 = vmatprep.mubr.bf16.mxu0 %v2420
          %3015 = vmatmul.mubr.bf16.gmra.mxu0 %v2419
          %v3016 = vpop.f32.mrf.mxu0
          %v3017 = vadd.f32 %v2904, %v3016
          %v3018 = vpop.f32.mrf.mxu0
          %v3019 = vadd.f32 %v2906, %v3018
          %v3020 = vpop.f32.mrf.mxu0
          %v3021 = vadd.f32 %v2908, %v3020
          %v3022 = vpop.f32.mrf.mxu0
          %v3023 = vadd.f32 %v2910, %v3022
          %3024 = vmatprep.mubr.bf16.mxu0 %v2424
          %3025 = vmatmul.mubr.bf16.gmra.mxu0 %v2423
          %v3026 = vpop.f32.mrf.mxu0
          %v3027 = vadd.f32 %v2914, %v3026
          %v3028 = vpop.f32.mrf.mxu0
          %v3029 = vadd.f32 %v2916, %v3028
          %v3030 = vpop.f32.mrf.mxu0
          %v3031 = vadd.f32 %v2918, %v3030
          %v3032 = vpop.f32.mrf.mxu0
          %v3033 = vadd.f32 %v2920, %v3032
          %3034 = vdwg.mxu0
          %s3035 = smul.u32 %s2076, 2
          %s3036 = smul.addr %s3035, 8
          %s3037 = scalar_lea.vmem [#allocation3], %s3036
          %3038 = vst [vmem:[%s3037] sm:$0xff] %v2957
          %3039 = vst [vmem:[%s3037 + $0x8] sm:$0xff] %v2959
          %3040 = vst [vmem:[%s3037 + $0x10] sm:$0xff] %v2961
          %3041 = vst [vmem:[%s3037 + $0x18] sm:$0xff] %v2963
          %3042 = vst [vmem:[%s3037 + $0x20] sm:$0xff] %v2967
          %3043 = vst [vmem:[%s3037 + $0x28] sm:$0xff] %v2969
          %3044 = vst [vmem:[%s3037 + $0x30] sm:$0xff] %v2971
          %3045 = vst [vmem:[%s3037 + $0x38] sm:$0xff] %v2973
          %3046 = vst [vmem:[%s3037 + $0x40] sm:$0xff] %v2977
          %3047 = vst [vmem:[%s3037 + $0x48] sm:$0xff] %v2979
          %3048 = vst [vmem:[%s3037 + $0x50] sm:$0xff] %v2981
          %3049 = vst [vmem:[%s3037 + $0x58] sm:$0xff] %v2983
          %3050 = vst [vmem:[%s3037 + $0x60] sm:$0xff] %v2987
          %3051 = vst [vmem:[%s3037 + $0x68] sm:$0xff] %v2989
          %3052 = vst [vmem:[%s3037 + $0x70] sm:$0xff] %v2991
          %3053 = vst [vmem:[%s3037 + $0x78] sm:$0xff] %v2993
          %3054 = vst [vmem:[%s3037 + $0x80] sm:$0xff] %v2997
          %3055 = vst [vmem:[%s3037 + $0x88] sm:$0xff] %v2999
          %3056 = vst [vmem:[%s3037 + $0x90] sm:$0xff] %v3001
          %3057 = vst [vmem:[%s3037 + $0x98] sm:$0xff] %v3003
          %3058 = vst [vmem:[%s3037 + $0xa0] sm:$0xff] %v3007
          %3059 = vst [vmem:[%s3037 + $0xa8] sm:$0xff] %v3009
          %3060 = vst [vmem:[%s3037 + $0xb0] sm:$0xff] %v3011
          %3061 = vst [vmem:[%s3037 + $0xb8] sm:$0xff] %v3013
          %3062 = vst [vmem:[%s3037 + $0xc0] sm:$0xff] %v3017
          %3063 = vst [vmem:[%s3037 + $0xc8] sm:$0xff] %v3019
          %3064 = vst [vmem:[%s3037 + $0xd0] sm:$0xff] %v3021
          %3065 = vst [vmem:[%s3037 + $0xd8] sm:$0xff] %v3023
          %3066 = vst [vmem:[%s3037 + $0xe0] sm:$0xff] %v3027
          %3067 = vst [vmem:[%s3037 + $0xe8] sm:$0xff] %v3029
          %3068 = vst [vmem:[%s3037 + $0xf0] sm:$0xff] %v3031
          %3069 = vst [vmem:[%s3037 + $0xf8] sm:$0xff] %v3033
          %v3070 = vld [vmem:[#allocation6] sm:$0x3]
          %v3071 = vadd.f32 %v2957, %v2961
          %v3072 = vadd.f32 %v3071, %v2967
          %v3073 = vadd.f32 %v3072, %v2971
          %v3074 = vadd.f32 %v3073, %v2977
          %v3075 = vadd.f32 %v3074, %v2981
          %v3076 = vadd.f32 %v3075, %v2987
          %v3077 = vadd.f32 %v3076, %v2991
          %v3078 = vadd.f32 %v3077, %v2997
          %v3079 = vadd.f32 %v3078, %v3001
          %v3080 = vadd.f32 %v3079, %v3007
          %v3081 = vadd.f32 %v3080, %v3011
          %v3082 = vadd.f32 %v3081, %v3017
          %v3083 = vadd.f32 %v3082, %v3021
          %v3084 = vadd.f32 %v3083, %v3027
          %v3085 = vadd.f32 %v3084, %v3031
          %v3086 = vrot.slane %v3085, 4
          %v3087 = vadd.f32 %v3085, %v3086
          %v3088 = vrot.slane %v3087, 2
          %v3089 = vadd.f32 %v3087, %v3088
          %v3090 = vrot.slane %v3089, 1
          %v3091 = vadd.f32 %v3089, %v3090
          %v3092 = vadd.f32 %v2959, %v2963
          %v3093 = vadd.f32 %v3092, %v2969
          %v3094 = vadd.f32 %v3093, %v2973
          %v3095 = vadd.f32 %v3094, %v2979
          %v3096 = vadd.f32 %v3095, %v2983
          %v3097 = vadd.f32 %v3096, %v2989
          %v3098 = vadd.f32 %v3097, %v2993
          %v3099 = vadd.f32 %v3098, %v2999
          %v3100 = vadd.f32 %v3099, %v3003
          %v3101 = vadd.f32 %v3100, %v3009
          %v3102 = vadd.f32 %v3101, %v3013
          %v3103 = vadd.f32 %v3102, %v3019
          %v3104 = vadd.f32 %v3103, %v3023
          %v3105 = vadd.f32 %v3104, %v3029
          %v3106 = vadd.f32 %v3105, %v3033
          %v3107 = vrot.slane %v3106, 4
          %v3108 = vadd.f32 %v3106, %v3107
          %v3109 = vrot.slane %v3108, 2
          %v3110 = vadd.f32 %v3108, %v3109
          %v3111 = vrot.slane %v3110, 1
          %v3112 = vadd.f32 %v3110, %v3111
          %v3115 = vcombine.low %v3091, %v3112
          %v3117 = vunpack.c.l.s4 1966171168
          %v3118 = vunpack.c.0.s8 %v3117
          %v3119 = vlaneseq
          %v3120 = vshrl.u32 %v3119, 7
          %v3121 = vsub.s32 %v3118, %v3120
          %v3122 = vrot.slane %v3115, %v3121
          %v3124 = vunpack.c.l.s4 1966171168
          %v3125 = vunpack.c.0.s8 %v3124
          %v3126 = vlaneseq
          %v3127 = vshrl.u32 %v3126, 7
          %v3128 = vsub.s32 %v3125, %v3127
          %v3129 = vrot.slane %v3122, %v3128
          %v3131 = vadd.f32 %v3070, %v3129
          %v3132 = vlaneseq
          %vm3133 = vcmp.ge.s32.totalorder %v3132, 0
          %vm3134 = vcmp.lt.s32.totalorder %v3132, 256
          %vm3135 = vmand %vm3133, %vm3134
          %3136 = vst.msk [vmem:[#allocation6] sm:$0x3] %vm3135, %v3131
          %v3137 = vld [vmem:[#allocation7] sm:$0x3]
          %v3138 = vmul.f32 %v2957, %v2957
          %v3139 = vmul.f32 %v2959, %v2959
          %v3140 = vmul.f32 %v2961, %v2961
          %v3141 = vmul.f32 %v2963, %v2963
          %v3142 = vmul.f32 %v2967, %v2967
          %v3143 = vmul.f32 %v2969, %v2969
          %v3144 = vmul.f32 %v2971, %v2971
          %v3145 = vmul.f32 %v2973, %v2973
          %v3146 = vmul.f32 %v2977, %v2977
          %v3147 = vmul.f32 %v2979, %v2979
          %v3148 = vmul.f32 %v2981, %v2981
          %v3149 = vmul.f32 %v2983, %v2983
          %v3150 = vmul.f32 %v2987, %v2987
          %v3151 = vmul.f32 %v2989, %v2989
          %v3152 = vmul.f32 %v2991, %v2991
          %v3153 = vmul.f32 %v2993, %v2993
          %v3154 = vmul.f32 %v2997, %v2997
          %v3155 = vmul.f32 %v2999, %v2999
          %v3156 = vmul.f32 %v3001, %v3001
          %v3157 = vmul.f32 %v3003, %v3003
          %v3158 = vmul.f32 %v3007, %v3007
          %v3159 = vmul.f32 %v3009, %v3009
          %v3160 = vmul.f32 %v3011, %v3011
          %v3161 = vmul.f32 %v3013, %v3013
          %v3162 = vmul.f32 %v3017, %v3017
          %v3163 = vmul.f32 %v3019, %v3019
          %v3164 = vmul.f32 %v3021, %v3021
          %v3165 = vmul.f32 %v3023, %v3023
          %v3166 = vmul.f32 %v3027, %v3027
          %v3167 = vmul.f32 %v3029, %v3029
          %v3168 = vmul.f32 %v3031, %v3031
          %v3169 = vmul.f32 %v3033, %v3033
          %v3170 = vadd.f32 %v3138, %v3140
          %v3171 = vadd.f32 %v3170, %v3142
          %v3172 = vadd.f32 %v3171, %v3144
          %v3173 = vadd.f32 %v3172, %v3146
          %v3174 = vadd.f32 %v3173, %v3148
          %v3175 = vadd.f32 %v3174, %v3150
          %v3176 = vadd.f32 %v3175, %v3152
          %v3177 = vadd.f32 %v3176, %v3154
          %v3178 = vadd.f32 %v3177, %v3156
          %v3179 = vadd.f32 %v3178, %v3158
          %v3180 = vadd.f32 %v3179, %v3160
          %v3181 = vadd.f32 %v3180, %v3162
          %v3182 = vadd.f32 %v3181, %v3164
          %v3183 = vadd.f32 %v3182, %v3166
          %v3184 = vadd.f32 %v3183, %v3168
          %v3185 = vrot.slane %v3184, 4
          %v3186 = vadd.f32 %v3184, %v3185
          %v3187 = vrot.slane %v3186, 2
          %v3188 = vadd.f32 %v3186, %v3187
          %v3189 = vrot.slane %v3188, 1
          %v3190 = vadd.f32 %v3188, %v3189
          %v3191 = vadd.f32 %v3139, %v3141
          %v3192 = vadd.f32 %v3191, %v3143
          %v3193 = vadd.f32 %v3192, %v3145
          %v3194 = vadd.f32 %v3193, %v3147
          %v3195 = vadd.f32 %v3194, %v3149
          %v3196 = vadd.f32 %v3195, %v3151
          %v3197 = vadd.f32 %v3196, %v3153
          %v3198 = vadd.f32 %v3197, %v3155
          %v3199 = vadd.f32 %v3198, %v3157
          %v3200 = vadd.f32 %v3199, %v3159
          %v3201 = vadd.f32 %v3200, %v3161
          %v3202 = vadd.f32 %v3201, %v3163
          %v3203 = vadd.f32 %v3202, %v3165
          %v3204 = vadd.f32 %v3203, %v3167
          %v3205 = vadd.f32 %v3204, %v3169
          %v3206 = vrot.slane %v3205, 4
          %v3207 = vadd.f32 %v3205, %v3206
          %v3208 = vrot.slane %v3207, 2
          %v3209 = vadd.f32 %v3207, %v3208
          %v3210 = vrot.slane %v3209, 1
          %v3211 = vadd.f32 %v3209, %v3210
          %v3214 = vcombine.low %v3190, %v3211
          %v3216 = vunpack.c.l.s4 1966171168
          %v3217 = vunpack.c.0.s8 %v3216
          %v3218 = vlaneseq
          %v3219 = vshrl.u32 %v3218, 7
          %v3220 = vsub.s32 %v3217, %v3219
          %v3221 = vrot.slane %v3214, %v3220
          %v3223 = vunpack.c.l.s4 1966171168
          %v3224 = vunpack.c.0.s8 %v3223
          %v3225 = vlaneseq
          %v3226 = vshrl.u32 %v3225, 7
          %v3227 = vsub.s32 %v3224, %v3226
          %v3228 = vrot.slane %v3221, %v3227
          %v3230 = vadd.f32 %v3137, %v3228
          %3231 = vst.msk [vmem:[#allocation7] sm:$0x3] %vm3135, %v3230
        $region76: #{tpu_custom_call.1} parent=47 // pred_fallthru
          _
        %p3232 = scmp.eq.s32.totalorder %s30, 2
        // Predicated region
        $region77: #{tpu_custom_call.1} parent=47 // pred_check
          %p3233 = pneg %p3232
        $region78: #{tpu_custom_call.1} parent=47 // pred_check_branch
          %3235 = sbr.rel (%p3233) target = $region80
        $region79: #{tpu_custom_call.1} parent=47 // pred_region
          %s3236 = sshra.s32 %s368, 3
          %s3237 = sand.u32 %s368, 7
          %s3238 = smul.u32 %s3236, 2
          %s3239 = smul.addr %s3238, 8
          %s3240 = scalar_lea.vmem [#allocation3], %s3239
          %v3241 = vld [vmem:[%s3240] sm:$0xff]
          %v3242 = vld [vmem:[%s3240 + $0x8] sm:$0xff]
          %v3243 = vld [vmem:[%s3240 + $0x10] sm:$0xff]
          %v3244 = vld [vmem:[%s3240 + $0x18] sm:$0xff]
          %v3245 = vld [vmem:[%s3240 + $0x20] sm:$0xff]
          %v3246 = vld [vmem:[%s3240 + $0x28] sm:$0xff]
          %v3247 = vld [vmem:[%s3240 + $0x30] sm:$0xff]
          %v3248 = vld [vmem:[%s3240 + $0x38] sm:$0xff]
          %v3249 = vld [vmem:[%s3240 + $0x40] sm:$0xff]
          %v3250 = vld [vmem:[%s3240 + $0x48] sm:$0xff]
          %v3251 = vld [vmem:[%s3240 + $0x50] sm:$0xff]
          %v3252 = vld [vmem:[%s3240 + $0x58] sm:$0xff]
          %v3253 = vld [vmem:[%s3240 + $0x60] sm:$0xff]
          %v3254 = vld [vmem:[%s3240 + $0x68] sm:$0xff]
          %v3255 = vld [vmem:[%s3240 + $0x70] sm:$0xff]
          %v3256 = vld [vmem:[%s3240 + $0x78] sm:$0xff]
          %v3257 = vld [vmem:[%s3240 + $0x80] sm:$0xff]
          %v3258 = vld [vmem:[%s3240 + $0x88] sm:$0xff]
          %v3259 = vld [vmem:[%s3240 + $0x90] sm:$0xff]
          %v3260 = vld [vmem:[%s3240 + $0x98] sm:$0xff]
          %v3261 = vld [vmem:[%s3240 + $0xa0] sm:$0xff]
          %v3262 = vld [vmem:[%s3240 + $0xa8] sm:$0xff]
          %v3263 = vld [vmem:[%s3240 + $0xb0] sm:$0xff]
          %v3264 = vld [vmem:[%s3240 + $0xb8] sm:$0xff]
          %v3265 = vld [vmem:[%s3240 + $0xc0] sm:$0xff]
          %v3266 = vld [vmem:[%s3240 + $0xc8] sm:$0xff]
          %v3267 = vld [vmem:[%s3240 + $0xd0] sm:$0xff]
          %v3268 = vld [vmem:[%s3240 + $0xd8] sm:$0xff]
          %v3269 = vld [vmem:[%s3240 + $0xe0] sm:$0xff]
          %v3270 = vld [vmem:[%s3240 + $0xe8] sm:$0xff]
          %v3271 = vld [vmem:[%s3240 + $0xf0] sm:$0xff]
          %v3272 = vld [vmem:[%s3240 + $0xf8] sm:$0xff]
          %v3273 = vld [vmem:[#allocation6] sm:$0x3]
          %v3274 = vmul.f32 %v3273, 0.00390625
          %v3275 = vld [vmem:[#allocation7] sm:$0x3]
          %v3276 = vmul.f32 %v3275, 0.00390625
          %v3277 = vmul.f32 %v3274, %v3274
          %v3278 = vsub.f32 %v3276, %v3277
          %v3279 = vmax.f32 %v3278, 0.0
          %v3280 = vld [vmem:[%s5] sm:$0x3]
          %v3281 = vadd.f32 %v3279, 1e-05
          %v3282 = vrsqrt.pop %v3281
          %v3283 = vmul.f32 %v3280, %v3282
          %v3284 = vld [vmem:[%s6] sm:$0x3]
          %v3285 = vmul.f32 %v3274, %v3283
          %v3286 = vsub.f32 %v3284, %v3285
          %v3288 = vlaneseq
          %v3289 = vshrl.u32 %v3288, 7
          %v3290 = vsub.s32 0, %v3289
          %v3291 = vrot.slane %v3283, %v3290
          %v3292 = vlaneseq
          %v3293 = vshrl.u32 %v3292, 7
          %v3294 = vsub.s32 1, %v3293
          %v3295 = vrot.slane %v3283, %v3294
          %v3298 = vmul.f32 %v3241, %v3291
          %v3299 = vmul.f32 %v3242, %v3295
          %v3300 = vmul.f32 %v3243, %v3291
          %v3301 = vmul.f32 %v3244, %v3295
          %v3302 = vmul.f32 %v3245, %v3291
          %v3303 = vmul.f32 %v3246, %v3295
          %v3304 = vmul.f32 %v3247, %v3291
          %v3305 = vmul.f32 %v3248, %v3295
          %v3306 = vmul.f32 %v3249, %v3291
          %v3307 = vmul.f32 %v3250, %v3295
          %v3308 = vmul.f32 %v3251, %v3291
          %v3309 = vmul.f32 %v3252, %v3295
          %v3310 = vmul.f32 %v3253, %v3291
          %v3311 = vmul.f32 %v3254, %v3295
          %v3312 = vmul.f32 %v3255, %v3291
          %v3313 = vmul.f32 %v3256, %v3295
          %v3314 = vmul.f32 %v3257, %v3291
          %v3315 = vmul.f32 %v3258, %v3295
          %v3316 = vmul.f32 %v3259, %v3291
          %v3317 = vmul.f32 %v3260, %v3295
          %v3318 = vmul.f32 %v3261, %v3291
          %v3319 = vmul.f32 %v3262, %v3295
          %v3320 = vmul.f32 %v3263, %v3291
          %v3321 = vmul.f32 %v3264, %v3295
          %v3322 = vmul.f32 %v3265, %v3291
          %v3323 = vmul.f32 %v3266, %v3295
          %v3324 = vmul.f32 %v3267, %v3291
          %v3325 = vmul.f32 %v3268, %v3295
          %v3326 = vmul.f32 %v3269, %v3291
          %v3327 = vmul.f32 %v3270, %v3295
          %v3328 = vmul.f32 %v3271, %v3291
          %v3329 = vmul.f32 %v3272, %v3295
          %v3331 = vlaneseq
          %v3332 = vshrl.u32 %v3331, 7
          %v3333 = vsub.s32 0, %v3332
          %v3334 = vrot.slane %v3286, %v3333
          %v3335 = vlaneseq
          %v3336 = vshrl.u32 %v3335, 7
          %v3337 = vsub.s32 1, %v3336
          %v3338 = vrot.slane %v3286, %v3337
          %v3341 = vadd.f32 %v3298, %v3334
          %v3342 = vadd.f32 %v3299, %v3338
          %v3343 = vadd.f32 %v3300, %v3334
          %v3344 = vadd.f32 %v3301, %v3338
          %v3345 = vadd.f32 %v3302, %v3334
          %v3346 = vadd.f32 %v3303, %v3338
          %v3347 = vadd.f32 %v3304, %v3334
          %v3348 = vadd.f32 %v3305, %v3338
          %v3349 = vadd.f32 %v3306, %v3334
          %v3350 = vadd.f32 %v3307, %v3338
          %v3351 = vadd.f32 %v3308, %v3334
          %v3352 = vadd.f32 %v3309, %v3338
          %v3353 = vadd.f32 %v3310, %v3334
          %v3354 = vadd.f32 %v3311, %v3338
          %v3355 = vadd.f32 %v3312, %v3334
          %v3356 = vadd.f32 %v3313, %v3338
          %v3357 = vadd.f32 %v3314, %v3334
          %v3358 = vadd.f32 %v3315, %v3338
          %v3359 = vadd.f32 %v3316, %v3334
          %v3360 = vadd.f32 %v3317, %v3338
          %v3361 = vadd.f32 %v3318, %v3334
          %v3362 = vadd.f32 %v3319, %v3338
          %v3363 = vadd.f32 %v3320, %v3334
          %v3364 = vadd.f32 %v3321, %v3338
          %v3365 = vadd.f32 %v3322, %v3334
          %v3366 = vadd.f32 %v3323, %v3338
          %v3367 = vadd.f32 %v3324, %v3334
          %v3368 = vadd.f32 %v3325, %v3338
          %v3369 = vadd.f32 %v3326, %v3334
          %v3370 = vadd.f32 %v3327, %v3338
          %v3371 = vadd.f32 %v3328, %v3334
          %v3372 = vadd.f32 %v3329, %v3338
          %3373 = vst [vmem:[%s361] sm:$0xff] %v3341
          %3374 = vst [vmem:[%s361 + $0x8] sm:$0xff] %v3342
          %3375 = vst [vmem:[%s361 + $0x10] sm:$0xff] %v3343
          %3376 = vst [vmem:[%s361 + $0x18] sm:$0xff] %v3344
          %3377 = vst [vmem:[%s361 + $0x20] sm:$0xff] %v3345
          %3378 = vst [vmem:[%s361 + $0x28] sm:$0xff] %v3346
          %3379 = vst [vmem:[%s361 + $0x30] sm:$0xff] %v3347
          %3380 = vst [vmem:[%s361 + $0x38] sm:$0xff] %v3348
          %3381 = vst [vmem:[%s361 + $0x40] sm:$0xff] %v3349
          %3382 = vst [vmem:[%s361 + $0x48] sm:$0xff] %v3350
          %3383 = vst [vmem:[%s361 + $0x50] sm:$0xff] %v3351
          %3384 = vst [vmem:[%s361 + $0x58] sm:$0xff] %v3352
          %3385 = vst [vmem:[%s361 + $0x60] sm:$0xff] %v3353
          %3386 = vst [vmem:[%s361 + $0x68] sm:$0xff] %v3354
          %3387 = vst [vmem:[%s361 + $0x70] sm:$0xff] %v3355
          %3388 = vst [vmem:[%s361 + $0x78] sm:$0xff] %v3356
          %3389 = vst [vmem:[%s361 + $0x80] sm:$0xff] %v3357
          %3390 = vst [vmem:[%s361 + $0x88] sm:$0xff] %v3358
          %3391 = vst [vmem:[%s361 + $0x90] sm:$0xff] %v3359
          %3392 = vst [vmem:[%s361 + $0x98] sm:$0xff] %v3360
          %3393 = vst [vmem:[%s361 + $0xa0] sm:$0xff] %v3361
          %3394 = vst [vmem:[%s361 + $0xa8] sm:$0xff] %v3362
          %3395 = vst [vmem:[%s361 + $0xb0] sm:$0xff] %v3363
          %3396 = vst [vmem:[%s361 + $0xb8] sm:$0xff] %v3364
          %3397 = vst [vmem:[%s361 + $0xc0] sm:$0xff] %v3365
          %3398 = vst [vmem:[%s361 + $0xc8] sm:$0xff] %v3366
          %3399 = vst [vmem:[%s361 + $0xd0] sm:$0xff] %v3367
          %3400 = vst [vmem:[%s361 + $0xd8] sm:$0xff] %v3368
          %3401 = vst [vmem:[%s361 + $0xe0] sm:$0xff] %v3369
          %3402 = vst [vmem:[%s361 + $0xe8] sm:$0xff] %v3370
          %3403 = vst [vmem:[%s361 + $0xf0] sm:$0xff] %v3371
          %3404 = vst [vmem:[%s361 + $0xf8] sm:$0xff] %v3372
        $region80: #{tpu_custom_call.1} parent=47 // pred_fallthru
          _
        %s3405 = sand.u32 %s206, 1
        %s3406 = scalar_lea.sflag [#allocation10], %s3405
        %s3407 = sand.u32 %s206, 1
        %s3408 = smul.addr %s3407, 256
        %s3409 = scalar_lea.vmem [#allocation16], %s3408
        // Predicated region
        $region81: #{tpu_custom_call.1} parent=47 // pred_check
          %p3410 = pneg %p216
        $region82: #{tpu_custom_call.1} parent=47 // pred_check_branch
          %3412 = sbr.rel (%p3410) target = $region84
        $region83: #{tpu_custom_call.1} parent=47 // pred_region
          %p3413 = scmp.eq.s32.totalorder %s30, 2
          %s3414 = scalar_select %p3413, %s31, 0
          %s3415 = smul.u32 16, %s3414
          %s3417 = ssub.s32 4096, 4096
          %3418 = vsyncadd %s3406, %s3417
          %s3419 = smul.addr %s3415, 2
          %s3420 = smul.addr %s3419, 128
          %s3421 = scalar_lea.hbm %s7, %s3420
          %s3422 = sshll.u32 %s3409, 4
          %s3423 = int_to_ptr.vmem [resolvable:$true] %s3422
          %3428 = dma.vmem_to_hbm [thread:$0]  %s3423, 4096, %s3421, %s3406, 256, 256, 16
        $region84: #{tpu_custom_call.1} parent=47 // pred_fallthru
          _
      $region48: #{tpu_custom_call.1} parent=5 // pred_fallthru
        _
      %p3429 = scmp.le.s32.totalorder 2, %s21
      // Predicated region
      $region85: #{tpu_custom_call.1} parent=5 // pred_check
        %p3430 = pneg %p3429
      $region86: #{tpu_custom_call.1} parent=5 // pred_check_branch
        %3432 = sbr.rel (%p3430) target = $region88
      $region87: #{tpu_custom_call.1} parent=5 // pred_region
        %s3433 = ssub.s32 %s21, 2
        // Predicated region
        $region89: #{tpu_custom_call.1} parent=87 // pred_check
          %p3434 = pneg %p222
        $region90: #{tpu_custom_call.1} parent=87 // pred_check_branch
          %3436 = sbr.rel (%p3434) target = $region92
        $region91: #{tpu_custom_call.1} parent=87 // pred_region
          %s3437 = sand.u32 %s207, 1
          %s3438 = scalar_lea.sflag [#allocation10], %s3437
          %s3439 = sand.u32 %s207, 1
          %s3440 = smul.addr %s3439, 256
          %s3441 = scalar_lea.vmem [#allocation16], %s3440
          %3442 = dma.done %s3438, 4096
        $region92: #{tpu_custom_call.1} parent=87 // pred_fallthru
          _
      $region88: #{tpu_custom_call.1} parent=5 // pred_fallthru
        _
    $region6: #{tpu_custom_call.1} parent=1 // loop_footer
      %s25 = sadd.s32 1, %s21
    $region7: #{tpu_custom_call.1} parent=1 // loop_footer_branch
      %20 = sbr.rel target = $region3
    $region8: #{tpu_custom_call.1} parent=1 // loop_exit
      _
    %3443 = vsyncpa [#allocation9], 1
    %s3444 = scalar_lea.sflag [#allocation9], 1
    %3445 = vsyncpa %s3444, 1
    %3446 = vsyncpa [#allocation12], 1
    %3447 = vsyncpa [#allocation15], 1
    %3448 = vsyncpa [#allocation10], 1
    %s3449 = scalar_lea.sflag [#allocation10], 1
    %3450 = vsyncpa %s3449, 1

</llo_original>
